<compile_context>
chip_gen: v6e
topology: v6e:2x2x1
jax: 0.10.0
libtpu: 0.0.40
codegen_flags: <defaults>
</compile_context>

<pallas_src>
import math

import jax
import jax.numpy as jnp
from jax.experimental import pallas as pl
from jax.experimental.pallas import tpu as pltpu

# ----------------------------- configuration --------------------------------
B = 2            # batch
C = 3            # image channels (ViT default)
IMG = 16         # spatial size
P = 8            # patch size
NP = (IMG // P) ** 2          # num patches = 4
S = NP + 1                    # sequence length (CLS + patches) = 5
S_PAD = 8                     # padded sequence length (sublane multiple)
BS = B * S_PAD                # batch folded into sublane dim = 16
H = 32           # hidden size
NH = 4           # attention heads
HD = H // NH     # head dim = 8
I = 4 * H        # MLP intermediate = 128
L = 2            # encoder layers
CPP = C * P * P  # flattened patch dim = 192
EPS = 1e-12      # ViT layer_norm_eps
SCALE = 1.0 / math.sqrt(HD)
NEG = -1e30      # additive mask value (f32 only!)


# ------------------------------ fused Pallas kernel --------------------------
def _vit_fused_kernel(
    patches_ref, embed_add_ref, amask_ref, patch_w_ref,
    ln1_g_ref, ln1_b_ref,
    wq_ref, bq_ref, wk_ref, bk_ref, wv_ref, bv_ref,
    wo_ref, bo_ref,
    ln2_g_ref, ln2_b_ref, wi_ref, bi_ref, wp_ref, bp_ref,
    lnf_g_ref, lnf_b_ref, o_ref,
):
    """Single invocation == whole batch. All activations stay in vregs/VMEM."""

    def layer_norm(y, g, b):
        m = jnp.mean(y, axis=-1, keepdims=True)
        v = jnp.mean((y - m) * (y - m), axis=-1, keepdims=True)
        return (y - m) * jax.lax.rsqrt(v + EPS) * g + b

    # Patch embedding fused with CLS token + positional embedding (folded batch):
    #   patches rows per image: [0]=zeros (CLS slot), [1..NP]=patches, [NP+1..]=zeros
    #   embed_add rows per image: [0]=cls+pos[0], [1..NP]=pos[i]+patch_b, rest zeros
    x = (
        jnp.dot(patches_ref[...], patch_w_ref[...],
                preferred_element_type=jnp.float32)
        + embed_add_ref[...]
    )                                                    # [BS, H] f32
    mask_add = amask_ref[...]                            # [BS, BS] block-diag + key-pad

    for l in range(L):                                   # unrolled (L static & small)
        # --------------------- multi-head self-attention (pre-LN) -------------
        xl = layer_norm(x, ln1_g_ref[l], ln1_b_ref[l])
        xl_b = xl.astype(jnp.bfloat16)                   # MXU operand only
        ctx_heads = []
        for h in range(NH):                              # unrolled head loop
            idx = l * NH + h                             # head-blocked weights: no
            q = jnp.dot(xl_b, wq_ref[idx],               # 8-lane slices of a qkv slab
                        preferred_element_type=jnp.float32) + bq_ref[idx]
            k = jnp.dot(xl_b, wk_ref[idx],
                        preferred_element_type=jnp.float32) + bk_ref[idx]
            v = jnp.dot(xl_b, wv_ref[idx],
                        preferred_element_type=jnp.float32) + bv_ref[idx]
            s = jax.lax.dot_general(
                q, k, (((1,), (1,)), ((), ())),
                preferred_element_type=jnp.float32) * SCALE      # [BS, BS] f32
            s = s + mask_add                              # per-image + key-pad mask
            s = s - jnp.max(s, axis=-1, keepdims=True)
            p = jnp.exp(s)
            p = p * pl.reciprocal(jnp.sum(p, axis=-1, keepdims=True), approx=True)
            ctx_heads.append(
                jnp.dot(p, v, preferred_element_type=jnp.float32))  # [BS, HD]
        # single ctx slab -> ONE output projection (no per-head MRF round-trips)
        ctx = jnp.concatenate(ctx_heads, axis=-1).astype(jnp.bfloat16)   # [BS, H]
        x = (
            jnp.dot(ctx, wo_ref[l], preferred_element_type=jnp.float32)
            + bo_ref[l] + x
        )

        # ------------------------------- MLP (pre-LN) -------------------------
        xl2 = layer_norm(x, ln2_g_ref[l], ln2_b_ref[l]).astype(jnp.bfloat16)
        inter = (
            jnp.dot(xl2, wi_ref[l], preferred_element_type=jnp.float32)
            + bi_ref[l]
        )
        # TODO(synk): HF ViT uses exact erf-GELU; tanh-approx GELU used here for
        # guaranteed Mosaic lowering (max abs diff ~1e-3 vs erf).
        inter = jax.nn.gelu(inter, approximate=True).astype(jnp.bfloat16)
        x = (
            jnp.dot(inter, wp_ref[l], preferred_element_type=jnp.float32)
            + bp_ref[l] + x
        )

    # final LayerNorm == last_hidden_state (padded rows sliced off outside)
    o_ref[...] = layer_norm(x, lnf_g_ref[...], lnf_b_ref[...])


# ------------------------------ pallas wrapper --------------------------------
def _full_spec(shape):
    nd = len(shape)
    return pl.BlockSpec(shape, lambda i, _nd=nd: (0,) * _nd)


def _extract_patches(images):
    """NCHW [B,C,IMG,IMG] -> [B, NP, C*P*P] (row-major patch order == conv flatten)."""
    b = images.shape[0]
    x = images.reshape(b, C, IMG // P, P, IMG // P, P)
    x = x.transpose(0, 2, 4, 1, 3, 5)            # [B, gh, gw, C, P, P]
    return x.reshape(b, NP, CPP)


def maskvlm_image_encoder_forward(packed, images):
    """Returns last_hidden_state [B, S, H]."""
    b = images.shape[0]
    bs = b * S_PAD
    patches = _extract_patches(images)                                  # [B, NP, CPP]
    # shift down by one row (CLS slot), zero-pad sequence to S_PAD, fold batch
    patches_folded = (
        jnp.zeros((b, S_PAD, CPP), jnp.float32)
        .at[:, 1:1 + NP].set(patches)
        .reshape(bs, CPP)
    )

    in_specs = [
        _full_spec((bs, CPP)),                                # patches (folded batch)
        _full_spec((bs, H)),                                  # embed_add (pre-tiled)
        _full_spec((bs, bs)),                                 # block-diag attn mask
        _full_spec((CPP, H)),                                 # patch_w (f32)
        _full_spec((L, 1, H)), _full_spec((L, 1, H)),         # ln1 g/b
        _full_spec((L * NH, H, HD)), _full_spec((L * NH, 1, HD)),  # wq / bq (head-blocked)
        _full_spec((L * NH, H, HD)), _full_spec((L * NH, 1, HD)),  # wk / bk
        _full_spec((L * NH, H, HD)), _full_spec((L * NH, 1, HD)),  # wv / bv
        _full_spec((L, H, H)), _full_spec((L, 1, H)),         # wo / bo
        _full_spec((L, 1, H)), _full_spec((L, 1, H)),         # ln2 g/b
        _full_spec((L, H, I)), _full_spec((L, 1, I)),         # wi / bi
        _full_spec((L, I, H)), _full_spec((L, 1, H)),         # wp / bp
        _full_spec((1, H)), _full_spec((1, H)),               # final LN g/b
    ]

    out = pl.pallas_call(
        _vit_fused_kernel,
        out_shape=jax.ShapeDtypeStruct((bs, H), jnp.float32),
        grid=(1,),                                            # single step, whole batch
        in_specs=in_specs,
        out_specs=_full_spec((bs, H)),
        compiler_params=pltpu.CompilerParams(
            dimension_semantics=("arbitrary",)),
        cost_estimate=pl.CostEstimate(
            flops=1_200_000, transcendentals=8_192, bytes_accessed=110_000),
    )(
        patches_folded, packed["embed_add"], packed["amask"], packed["patch_w"],
        packed["ln1_g"], packed["ln1_b"],
        packed["wq"], packed["bq"], packed["wk"], packed["bk"],
        packed["wv"], packed["bv"],
        packed["wo"], packed["bo"], packed["ln2_g"], packed["ln2_b"],
        packed["wi"], packed["bi"], packed["wp"], packed["bp"],
        packed["lnf_g"], packed["lnf_b"],
    )
    return out.reshape(b, S_PAD, H)[:, :S, :]


# ------------------------------ parameter init -------------------------------
def init_params(key):
    ks = iter(jax.random.split(key, 64))
    nrm = lambda shape: 0.02 * jax.random.normal(next(ks), shape, jnp.float32)
    params = {
        "patch_w": nrm((CPP, H)),      # flattened Conv2d(C,H,P,stride=P) weight
        "patch_b": jnp.zeros((H,), jnp.float32),
        "cls": nrm((1, 1, H)),
        "pos": nrm((1, S, H)),
        "lnf_g": jnp.ones((H,), jnp.float32),
        "lnf_b": jnp.zeros((H,), jnp.float32),
        "layers": [],
    }
    for _ in range(L):
        params["layers"].append({
            "ln1_g": jnp.ones((H,), jnp.float32), "ln1_b": jnp.zeros((H,), jnp.float32),
            "wq": nrm((H, H)), "bq": jnp.zeros((H,), jnp.float32),
            "wk": nrm((H, H)), "bk": jnp.zeros((H,), jnp.float32),
            "wv": nrm((H, H)), "bv": jnp.zeros((H,), jnp.float32),
            "wo": nrm((H, H)), "bo": jnp.zeros((H,), jnp.float32),
            "ln2_g": jnp.ones((H,), jnp.float32), "ln2_b": jnp.zeros((H,), jnp.float32),
            "wi": nrm((H, I)), "bi": jnp.zeros((I,), jnp.float32),
            "wp": nrm((I, H)), "bp": jnp.zeros((H,), jnp.float32),
        })
    return params


def pack_params(params):
    """One-time packing (outside jit): head-blocked bf16 weights, folded embeddings,
    pre-tiled embed_add and block-diagonal attention mask."""
    per_img = jnp.zeros((S_PAD, H), jnp.float32)
    per_img = per_img.at[0].set(params["cls"][0, 0] + params["pos"][0, 0])
    per_img = per_img.at[1:S].set(params["pos"][0, 1:S] + params["patch_b"])
    embed_add = jnp.tile(per_img, (B, 1))                                # [BS, H]

    row = jnp.arange(BS)
    same_img = (row[:, None] // S_PAD) == (row[None, :] // S_PAD)
    key_valid = (row[None, :] % S_PAD) < S
    amask = jnp.where(same_img & key_valid, 0.0, NEG).astype(jnp.float32)  # [BS, BS]

    def stack(name):
        return jnp.stack([lp[name] for lp in params["layers"]])

    def head_w(name):    # [L, H, H] -> [L*NH, H, HD], head h == cols h*HD:(h+1)*HD
        w = stack(name).reshape(L, H, NH, HD).transpose(0, 2, 1, 3)
        return w.reshape(L * NH, H, HD).astype(jnp.bfloat16)

    def head_b(name):    # [L, H] -> [L*NH, 1, HD]
        return stack(name).reshape(L * NH, 1, HD)

    packed = {
        # patch_w stays f32: anchors the residual stream (largest term) and is only
        # ~24 KB of the ~150 KB weight traffic.
        "patch_w": params["patch_w"],
        "embed_add": embed_add,
        "amask": amask,
        "ln1_g": stack("ln1_g").reshape(L, 1, H),
        "ln1_b": stack("ln1_b").reshape(L, 1, H),
        "wq": head_w("wq"), "bq": head_b("bq"),
        "wk": head_w("wk"), "bk": head_b("bk"),
        "wv": head_w("wv"), "bv": head_b("bv"),
        "wo": stack("wo").astype(jnp.bfloat16),
        "bo": stack("bo").reshape(L, 1, H),
        "ln2_g": stack("ln2_g").reshape(L, 1, H),
        "ln2_b": stack("ln2_b").reshape(L, 1, H),
        "wi": stack("wi").astype(jnp.bfloat16),
        "bi": stack("bi").reshape(L, 1, I),
        "wp": stack("wp").astype(jnp.bfloat16),
        "bp": stack("bp").reshape(L, 1, H),
        "lnf_g": params["lnf_g"].reshape(1, H),
        "lnf_b": params["lnf_b"].reshape(1, H),
    }
    return packed


# ------------------------------ pure-JAX reference ---------------------------
def _reference_forward(params, images):
    """Module semantics in f32 (tanh-GELU, see TODO in kernel)."""
    b = images.shape[0]
    x = _extract_patches(images).reshape(b * NP, -1) @ params["patch_w"] + params["patch_b"]
    x = x.reshape(b, NP, H)
    x = jnp.concatenate([jnp.broadcast_to(params["cls"], (b, 1, H)), x], 1) + params["pos"]

    def ln(y, g, bb):
        m = jnp.mean(y, -1, keepdims=True)
        v = jnp.mean((y - m) ** 2, -1, keepdims=True)
        return (y - m) / jnp.sqrt(v + EPS) * g + bb

    for lp in params["layers"]:
        h = x
        xl = ln(x, lp["ln1_g"], lp["ln1_b"])
        q = (xl @ lp["wq"] + lp["bq"]).reshape(b, S, NH, HD).transpose(0, 2, 1, 3)
        k = (xl @ lp["wk"] + lp["bk"]).reshape(b, S, NH, HD).transpose(0, 2, 1, 3)
        v = (xl @ lp["wv"] + lp["bv"]).reshape(b, S, NH, HD).transpose(0, 2, 1, 3)
        sc = jnp.einsum("bhqd,bhkd->bhqk", q, k) / math.sqrt(HD)
        p = jax.nn.softmax(sc, axis=-1)
        ctx = jnp.einsum("bhqk,bhkd->bhqd", p, v).transpose(0, 2, 1, 3).reshape(b, S, H)
        x = ctx @ lp["wo"] + lp["bo"] + h
        xl2 = ln(x, lp["ln2_g"], lp["ln2_b"])
        inter = jax.nn.gelu(xl2 @ lp["wi"] + lp["bi"], approximate=True)
        x = inter @ lp["wp"] + lp["bp"] + x
    return ln(x, params["lnf_g"], params["lnf_b"])


# ----------------------------------- main -------------------------------------
if __name__ == "__main__":
    key = jax.random.PRNGKey(0)
    k_img, k_par = jax.random.split(key)
    images = jax.random.normal(k_img, (B, C, IMG, IMG), jnp.float32)  # NCHW, like torch
    params = init_params(k_par)
    packed = pack_params(params)     # packed once, outside the jitted forward

    fwd = jax.jit(maskvlm_image_encoder_forward)
    out = jax.block_until_ready(fwd(packed, images))

    assert out.shape == (B, S, H), out.shape
    ref = _reference_forward(params, images)   # f32 reference (module semantics)
    max_err = float(jnp.max(jnp.abs(out - ref)))
    # divergence vs the f32 reference is dominated by the bf16 cast of the per-layer
    # matmul weights (intentional inference-precision choice); well under 2e-2.
    assert bool(jnp.all(jnp.isfinite(out))) and max_err < 2e-2, f"max_err={max_err}"

    print("KERNEL_OK")
</pallas_src>

<mosaic_0001>
module attributes {stable_mosaic.version = 11 : i64} {
  func.func @_vit_fused_kernel(%arg0: i32, %arg1: memref<16x192xf32, #tpu.memory_space<vmem>>, %arg2: memref<16x32xf32, #tpu.memory_space<vmem>>, %arg3: memref<16x16xf32, #tpu.memory_space<vmem>>, %arg4: memref<192x32xf32, #tpu.memory_space<vmem>>, %arg5: memref<2x1x32xf32, #tpu.memory_space<vmem>>, %arg6: memref<2x1x32xf32, #tpu.memory_space<vmem>>, %arg7: memref<8x32x8xbf16, #tpu.memory_space<vmem>>, %arg8: memref<8x1x8xf32, #tpu.memory_space<vmem>>, %arg9: memref<8x32x8xbf16, #tpu.memory_space<vmem>>, %arg10: memref<8x1x8xf32, #tpu.memory_space<vmem>>, %arg11: memref<8x32x8xbf16, #tpu.memory_space<vmem>>, %arg12: memref<8x1x8xf32, #tpu.memory_space<vmem>>, %arg13: memref<2x32x32xbf16, #tpu.memory_space<vmem>>, %arg14: memref<2x1x32xf32, #tpu.memory_space<vmem>>, %arg15: memref<2x1x32xf32, #tpu.memory_space<vmem>>, %arg16: memref<2x1x32xf32, #tpu.memory_space<vmem>>, %arg17: memref<2x32x128xbf16, #tpu.memory_space<vmem>>, %arg18: memref<2x1x128xf32, #tpu.memory_space<vmem>>, %arg19: memref<2x128x32xbf16, #tpu.memory_space<vmem>>, %arg20: memref<2x1x32xf32, #tpu.memory_space<vmem>>, %arg21: memref<1x32xf32, #tpu.memory_space<vmem>>, %arg22: memref<1x32xf32, #tpu.memory_space<vmem>>, %arg23: memref<16x32xf32, #tpu.memory_space<vmem>>) attributes {dimension_semantics = [#tpu.dimension_semantics<arbitrary>], iteration_bounds = array<i64: 1>, scalar_prefetch = 0 : i64, scratch_operands = 0 : i64, tpu.core_type = #tpu.core_type<tc>, window_params = [{pipeline_mode = #tpu.pipeline_mode<synchronous>, transform_indices = @transform_0, window_bounds = array<i64: 16, 192>}, {pipeline_mode = #tpu.pipeline_mode<synchronous>, transform_indices = @transform_1, window_bounds = array<i64: 16, 32>}, {pipeline_mode = #tpu.pipeline_mode<synchronous>, transform_indices = @transform_2, window_bounds = array<i64: 16, 16>}, {pipeline_mode = #tpu.pipeline_mode<synchronous>, transform_indices = @transform_3, window_bounds = array<i64: 192, 32>}, {pipeline_mode = #tpu.pipeline_mode<synchronous>, transform_indices = @transform_4, window_bounds = array<i64: 2, 1, 32>}, {pipeline_mode = #tpu.pipeline_mode<synchronous>, transform_indices = @transform_5, window_bounds = array<i64: 2, 1, 32>}, {pipeline_mode = #tpu.pipeline_mode<synchronous>, transform_indices = @transform_6, window_bounds = array<i64: 8, 32, 8>}, {pipeline_mode = #tpu.pipeline_mode<synchronous>, transform_indices = @transform_7, window_bounds = array<i64: 8, 1, 8>}, {pipeline_mode = #tpu.pipeline_mode<synchronous>, transform_indices = @transform_8, window_bounds = array<i64: 8, 32, 8>}, {pipeline_mode = #tpu.pipeline_mode<synchronous>, transform_indices = @transform_9, window_bounds = array<i64: 8, 1, 8>}, {pipeline_mode = #tpu.pipeline_mode<synchronous>, transform_indices = @transform_10, window_bounds = array<i64: 8, 32, 8>}, {pipeline_mode = #tpu.pipeline_mode<synchronous>, transform_indices = @transform_11, window_bounds = array<i64: 8, 1, 8>}, {pipeline_mode = #tpu.pipeline_mode<synchronous>, transform_indices = @transform_12, window_bounds = array<i64: 2, 32, 32>}, {pipeline_mode = #tpu.pipeline_mode<synchronous>, transform_indices = @transform_13, window_bounds = array<i64: 2, 1, 32>}, {pipeline_mode = #tpu.pipeline_mode<synchronous>, transform_indices = @transform_14, window_bounds = array<i64: 2, 1, 32>}, {pipeline_mode = #tpu.pipeline_mode<synchronous>, transform_indices = @transform_15, window_bounds = array<i64: 2, 1, 32>}, {pipeline_mode = #tpu.pipeline_mode<synchronous>, transform_indices = @transform_16, window_bounds = array<i64: 2, 32, 128>}, {pipeline_mode = #tpu.pipeline_mode<synchronous>, transform_indices = @transform_17, window_bounds = array<i64: 2, 1, 128>}, {pipeline_mode = #tpu.pipeline_mode<synchronous>, transform_indices = @transform_18, window_bounds = array<i64: 2, 128, 32>}, {pipeline_mode = #tpu.pipeline_mode<synchronous>, transform_indices = @transform_19, window_bounds = array<i64: 2, 1, 32>}, {pipeline_mode = #tpu.pipeline_mode<synchronous>, transform_indices = @transform_20, window_bounds = array<i64: 1, 32>}, {pipeline_mode = #tpu.pipeline_mode<synchronous>, transform_indices = @transform_21, window_bounds = array<i64: 1, 32>}, {pipeline_mode = #tpu.pipeline_mode<synchronous>, transform_indices = @transform_22, window_bounds = array<i64: 16, 32>}]} {
    %c0 = arith.constant 0 : index
    %c0_0 = arith.constant 0 : index
    %0 = vector.load %arg1[%c0, %c0_0] : memref<16x192xf32, #tpu.memory_space<vmem>>, vector<16x192xf32>
    %c0_1 = arith.constant 0 : index
    %c0_2 = arith.constant 0 : index
    %1 = vector.load %arg4[%c0_1, %c0_2] : memref<192x32xf32, #tpu.memory_space<vmem>>, vector<192x32xf32>
    %cst = arith.constant dense<0.000000e+00> : vector<16x32xf32>
    %2 = tpu.matmul %0, %1, %cst {dimension_numbers = #tpu.dot_dimension_numbers<[1], [0], [0], [1], [0, 0, 1, 1], [], []>} : vector<16x192xf32>, vector<192x32xf32>, vector<16x32xf32> -> vector<16x32xf32>
    %c0_3 = arith.constant 0 : index
    %c0_4 = arith.constant 0 : index
    %3 = vector.load %arg2[%c0_3, %c0_4] : memref<16x32xf32, #tpu.memory_space<vmem>>, vector<16x32xf32>
    %4 = arith.addf %2, %3 : vector<16x32xf32>
    %c0_5 = arith.constant 0 : index
    %c0_6 = arith.constant 0 : index
    %5 = vector.load %arg3[%c0_5, %c0_6] : memref<16x16xf32, #tpu.memory_space<vmem>>, vector<16x16xf32>
    %c0_7 = arith.constant 0 : index
    %c0_8 = arith.constant 0 : index
    %c0_9 = arith.constant 0 : index
    %6 = vector.load %arg5[%c0_7, %c0_8, %c0_9] : memref<2x1x32xf32, #tpu.memory_space<vmem>>, vector<1x1x32xf32>
    %7 = vector.shape_cast %6 : vector<1x1x32xf32> to vector<1x32xf32>
    %c0_10 = arith.constant 0 : index
    %c0_11 = arith.constant 0 : index
    %c0_12 = arith.constant 0 : index
    %8 = vector.load %arg6[%c0_10, %c0_11, %c0_12] : memref<2x1x32xf32, #tpu.memory_space<vmem>>, vector<1x1x32xf32>
    %9 = vector.shape_cast %8 : vector<1x1x32xf32> to vector<1x32xf32>
    %cst_13 = arith.constant dense<0.000000e+00> : vector<16xf32>
    %10 = vector.multi_reduction <add>, %4, %cst_13 [1] : vector<16x32xf32> to vector<16xf32>
    %11 = vector.shape_cast %10 : vector<16xf32> to vector<16x1xf32>
    %cst_14 = arith.constant 3.200000e+01 : f32
    %12 = vector.broadcast %cst_14 : f32 to vector<16x1xf32>
    %13 = arith.divf %11, %12 : vector<16x1xf32>
    %14 = vector.broadcast %13 : vector<16x1xf32> to vector<16x32xf32>
    %15 = arith.subf %4, %14 : vector<16x32xf32>
    %16 = vector.broadcast %13 : vector<16x1xf32> to vector<16x32xf32>
    %17 = arith.subf %4, %16 : vector<16x32xf32>
    %18 = arith.mulf %15, %17 : vector<16x32xf32>
    %cst_15 = arith.constant dense<0.000000e+00> : vector<16xf32>
    %19 = vector.multi_reduction <add>, %18, %cst_15 [1] : vector<16x32xf32> to vector<16xf32>
    %20 = vector.shape_cast %19 : vector<16xf32> to vector<16x1xf32>
    %cst_16 = arith.constant 3.200000e+01 : f32
    %21 = vector.broadcast %cst_16 : f32 to vector<16x1xf32>
    %22 = arith.divf %20, %21 : vector<16x1xf32>
    %23 = vector.broadcast %13 : vector<16x1xf32> to vector<16x32xf32>
    %24 = arith.subf %4, %23 : vector<16x32xf32>
    %cst_17 = arith.constant 9.99999996E-13 : f32
    %25 = vector.broadcast %cst_17 : f32 to vector<16x1xf32>
    %26 = arith.addf %22, %25 : vector<16x1xf32>
    %27 = math.rsqrt %26 : vector<16x1xf32>
    %28 = vector.broadcast %27 : vector<16x1xf32> to vector<16x32xf32>
    %29 = arith.mulf %24, %28 : vector<16x32xf32>
    %30 = vector.broadcast %7 : vector<1x32xf32> to vector<16x32xf32>
    %31 = arith.mulf %29, %30 : vector<16x32xf32>
    %32 = vector.broadcast %9 : vector<1x32xf32> to vector<16x32xf32>
    %33 = arith.addf %31, %32 : vector<16x32xf32>
    %34 = arith.truncf %33 : vector<16x32xf32> to vector<16x32xbf16>
    %c0_18 = arith.constant 0 : index
    %c0_19 = arith.constant 0 : index
    %c0_20 = arith.constant 0 : index
    %35 = vector.load %arg7[%c0_18, %c0_19, %c0_20] : memref<8x32x8xbf16, #tpu.memory_space<vmem>>, vector<1x32x8xbf16>
    %36 = vector.shape_cast %35 : vector<1x32x8xbf16> to vector<32x8xbf16>
    %cst_21 = arith.constant dense<0.000000e+00> : vector<16x8xf32>
    %37 = tpu.matmul %34, %36, %cst_21 {dimension_numbers = #tpu.dot_dimension_numbers<[1], [0], [0], [1], [0, 0, 1, 1], [], []>} : vector<16x32xbf16>, vector<32x8xbf16>, vector<16x8xf32> -> vector<16x8xf32>
    %c0_22 = arith.constant 0 : index
    %c0_23 = arith.constant 0 : index
    %c0_24 = arith.constant 0 : index
    %38 = vector.load %arg8[%c0_22, %c0_23, %c0_24] : memref<8x1x8xf32, #tpu.memory_space<vmem>>, vector<1x1x8xf32>
    %39 = vector.shape_cast %38 : vector<1x1x8xf32> to vector<1x8xf32>
    %40 = vector.broadcast %39 : vector<1x8xf32> to vector<16x8xf32>
    %41 = arith.addf %37, %40 : vector<16x8xf32>
    %c0_25 = arith.constant 0 : index
    %c0_26 = arith.constant 0 : index
    %c0_27 = arith.constant 0 : index
    %42 = vector.load %arg9[%c0_25, %c0_26, %c0_27] : memref<8x32x8xbf16, #tpu.memory_space<vmem>>, vector<1x32x8xbf16>
    %43 = vector.shape_cast %42 : vector<1x32x8xbf16> to vector<32x8xbf16>
    %cst_28 = arith.constant dense<0.000000e+00> : vector<16x8xf32>
    %44 = tpu.matmul %34, %43, %cst_28 {dimension_numbers = #tpu.dot_dimension_numbers<[1], [0], [0], [1], [0, 0, 1, 1], [], []>} : vector<16x32xbf16>, vector<32x8xbf16>, vector<16x8xf32> -> vector<16x8xf32>
    %c0_29 = arith.constant 0 : index
    %c0_30 = arith.constant 0 : index
    %c0_31 = arith.constant 0 : index
    %45 = vector.load %arg10[%c0_29, %c0_30, %c0_31] : memref<8x1x8xf32, #tpu.memory_space<vmem>>, vector<1x1x8xf32>
    %46 = vector.shape_cast %45 : vector<1x1x8xf32> to vector<1x8xf32>
    %47 = vector.broadcast %46 : vector<1x8xf32> to vector<16x8xf32>
    %48 = arith.addf %44, %47 : vector<16x8xf32>
    %c0_32 = arith.constant 0 : index
    %c0_33 = arith.constant 0 : index
    %c0_34 = arith.constant 0 : index
    %49 = vector.load %arg11[%c0_32, %c0_33, %c0_34] : memref<8x32x8xbf16, #tpu.memory_space<vmem>>, vector<1x32x8xbf16>
    %50 = vector.shape_cast %49 : vector<1x32x8xbf16> to vector<32x8xbf16>
    %cst_35 = arith.constant dense<0.000000e+00> : vector<16x8xf32>
    %51 = tpu.matmul %34, %50, %cst_35 {dimension_numbers = #tpu.dot_dimension_numbers<[1], [0], [0], [1], [0, 0, 1, 1], [], []>} : vector<16x32xbf16>, vector<32x8xbf16>, vector<16x8xf32> -> vector<16x8xf32>
    %c0_36 = arith.constant 0 : index
    %c0_37 = arith.constant 0 : index
    %c0_38 = arith.constant 0 : index
    %52 = vector.load %arg12[%c0_36, %c0_37, %c0_38] : memref<8x1x8xf32, #tpu.memory_space<vmem>>, vector<1x1x8xf32>
    %53 = vector.shape_cast %52 : vector<1x1x8xf32> to vector<1x8xf32>
    %54 = vector.broadcast %53 : vector<1x8xf32> to vector<16x8xf32>
    %55 = arith.addf %51, %54 : vector<16x8xf32>
    %cst_39 = arith.constant dense<0.000000e+00> : vector<16x16xf32>
    %56 = tpu.matmul %41, %48, %cst_39 {dimension_numbers = #tpu.dot_dimension_numbers<[1], [1], [0], [0], [0, 0, 1, 0], [], []>} : vector<16x8xf32>, vector<16x8xf32>, vector<16x16xf32> -> vector<16x16xf32>
    %cst_40 = arith.constant 0.353553385 : f32
    %57 = vector.broadcast %cst_40 : f32 to vector<16x16xf32>
    %58 = arith.mulf %56, %57 : vector<16x16xf32>
    %59 = arith.addf %58, %5 : vector<16x16xf32>
    %cst_41 = arith.constant dense<0xFF800000> : vector<16xf32>
    %60 = vector.multi_reduction <maximumf>, %59, %cst_41 [1] : vector<16x16xf32> to vector<16xf32>
    %61 = vector.shape_cast %60 : vector<16xf32> to vector<16x1xf32>
    %62 = vector.broadcast %61 : vector<16x1xf32> to vector<16x16xf32>
    %63 = arith.subf %59, %62 : vector<16x16xf32>
    %64 = math.exp %63 : vector<16x16xf32>
    %cst_42 = arith.constant dense<0.000000e+00> : vector<16xf32>
    %65 = vector.multi_reduction <add>, %64, %cst_42 [1] : vector<16x16xf32> to vector<16xf32>
    %66 = vector.shape_cast %65 : vector<16xf32> to vector<16x1xf32>
    %67 = tpu.reciprocal %66 {approx = true} : vector<16x1xf32> -> vector<16x1xf32>
    %68 = vector.broadcast %67 : vector<16x1xf32> to vector<16x16xf32>
    %69 = arith.mulf %64, %68 : vector<16x16xf32>
    %cst_43 = arith.constant dense<0.000000e+00> : vector<16x8xf32>
    %70 = tpu.matmul %69, %55, %cst_43 {dimension_numbers = #tpu.dot_dimension_numbers<[1], [0], [0], [1], [0, 0, 1, 1], [], []>} : vector<16x16xf32>, vector<16x8xf32>, vector<16x8xf32> -> vector<16x8xf32>
    %c1 = arith.constant 1 : index
    %c0_44 = arith.constant 0 : index
    %c0_45 = arith.constant 0 : index
    %71 = vector.load %arg7[%c1, %c0_44, %c0_45] : memref<8x32x8xbf16, #tpu.memory_space<vmem>>, vector<1x32x8xbf16>
    %72 = vector.shape_cast %71 : vector<1x32x8xbf16> to vector<32x8xbf16>
    %cst_46 = arith.constant dense<0.000000e+00> : vector<16x8xf32>
    %73 = tpu.matmul %34, %72, %cst_46 {dimension_numbers = #tpu.dot_dimension_numbers<[1], [0], [0], [1], [0, 0, 1, 1], [], []>} : vector<16x32xbf16>, vector<32x8xbf16>, vector<16x8xf32> -> vector<16x8xf32>
    %c1_47 = arith.constant 1 : index
    %c0_48 = arith.constant 0 : index
    %c0_49 = arith.constant 0 : index
    %74 = vector.load %arg8[%c1_47, %c0_48, %c0_49] : memref<8x1x8xf32, #tpu.memory_space<vmem>>, vector<1x1x8xf32>
    %75 = vector.shape_cast %74 : vector<1x1x8xf32> to vector<1x8xf32>
    %76 = vector.broadcast %75 : vector<1x8xf32> to vector<16x8xf32>
    %77 = arith.addf %73, %76 : vector<16x8xf32>
    %c1_50 = arith.constant 1 : index
    %c0_51 = arith.constant 0 : index
    %c0_52 = arith.constant 0 : index
    %78 = vector.load %arg9[%c1_50, %c0_51, %c0_52] : memref<8x32x8xbf16, #tpu.memory_space<vmem>>, vector<1x32x8xbf16>
    %79 = vector.shape_cast %78 : vector<1x32x8xbf16> to vector<32x8xbf16>
    %cst_53 = arith.constant dense<0.000000e+00> : vector<16x8xf32>
    %80 = tpu.matmul %34, %79, %cst_53 {dimension_numbers = #tpu.dot_dimension_numbers<[1], [0], [0], [1], [0, 0, 1, 1], [], []>} : vector<16x32xbf16>, vector<32x8xbf16>, vector<16x8xf32> -> vector<16x8xf32>
    %c1_54 = arith.constant 1 : index
    %c0_55 = arith.constant 0 : index
    %c0_56 = arith.constant 0 : index
    %81 = vector.load %arg10[%c1_54, %c0_55, %c0_56] : memref<8x1x8xf32, #tpu.memory_space<vmem>>, vector<1x1x8xf32>
    %82 = vector.shape_cast %81 : vector<1x1x8xf32> to vector<1x8xf32>
    %83 = vector.broadcast %82 : vector<1x8xf32> to vector<16x8xf32>
    %84 = arith.addf %80, %83 : vector<16x8xf32>
    %c1_57 = arith.constant 1 : index
    %c0_58 = arith.constant 0 : index
    %c0_59 = arith.constant 0 : index
    %85 = vector.load %arg11[%c1_57, %c0_58, %c0_59] : memref<8x32x8xbf16, #tpu.memory_space<vmem>>, vector<1x32x8xbf16>
    %86 = vector.shape_cast %85 : vector<1x32x8xbf16> to vector<32x8xbf16>
    %cst_60 = arith.constant dense<0.000000e+00> : vector<16x8xf32>
    %87 = tpu.matmul %34, %86, %cst_60 {dimension_numbers = #tpu.dot_dimension_numbers<[1], [0], [0], [1], [0, 0, 1, 1], [], []>} : vector<16x32xbf16>, vector<32x8xbf16>, vector<16x8xf32> -> vector<16x8xf32>
    %c1_61 = arith.constant 1 : index
    %c0_62 = arith.constant 0 : index
    %c0_63 = arith.constant 0 : index
    %88 = vector.load %arg12[%c1_61, %c0_62, %c0_63] : memref<8x1x8xf32, #tpu.memory_space<vmem>>, vector<1x1x8xf32>
    %89 = vector.shape_cast %88 : vector<1x1x8xf32> to vector<1x8xf32>
    %90 = vector.broadcast %89 : vector<1x8xf32> to vector<16x8xf32>
    %91 = arith.addf %87, %90 : vector<16x8xf32>
    %cst_64 = arith.constant dense<0.000000e+00> : vector<16x16xf32>
    %92 = tpu.matmul %77, %84, %cst_64 {dimension_numbers = #tpu.dot_dimension_numbers<[1], [1], [0], [0], [0, 0, 1, 0], [], []>} : vector<16x8xf32>, vector<16x8xf32>, vector<16x16xf32> -> vector<16x16xf32>
    %cst_65 = arith.constant 0.353553385 : f32
    %93 = vector.broadcast %cst_65 : f32 to vector<16x16xf32>
    %94 = arith.mulf %92, %93 : vector<16x16xf32>
    %95 = arith.addf %94, %5 : vector<16x16xf32>
    %cst_66 = arith.constant dense<0xFF800000> : vector<16xf32>
    %96 = vector.multi_reduction <maximumf>, %95, %cst_66 [1] : vector<16x16xf32> to vector<16xf32>
    %97 = vector.shape_cast %96 : vector<16xf32> to vector<16x1xf32>
    %98 = vector.broadcast %97 : vector<16x1xf32> to vector<16x16xf32>
    %99 = arith.subf %95, %98 : vector<16x16xf32>
    %100 = math.exp %99 : vector<16x16xf32>
    %cst_67 = arith.constant dense<0.000000e+00> : vector<16xf32>
    %101 = vector.multi_reduction <add>, %100, %cst_67 [1] : vector<16x16xf32> to vector<16xf32>
    %102 = vector.shape_cast %101 : vector<16xf32> to vector<16x1xf32>
    %103 = tpu.reciprocal %102 {approx = true} : vector<16x1xf32> -> vector<16x1xf32>
    %104 = vector.broadcast %103 : vector<16x1xf32> to vector<16x16xf32>
    %105 = arith.mulf %100, %104 : vector<16x16xf32>
    %cst_68 = arith.constant dense<0.000000e+00> : vector<16x8xf32>
    %106 = tpu.matmul %105, %91, %cst_68 {dimension_numbers = #tpu.dot_dimension_numbers<[1], [0], [0], [1], [0, 0, 1, 1], [], []>} : vector<16x16xf32>, vector<16x8xf32>, vector<16x8xf32> -> vector<16x8xf32>
    %c2 = arith.constant 2 : index
    %c0_69 = arith.constant 0 : index
    %c0_70 = arith.constant 0 : index
    %107 = vector.load %arg7[%c2, %c0_69, %c0_70] : memref<8x32x8xbf16, #tpu.memory_space<vmem>>, vector<1x32x8xbf16>
    %108 = vector.shape_cast %107 : vector<1x32x8xbf16> to vector<32x8xbf16>
    %cst_71 = arith.constant dense<0.000000e+00> : vector<16x8xf32>
    %109 = tpu.matmul %34, %108, %cst_71 {dimension_numbers = #tpu.dot_dimension_numbers<[1], [0], [0], [1], [0, 0, 1, 1], [], []>} : vector<16x32xbf16>, vector<32x8xbf16>, vector<16x8xf32> -> vector<16x8xf32>
    %c2_72 = arith.constant 2 : index
    %c0_73 = arith.constant 0 : index
    %c0_74 = arith.constant 0 : index
    %110 = vector.load %arg8[%c2_72, %c0_73, %c0_74] : memref<8x1x8xf32, #tpu.memory_space<vmem>>, vector<1x1x8xf32>
    %111 = vector.shape_cast %110 : vector<1x1x8xf32> to vector<1x8xf32>
    %112 = vector.broadcast %111 : vector<1x8xf32> to vector<16x8xf32>
    %113 = arith.addf %109, %112 : vector<16x8xf32>
    %c2_75 = arith.constant 2 : index
    %c0_76 = arith.constant 0 : index
    %c0_77 = arith.constant 0 : index
    %114 = vector.load %arg9[%c2_75, %c0_76, %c0_77] : memref<8x32x8xbf16, #tpu.memory_space<vmem>>, vector<1x32x8xbf16>
    %115 = vector.shape_cast %114 : vector<1x32x8xbf16> to vector<32x8xbf16>
    %cst_78 = arith.constant dense<0.000000e+00> : vector<16x8xf32>
    %116 = tpu.matmul %34, %115, %cst_78 {dimension_numbers = #tpu.dot_dimension_numbers<[1], [0], [0], [1], [0, 0, 1, 1], [], []>} : vector<16x32xbf16>, vector<32x8xbf16>, vector<16x8xf32> -> vector<16x8xf32>
    %c2_79 = arith.constant 2 : index
    %c0_80 = arith.constant 0 : index
    %c0_81 = arith.constant 0 : index
    %117 = vector.load %arg10[%c2_79, %c0_80, %c0_81] : memref<8x1x8xf32, #tpu.memory_space<vmem>>, vector<1x1x8xf32>
    %118 = vector.shape_cast %117 : vector<1x1x8xf32> to vector<1x8xf32>
    %119 = vector.broadcast %118 : vector<1x8xf32> to vector<16x8xf32>
    %120 = arith.addf %116, %119 : vector<16x8xf32>
    %c2_82 = arith.constant 2 : index
    %c0_83 = arith.constant 0 : index
    %c0_84 = arith.constant 0 : index
    %121 = vector.load %arg11[%c2_82, %c0_83, %c0_84] : memref<8x32x8xbf16, #tpu.memory_space<vmem>>, vector<1x32x8xbf16>
    %122 = vector.shape_cast %121 : vector<1x32x8xbf16> to vector<32x8xbf16>
    %cst_85 = arith.constant dense<0.000000e+00> : vector<16x8xf32>
    %123 = tpu.matmul %34, %122, %cst_85 {dimension_numbers = #tpu.dot_dimension_numbers<[1], [0], [0], [1], [0, 0, 1, 1], [], []>} : vector<16x32xbf16>, vector<32x8xbf16>, vector<16x8xf32> -> vector<16x8xf32>
    %c2_86 = arith.constant 2 : index
    %c0_87 = arith.constant 0 : index
    %c0_88 = arith.constant 0 : index
    %124 = vector.load %arg12[%c2_86, %c0_87, %c0_88] : memref<8x1x8xf32, #tpu.memory_space<vmem>>, vector<1x1x8xf32>
    %125 = vector.shape_cast %124 : vector<1x1x8xf32> to vector<1x8xf32>
    %126 = vector.broadcast %125 : vector<1x8xf32> to vector<16x8xf32>
    %127 = arith.addf %123, %126 : vector<16x8xf32>
    %cst_89 = arith.constant dense<0.000000e+00> : vector<16x16xf32>
    %128 = tpu.matmul %113, %120, %cst_89 {dimension_numbers = #tpu.dot_dimension_numbers<[1], [1], [0], [0], [0, 0, 1, 0], [], []>} : vector<16x8xf32>, vector<16x8xf32>, vector<16x16xf32> -> vector<16x16xf32>
    %cst_90 = arith.constant 0.353553385 : f32
    %129 = vector.broadcast %cst_90 : f32 to vector<16x16xf32>
    %130 = arith.mulf %128, %129 : vector<16x16xf32>
    %131 = arith.addf %130, %5 : vector<16x16xf32>
    %cst_91 = arith.constant dense<0xFF800000> : vector<16xf32>
    %132 = vector.multi_reduction <maximumf>, %131, %cst_91 [1] : vector<16x16xf32> to vector<16xf32>
    %133 = vector.shape_cast %132 : vector<16xf32> to vector<16x1xf32>
    %134 = vector.broadcast %133 : vector<16x1xf32> to vector<16x16xf32>
    %135 = arith.subf %131, %134 : vector<16x16xf32>
    %136 = math.exp %135 : vector<16x16xf32>
    %cst_92 = arith.constant dense<0.000000e+00> : vector<16xf32>
    %137 = vector.multi_reduction <add>, %136, %cst_92 [1] : vector<16x16xf32> to vector<16xf32>
    %138 = vector.shape_cast %137 : vector<16xf32> to vector<16x1xf32>
    %139 = tpu.reciprocal %138 {approx = true} : vector<16x1xf32> -> vector<16x1xf32>
    %140 = vector.broadcast %139 : vector<16x1xf32> to vector<16x16xf32>
    %141 = arith.mulf %136, %140 : vector<16x16xf32>
    %cst_93 = arith.constant dense<0.000000e+00> : vector<16x8xf32>
    %142 = tpu.matmul %141, %127, %cst_93 {dimension_numbers = #tpu.dot_dimension_numbers<[1], [0], [0], [1], [0, 0, 1, 1], [], []>} : vector<16x16xf32>, vector<16x8xf32>, vector<16x8xf32> -> vector<16x8xf32>
    %c3 = arith.constant 3 : index
    %c0_94 = arith.constant 0 : index
    %c0_95 = arith.constant 0 : index
    %143 = vector.load %arg7[%c3, %c0_94, %c0_95] : memref<8x32x8xbf16, #tpu.memory_space<vmem>>, vector<1x32x8xbf16>
    %144 = vector.shape_cast %143 : vector<1x32x8xbf16> to vector<32x8xbf16>
    %cst_96 = arith.constant dense<0.000000e+00> : vector<16x8xf32>
    %145 = tpu.matmul %34, %144, %cst_96 {dimension_numbers = #tpu.dot_dimension_numbers<[1], [0], [0], [1], [0, 0, 1, 1], [], []>} : vector<16x32xbf16>, vector<32x8xbf16>, vector<16x8xf32> -> vector<16x8xf32>
    %c3_97 = arith.constant 3 : index
    %c0_98 = arith.constant 0 : index
    %c0_99 = arith.constant 0 : index
    %146 = vector.load %arg8[%c3_97, %c0_98, %c0_99] : memref<8x1x8xf32, #tpu.memory_space<vmem>>, vector<1x1x8xf32>
    %147 = vector.shape_cast %146 : vector<1x1x8xf32> to vector<1x8xf32>
    %148 = vector.broadcast %147 : vector<1x8xf32> to vector<16x8xf32>
    %149 = arith.addf %145, %148 : vector<16x8xf32>
    %c3_100 = arith.constant 3 : index
    %c0_101 = arith.constant 0 : index
    %c0_102 = arith.constant 0 : index
    %150 = vector.load %arg9[%c3_100, %c0_101, %c0_102] : memref<8x32x8xbf16, #tpu.memory_space<vmem>>, vector<1x32x8xbf16>
    %151 = vector.shape_cast %150 : vector<1x32x8xbf16> to vector<32x8xbf16>
    %cst_103 = arith.constant dense<0.000000e+00> : vector<16x8xf32>
    %152 = tpu.matmul %34, %151, %cst_103 {dimension_numbers = #tpu.dot_dimension_numbers<[1], [0], [0], [1], [0, 0, 1, 1], [], []>} : vector<16x32xbf16>, vector<32x8xbf16>, vector<16x8xf32> -> vector<16x8xf32>
    %c3_104 = arith.constant 3 : index
    %c0_105 = arith.constant 0 : index
    %c0_106 = arith.constant 0 : index
    %153 = vector.load %arg10[%c3_104, %c0_105, %c0_106] : memref<8x1x8xf32, #tpu.memory_space<vmem>>, vector<1x1x8xf32>
    %154 = vector.shape_cast %153 : vector<1x1x8xf32> to vector<1x8xf32>
    %155 = vector.broadcast %154 : vector<1x8xf32> to vector<16x8xf32>
    %156 = arith.addf %152, %155 : vector<16x8xf32>
    %c3_107 = arith.constant 3 : index
    %c0_108 = arith.constant 0 : index
    %c0_109 = arith.constant 0 : index
    %157 = vector.load %arg11[%c3_107, %c0_108, %c0_109] : memref<8x32x8xbf16, #tpu.memory_space<vmem>>, vector<1x32x8xbf16>
    %158 = vector.shape_cast %157 : vector<1x32x8xbf16> to vector<32x8xbf16>
    %cst_110 = arith.constant dense<0.000000e+00> : vector<16x8xf32>
    %159 = tpu.matmul %34, %158, %cst_110 {dimension_numbers = #tpu.dot_dimension_numbers<[1], [0], [0], [1], [0, 0, 1, 1], [], []>} : vector<16x32xbf16>, vector<32x8xbf16>, vector<16x8xf32> -> vector<16x8xf32>
    %c3_111 = arith.constant 3 : index
    %c0_112 = arith.constant 0 : index
    %c0_113 = arith.constant 0 : index
    %160 = vector.load %arg12[%c3_111, %c0_112, %c0_113] : memref<8x1x8xf32, #tpu.memory_space<vmem>>, vector<1x1x8xf32>
    %161 = vector.shape_cast %160 : vector<1x1x8xf32> to vector<1x8xf32>
    %162 = vector.broadcast %161 : vector<1x8xf32> to vector<16x8xf32>
    %163 = arith.addf %159, %162 : vector<16x8xf32>
    %cst_114 = arith.constant dense<0.000000e+00> : vector<16x16xf32>
    %164 = tpu.matmul %149, %156, %cst_114 {dimension_numbers = #tpu.dot_dimension_numbers<[1], [1], [0], [0], [0, 0, 1, 0], [], []>} : vector<16x8xf32>, vector<16x8xf32>, vector<16x16xf32> -> vector<16x16xf32>
    %cst_115 = arith.constant 0.353553385 : f32
    %165 = vector.broadcast %cst_115 : f32 to vector<16x16xf32>
    %166 = arith.mulf %164, %165 : vector<16x16xf32>
    %167 = arith.addf %166, %5 : vector<16x16xf32>
    %cst_116 = arith.constant dense<0xFF800000> : vector<16xf32>
    %168 = vector.multi_reduction <maximumf>, %167, %cst_116 [1] : vector<16x16xf32> to vector<16xf32>
    %169 = vector.shape_cast %168 : vector<16xf32> to vector<16x1xf32>
    %170 = vector.broadcast %169 : vector<16x1xf32> to vector<16x16xf32>
    %171 = arith.subf %167, %170 : vector<16x16xf32>
    %172 = math.exp %171 : vector<16x16xf32>
    %cst_117 = arith.constant dense<0.000000e+00> : vector<16xf32>
    %173 = vector.multi_reduction <add>, %172, %cst_117 [1] : vector<16x16xf32> to vector<16xf32>
    %174 = vector.shape_cast %173 : vector<16xf32> to vector<16x1xf32>
    %175 = tpu.reciprocal %174 {approx = true} : vector<16x1xf32> -> vector<16x1xf32>
    %176 = vector.broadcast %175 : vector<16x1xf32> to vector<16x16xf32>
    %177 = arith.mulf %172, %176 : vector<16x16xf32>
    %cst_118 = arith.constant dense<0.000000e+00> : vector<16x8xf32>
    %178 = tpu.matmul %177, %163, %cst_118 {dimension_numbers = #tpu.dot_dimension_numbers<[1], [0], [0], [1], [0, 0, 1, 1], [], []>} : vector<16x16xf32>, vector<16x8xf32>, vector<16x8xf32> -> vector<16x8xf32>
    %179 = tpu.concatenate %70, %106, %142, %178 in 1 : vector<16x8xf32>, vector<16x8xf32>, vector<16x8xf32>, vector<16x8xf32> -> vector<16x32xf32>
    %180 = arith.truncf %179 : vector<16x32xf32> to vector<16x32xbf16>
    %c0_119 = arith.constant 0 : index
    %c0_120 = arith.constant 0 : index
    %c0_121 = arith.constant 0 : index
    %181 = vector.load %arg13[%c0_119, %c0_120, %c0_121] : memref<2x32x32xbf16, #tpu.memory_space<vmem>>, vector<1x32x32xbf16>
    %182 = vector.shape_cast %181 : vector<1x32x32xbf16> to vector<32x32xbf16>
    %cst_122 = arith.constant dense<0.000000e+00> : vector<16x32xf32>
    %183 = tpu.matmul %180, %182, %cst_122 {dimension_numbers = #tpu.dot_dimension_numbers<[1], [0], [0], [1], [0, 0, 1, 1], [], []>} : vector<16x32xbf16>, vector<32x32xbf16>, vector<16x32xf32> -> vector<16x32xf32>
    %c0_123 = arith.constant 0 : index
    %c0_124 = arith.constant 0 : index
    %c0_125 = arith.constant 0 : index
    %184 = vector.load %arg14[%c0_123, %c0_124, %c0_125] : memref<2x1x32xf32, #tpu.memory_space<vmem>>, vector<1x1x32xf32>
    %185 = vector.shape_cast %184 : vector<1x1x32xf32> to vector<1x32xf32>
    %186 = vector.broadcast %185 : vector<1x32xf32> to vector<16x32xf32>
    %187 = arith.addf %183, %186 : vector<16x32xf32>
    %188 = arith.addf %187, %4 : vector<16x32xf32>
    %c0_126 = arith.constant 0 : index
    %c0_127 = arith.constant 0 : index
    %c0_128 = arith.constant 0 : index
    %189 = vector.load %arg15[%c0_126, %c0_127, %c0_128] : memref<2x1x32xf32, #tpu.memory_space<vmem>>, vector<1x1x32xf32>
    %190 = vector.shape_cast %189 : vector<1x1x32xf32> to vector<1x32xf32>
    %c0_129 = arith.constant 0 : index
    %c0_130 = arith.constant 0 : index
    %c0_131 = arith.constant 0 : index
    %191 = vector.load %arg16[%c0_129, %c0_130, %c0_131] : memref<2x1x32xf32, #tpu.memory_space<vmem>>, vector<1x1x32xf32>
    %192 = vector.shape_cast %191 : vector<1x1x32xf32> to vector<1x32xf32>
    %cst_132 = arith.constant dense<0.000000e+00> : vector<16xf32>
    %193 = vector.multi_reduction <add>, %188, %cst_132 [1] : vector<16x32xf32> to vector<16xf32>
    %194 = vector.shape_cast %193 : vector<16xf32> to vector<16x1xf32>
    %cst_133 = arith.constant 3.200000e+01 : f32
    %195 = vector.broadcast %cst_133 : f32 to vector<16x1xf32>
    %196 = arith.divf %194, %195 : vector<16x1xf32>
    %197 = vector.broadcast %196 : vector<16x1xf32> to vector<16x32xf32>
    %198 = arith.subf %188, %197 : vector<16x32xf32>
    %199 = vector.broadcast %196 : vector<16x1xf32> to vector<16x32xf32>
    %200 = arith.subf %188, %199 : vector<16x32xf32>
    %201 = arith.mulf %198, %200 : vector<16x32xf32>
    %cst_134 = arith.constant dense<0.000000e+00> : vector<16xf32>
    %202 = vector.multi_reduction <add>, %201, %cst_134 [1] : vector<16x32xf32> to vector<16xf32>
    %203 = vector.shape_cast %202 : vector<16xf32> to vector<16x1xf32>
    %cst_135 = arith.constant 3.200000e+01 : f32
    %204 = vector.broadcast %cst_135 : f32 to vector<16x1xf32>
    %205 = arith.divf %203, %204 : vector<16x1xf32>
    %206 = vector.broadcast %196 : vector<16x1xf32> to vector<16x32xf32>
    %207 = arith.subf %188, %206 : vector<16x32xf32>
    %cst_136 = arith.constant 9.99999996E-13 : f32
    %208 = vector.broadcast %cst_136 : f32 to vector<16x1xf32>
    %209 = arith.addf %205, %208 : vector<16x1xf32>
    %210 = math.rsqrt %209 : vector<16x1xf32>
    %211 = vector.broadcast %210 : vector<16x1xf32> to vector<16x32xf32>
    %212 = arith.mulf %207, %211 : vector<16x32xf32>
    %213 = vector.broadcast %190 : vector<1x32xf32> to vector<16x32xf32>
    %214 = arith.mulf %212, %213 : vector<16x32xf32>
    %215 = vector.broadcast %192 : vector<1x32xf32> to vector<16x32xf32>
    %216 = arith.addf %214, %215 : vector<16x32xf32>
    %217 = arith.truncf %216 : vector<16x32xf32> to vector<16x32xbf16>
    %c0_137 = arith.constant 0 : index
    %c0_138 = arith.constant 0 : index
    %c0_139 = arith.constant 0 : index
    %218 = vector.load %arg17[%c0_137, %c0_138, %c0_139] : memref<2x32x128xbf16, #tpu.memory_space<vmem>>, vector<1x32x128xbf16>
    %219 = vector.shape_cast %218 : vector<1x32x128xbf16> to vector<32x128xbf16>
    %cst_140 = arith.constant dense<0.000000e+00> : vector<16x128xf32>
    %220 = tpu.matmul %217, %219, %cst_140 {dimension_numbers = #tpu.dot_dimension_numbers<[1], [0], [0], [1], [0, 0, 1, 1], [], []>} : vector<16x32xbf16>, vector<32x128xbf16>, vector<16x128xf32> -> vector<16x128xf32>
    %c0_141 = arith.constant 0 : index
    %c0_142 = arith.constant 0 : index
    %c0_143 = arith.constant 0 : index
    %221 = vector.load %arg18[%c0_141, %c0_142, %c0_143] : memref<2x1x128xf32, #tpu.memory_space<vmem>>, vector<1x1x128xf32>
    %222 = vector.shape_cast %221 : vector<1x1x128xf32> to vector<1x128xf32>
    %223 = vector.broadcast %222 : vector<1x128xf32> to vector<16x128xf32>
    %224 = arith.addf %220, %223 : vector<16x128xf32>
    %225 = arith.mulf %224, %224 : vector<16x128xf32>
    %226 = arith.mulf %224, %225 : vector<16x128xf32>
    %cst_144 = arith.constant 4.471500e-02 : f32
    %227 = vector.broadcast %cst_144 : f32 to vector<16x128xf32>
    %228 = arith.mulf %227, %226 : vector<16x128xf32>
    %229 = arith.addf %224, %228 : vector<16x128xf32>
    %cst_145 = arith.constant 0.797884583 : f32
    %230 = vector.broadcast %cst_145 : f32 to vector<16x128xf32>
    %231 = arith.mulf %230, %229 : vector<16x128xf32>
    %232 = math.tanh %231 : vector<16x128xf32>
    %cst_146 = arith.constant 1.000000e+00 : f32
    %233 = vector.broadcast %cst_146 : f32 to vector<16x128xf32>
    %234 = arith.addf %233, %232 : vector<16x128xf32>
    %cst_147 = arith.constant 5.000000e-01 : f32
    %235 = vector.broadcast %cst_147 : f32 to vector<16x128xf32>
    %236 = arith.mulf %235, %234 : vector<16x128xf32>
    %237 = arith.mulf %224, %236 : vector<16x128xf32>
    %238 = arith.truncf %237 : vector<16x128xf32> to vector<16x128xbf16>
    %c0_148 = arith.constant 0 : index
    %c0_149 = arith.constant 0 : index
    %c0_150 = arith.constant 0 : index
    %239 = vector.load %arg19[%c0_148, %c0_149, %c0_150] : memref<2x128x32xbf16, #tpu.memory_space<vmem>>, vector<1x128x32xbf16>
    %240 = vector.shape_cast %239 : vector<1x128x32xbf16> to vector<128x32xbf16>
    %cst_151 = arith.constant dense<0.000000e+00> : vector<16x32xf32>
    %241 = tpu.matmul %238, %240, %cst_151 {dimension_numbers = #tpu.dot_dimension_numbers<[1], [0], [0], [1], [0, 0, 1, 1], [], []>} : vector<16x128xbf16>, vector<128x32xbf16>, vector<16x32xf32> -> vector<16x32xf32>
    %c0_152 = arith.constant 0 : index
    %c0_153 = arith.constant 0 : index
    %c0_154 = arith.constant 0 : index
    %242 = vector.load %arg20[%c0_152, %c0_153, %c0_154] : memref<2x1x32xf32, #tpu.memory_space<vmem>>, vector<1x1x32xf32>
    %243 = vector.shape_cast %242 : vector<1x1x32xf32> to vector<1x32xf32>
    %244 = vector.broadcast %243 : vector<1x32xf32> to vector<16x32xf32>
    %245 = arith.addf %241, %244 : vector<16x32xf32>
    %246 = arith.addf %245, %188 : vector<16x32xf32>
    %c1_155 = arith.constant 1 : index
    %c0_156 = arith.constant 0 : index
    %c0_157 = arith.constant 0 : index
    %247 = vector.load %arg5[%c1_155, %c0_156, %c0_157] : memref<2x1x32xf32, #tpu.memory_space<vmem>>, vector<1x1x32xf32>
    %248 = vector.shape_cast %247 : vector<1x1x32xf32> to vector<1x32xf32>
    %c1_158 = arith.constant 1 : index
    %c0_159 = arith.constant 0 : index
    %c0_160 = arith.constant 0 : index
    %249 = vector.load %arg6[%c1_158, %c0_159, %c0_160] : memref<2x1x32xf32, #tpu.memory_space<vmem>>, vector<1x1x32xf32>
    %250 = vector.shape_cast %249 : vector<1x1x32xf32> to vector<1x32xf32>
    %cst_161 = arith.constant dense<0.000000e+00> : vector<16xf32>
    %251 = vector.multi_reduction <add>, %246, %cst_161 [1] : vector<16x32xf32> to vector<16xf32>
    %252 = vector.shape_cast %251 : vector<16xf32> to vector<16x1xf32>
    %cst_162 = arith.constant 3.200000e+01 : f32
    %253 = vector.broadcast %cst_162 : f32 to vector<16x1xf32>
    %254 = arith.divf %252, %253 : vector<16x1xf32>
    %255 = vector.broadcast %254 : vector<16x1xf32> to vector<16x32xf32>
    %256 = arith.subf %246, %255 : vector<16x32xf32>
    %257 = vector.broadcast %254 : vector<16x1xf32> to vector<16x32xf32>
    %258 = arith.subf %246, %257 : vector<16x32xf32>
    %259 = arith.mulf %256, %258 : vector<16x32xf32>
    %cst_163 = arith.constant dense<0.000000e+00> : vector<16xf32>
    %260 = vector.multi_reduction <add>, %259, %cst_163 [1] : vector<16x32xf32> to vector<16xf32>
    %261 = vector.shape_cast %260 : vector<16xf32> to vector<16x1xf32>
    %cst_164 = arith.constant 3.200000e+01 : f32
    %262 = vector.broadcast %cst_164 : f32 to vector<16x1xf32>
    %263 = arith.divf %261, %262 : vector<16x1xf32>
    %264 = vector.broadcast %254 : vector<16x1xf32> to vector<16x32xf32>
    %265 = arith.subf %246, %264 : vector<16x32xf32>
    %cst_165 = arith.constant 9.99999996E-13 : f32
    %266 = vector.broadcast %cst_165 : f32 to vector<16x1xf32>
    %267 = arith.addf %263, %266 : vector<16x1xf32>
    %268 = math.rsqrt %267 : vector<16x1xf32>
    %269 = vector.broadcast %268 : vector<16x1xf32> to vector<16x32xf32>
    %270 = arith.mulf %265, %269 : vector<16x32xf32>
    %271 = vector.broadcast %248 : vector<1x32xf32> to vector<16x32xf32>
    %272 = arith.mulf %270, %271 : vector<16x32xf32>
    %273 = vector.broadcast %250 : vector<1x32xf32> to vector<16x32xf32>
    %274 = arith.addf %272, %273 : vector<16x32xf32>
    %275 = arith.truncf %274 : vector<16x32xf32> to vector<16x32xbf16>
    %c4 = arith.constant 4 : index
    %c0_166 = arith.constant 0 : index
    %c0_167 = arith.constant 0 : index
    %276 = vector.load %arg7[%c4, %c0_166, %c0_167] : memref<8x32x8xbf16, #tpu.memory_space<vmem>>, vector<1x32x8xbf16>
    %277 = vector.shape_cast %276 : vector<1x32x8xbf16> to vector<32x8xbf16>
    %cst_168 = arith.constant dense<0.000000e+00> : vector<16x8xf32>
    %278 = tpu.matmul %275, %277, %cst_168 {dimension_numbers = #tpu.dot_dimension_numbers<[1], [0], [0], [1], [0, 0, 1, 1], [], []>} : vector<16x32xbf16>, vector<32x8xbf16>, vector<16x8xf32> -> vector<16x8xf32>
    %c4_169 = arith.constant 4 : index
    %c0_170 = arith.constant 0 : index
    %c0_171 = arith.constant 0 : index
    %279 = vector.load %arg8[%c4_169, %c0_170, %c0_171] : memref<8x1x8xf32, #tpu.memory_space<vmem>>, vector<1x1x8xf32>
    %280 = vector.shape_cast %279 : vector<1x1x8xf32> to vector<1x8xf32>
    %281 = vector.broadcast %280 : vector<1x8xf32> to vector<16x8xf32>
    %282 = arith.addf %278, %281 : vector<16x8xf32>
    %c4_172 = arith.constant 4 : index
    %c0_173 = arith.constant 0 : index
    %c0_174 = arith.constant 0 : index
    %283 = vector.load %arg9[%c4_172, %c0_173, %c0_174] : memref<8x32x8xbf16, #tpu.memory_space<vmem>>, vector<1x32x8xbf16>
    %284 = vector.shape_cast %283 : vector<1x32x8xbf16> to vector<32x8xbf16>
    %cst_175 = arith.constant dense<0.000000e+00> : vector<16x8xf32>
    %285 = tpu.matmul %275, %284, %cst_175 {dimension_numbers = #tpu.dot_dimension_numbers<[1], [0], [0], [1], [0, 0, 1, 1], [], []>} : vector<16x32xbf16>, vector<32x8xbf16>, vector<16x8xf32> -> vector<16x8xf32>
    %c4_176 = arith.constant 4 : index
    %c0_177 = arith.constant 0 : index
    %c0_178 = arith.constant 0 : index
    %286 = vector.load %arg10[%c4_176, %c0_177, %c0_178] : memref<8x1x8xf32, #tpu.memory_space<vmem>>, vector<1x1x8xf32>
    %287 = vector.shape_cast %286 : vector<1x1x8xf32> to vector<1x8xf32>
    %288 = vector.broadcast %287 : vector<1x8xf32> to vector<16x8xf32>
    %289 = arith.addf %285, %288 : vector<16x8xf32>
    %c4_179 = arith.constant 4 : index
    %c0_180 = arith.constant 0 : index
    %c0_181 = arith.constant 0 : index
    %290 = vector.load %arg11[%c4_179, %c0_180, %c0_181] : memref<8x32x8xbf16, #tpu.memory_space<vmem>>, vector<1x32x8xbf16>
    %291 = vector.shape_cast %290 : vector<1x32x8xbf16> to vector<32x8xbf16>
    %cst_182 = arith.constant dense<0.000000e+00> : vector<16x8xf32>
    %292 = tpu.matmul %275, %291, %cst_182 {dimension_numbers = #tpu.dot_dimension_numbers<[1], [0], [0], [1], [0, 0, 1, 1], [], []>} : vector<16x32xbf16>, vector<32x8xbf16>, vector<16x8xf32> -> vector<16x8xf32>
    %c4_183 = arith.constant 4 : index
    %c0_184 = arith.constant 0 : index
    %c0_185 = arith.constant 0 : index
    %293 = vector.load %arg12[%c4_183, %c0_184, %c0_185] : memref<8x1x8xf32, #tpu.memory_space<vmem>>, vector<1x1x8xf32>
    %294 = vector.shape_cast %293 : vector<1x1x8xf32> to vector<1x8xf32>
    %295 = vector.broadcast %294 : vector<1x8xf32> to vector<16x8xf32>
    %296 = arith.addf %292, %295 : vector<16x8xf32>
    %cst_186 = arith.constant dense<0.000000e+00> : vector<16x16xf32>
    %297 = tpu.matmul %282, %289, %cst_186 {dimension_numbers = #tpu.dot_dimension_numbers<[1], [1], [0], [0], [0, 0, 1, 0], [], []>} : vector<16x8xf32>, vector<16x8xf32>, vector<16x16xf32> -> vector<16x16xf32>
    %cst_187 = arith.constant 0.353553385 : f32
    %298 = vector.broadcast %cst_187 : f32 to vector<16x16xf32>
    %299 = arith.mulf %297, %298 : vector<16x16xf32>
    %300 = arith.addf %299, %5 : vector<16x16xf32>
    %cst_188 = arith.constant dense<0xFF800000> : vector<16xf32>
    %301 = vector.multi_reduction <maximumf>, %300, %cst_188 [1] : vector<16x16xf32> to vector<16xf32>
    %302 = vector.shape_cast %301 : vector<16xf32> to vector<16x1xf32>
    %303 = vector.broadcast %302 : vector<16x1xf32> to vector<16x16xf32>
    %304 = arith.subf %300, %303 : vector<16x16xf32>
    %305 = math.exp %304 : vector<16x16xf32>
    %cst_189 = arith.constant dense<0.000000e+00> : vector<16xf32>
    %306 = vector.multi_reduction <add>, %305, %cst_189 [1] : vector<16x16xf32> to vector<16xf32>
    %307 = vector.shape_cast %306 : vector<16xf32> to vector<16x1xf32>
    %308 = tpu.reciprocal %307 {approx = true} : vector<16x1xf32> -> vector<16x1xf32>
    %309 = vector.broadcast %308 : vector<16x1xf32> to vector<16x16xf32>
    %310 = arith.mulf %305, %309 : vector<16x16xf32>
    %cst_190 = arith.constant dense<0.000000e+00> : vector<16x8xf32>
    %311 = tpu.matmul %310, %296, %cst_190 {dimension_numbers = #tpu.dot_dimension_numbers<[1], [0], [0], [1], [0, 0, 1, 1], [], []>} : vector<16x16xf32>, vector<16x8xf32>, vector<16x8xf32> -> vector<16x8xf32>
    %c5 = arith.constant 5 : index
    %c0_191 = arith.constant 0 : index
    %c0_192 = arith.constant 0 : index
    %312 = vector.load %arg7[%c5, %c0_191, %c0_192] : memref<8x32x8xbf16, #tpu.memory_space<vmem>>, vector<1x32x8xbf16>
    %313 = vector.shape_cast %312 : vector<1x32x8xbf16> to vector<32x8xbf16>
    %cst_193 = arith.constant dense<0.000000e+00> : vector<16x8xf32>
    %314 = tpu.matmul %275, %313, %cst_193 {dimension_numbers = #tpu.dot_dimension_numbers<[1], [0], [0], [1], [0, 0, 1, 1], [], []>} : vector<16x32xbf16>, vector<32x8xbf16>, vector<16x8xf32> -> vector<16x8xf32>
    %c5_194 = arith.constant 5 : index
    %c0_195 = arith.constant 0 : index
    %c0_196 = arith.constant 0 : index
    %315 = vector.load %arg8[%c5_194, %c0_195, %c0_196] : memref<8x1x8xf32, #tpu.memory_space<vmem>>, vector<1x1x8xf32>
    %316 = vector.shape_cast %315 : vector<1x1x8xf32> to vector<1x8xf32>
    %317 = vector.broadcast %316 : vector<1x8xf32> to vector<16x8xf32>
    %318 = arith.addf %314, %317 : vector<16x8xf32>
    %c5_197 = arith.constant 5 : index
    %c0_198 = arith.constant 0 : index
    %c0_199 = arith.constant 0 : index
    %319 = vector.load %arg9[%c5_197, %c0_198, %c0_199] : memref<8x32x8xbf16, #tpu.memory_space<vmem>>, vector<1x32x8xbf16>
    %320 = vector.shape_cast %319 : vector<1x32x8xbf16> to vector<32x8xbf16>
    %cst_200 = arith.constant dense<0.000000e+00> : vector<16x8xf32>
    %321 = tpu.matmul %275, %320, %cst_200 {dimension_numbers = #tpu.dot_dimension_numbers<[1], [0], [0], [1], [0, 0, 1, 1], [], []>} : vector<16x32xbf16>, vector<32x8xbf16>, vector<16x8xf32> -> vector<16x8xf32>
    %c5_201 = arith.constant 5 : index
    %c0_202 = arith.constant 0 : index
    %c0_203 = arith.constant 0 : index
    %322 = vector.load %arg10[%c5_201, %c0_202, %c0_203] : memref<8x1x8xf32, #tpu.memory_space<vmem>>, vector<1x1x8xf32>
    %323 = vector.shape_cast %322 : vector<1x1x8xf32> to vector<1x8xf32>
    %324 = vector.broadcast %323 : vector<1x8xf32> to vector<16x8xf32>
    %325 = arith.addf %321, %324 : vector<16x8xf32>
    %c5_204 = arith.constant 5 : index
    %c0_205 = arith.constant 0 : index
    %c0_206 = arith.constant 0 : index
    %326 = vector.load %arg11[%c5_204, %c0_205, %c0_206] : memref<8x32x8xbf16, #tpu.memory_space<vmem>>, vector<1x32x8xbf16>
    %327 = vector.shape_cast %326 : vector<1x32x8xbf16> to vector<32x8xbf16>
    %cst_207 = arith.constant dense<0.000000e+00> : vector<16x8xf32>
    %328 = tpu.matmul %275, %327, %cst_207 {dimension_numbers = #tpu.dot_dimension_numbers<[1], [0], [0], [1], [0, 0, 1, 1], [], []>} : vector<16x32xbf16>, vector<32x8xbf16>, vector<16x8xf32> -> vector<16x8xf32>
    %c5_208 = arith.constant 5 : index
    %c0_209 = arith.constant 0 : index
    %c0_210 = arith.constant 0 : index
    %329 = vector.load %arg12[%c5_208, %c0_209, %c0_210] : memref<8x1x8xf32, #tpu.memory_space<vmem>>, vector<1x1x8xf32>
    %330 = vector.shape_cast %329 : vector<1x1x8xf32> to vector<1x8xf32>
    %331 = vector.broadcast %330 : vector<1x8xf32> to vector<16x8xf32>
    %332 = arith.addf %328, %331 : vector<16x8xf32>
    %cst_211 = arith.constant dense<0.000000e+00> : vector<16x16xf32>
    %333 = tpu.matmul %318, %325, %cst_211 {dimension_numbers = #tpu.dot_dimension_numbers<[1], [1], [0], [0], [0, 0, 1, 0], [], []>} : vector<16x8xf32>, vector<16x8xf32>, vector<16x16xf32> -> vector<16x16xf32>
    %cst_212 = arith.constant 0.353553385 : f32
    %334 = vector.broadcast %cst_212 : f32 to vector<16x16xf32>
    %335 = arith.mulf %333, %334 : vector<16x16xf32>
    %336 = arith.addf %335, %5 : vector<16x16xf32>
    %cst_213 = arith.constant dense<0xFF800000> : vector<16xf32>
    %337 = vector.multi_reduction <maximumf>, %336, %cst_213 [1] : vector<16x16xf32> to vector<16xf32>
    %338 = vector.shape_cast %337 : vector<16xf32> to vector<16x1xf32>
    %339 = vector.broadcast %338 : vector<16x1xf32> to vector<16x16xf32>
    %340 = arith.subf %336, %339 : vector<16x16xf32>
    %341 = math.exp %340 : vector<16x16xf32>
    %cst_214 = arith.constant dense<0.000000e+00> : vector<16xf32>
    %342 = vector.multi_reduction <add>, %341, %cst_214 [1] : vector<16x16xf32> to vector<16xf32>
    %343 = vector.shape_cast %342 : vector<16xf32> to vector<16x1xf32>
    %344 = tpu.reciprocal %343 {approx = true} : vector<16x1xf32> -> vector<16x1xf32>
    %345 = vector.broadcast %344 : vector<16x1xf32> to vector<16x16xf32>
    %346 = arith.mulf %341, %345 : vector<16x16xf32>
    %cst_215 = arith.constant dense<0.000000e+00> : vector<16x8xf32>
    %347 = tpu.matmul %346, %332, %cst_215 {dimension_numbers = #tpu.dot_dimension_numbers<[1], [0], [0], [1], [0, 0, 1, 1], [], []>} : vector<16x16xf32>, vector<16x8xf32>, vector<16x8xf32> -> vector<16x8xf32>
    %c6 = arith.constant 6 : index
    %c0_216 = arith.constant 0 : index
    %c0_217 = arith.constant 0 : index
    %348 = vector.load %arg7[%c6, %c0_216, %c0_217] : memref<8x32x8xbf16, #tpu.memory_space<vmem>>, vector<1x32x8xbf16>
    %349 = vector.shape_cast %348 : vector<1x32x8xbf16> to vector<32x8xbf16>
    %cst_218 = arith.constant dense<0.000000e+00> : vector<16x8xf32>
    %350 = tpu.matmul %275, %349, %cst_218 {dimension_numbers = #tpu.dot_dimension_numbers<[1], [0], [0], [1], [0, 0, 1, 1], [], []>} : vector<16x32xbf16>, vector<32x8xbf16>, vector<16x8xf32> -> vector<16x8xf32>
    %c6_219 = arith.constant 6 : index
    %c0_220 = arith.constant 0 : index
    %c0_221 = arith.constant 0 : index
    %351 = vector.load %arg8[%c6_219, %c0_220, %c0_221] : memref<8x1x8xf32, #tpu.memory_space<vmem>>, vector<1x1x8xf32>
    %352 = vector.shape_cast %351 : vector<1x1x8xf32> to vector<1x8xf32>
    %353 = vector.broadcast %352 : vector<1x8xf32> to vector<16x8xf32>
    %354 = arith.addf %350, %353 : vector<16x8xf32>
    %c6_222 = arith.constant 6 : index
    %c0_223 = arith.constant 0 : index
    %c0_224 = arith.constant 0 : index
    %355 = vector.load %arg9[%c6_222, %c0_223, %c0_224] : memref<8x32x8xbf16, #tpu.memory_space<vmem>>, vector<1x32x8xbf16>
    %356 = vector.shape_cast %355 : vector<1x32x8xbf16> to vector<32x8xbf16>
    %cst_225 = arith.constant dense<0.000000e+00> : vector<16x8xf32>
    %357 = tpu.matmul %275, %356, %cst_225 {dimension_numbers = #tpu.dot_dimension_numbers<[1], [0], [0], [1], [0, 0, 1, 1], [], []>} : vector<16x32xbf16>, vector<32x8xbf16>, vector<16x8xf32> -> vector<16x8xf32>
    %c6_226 = arith.constant 6 : index
    %c0_227 = arith.constant 0 : index
    %c0_228 = arith.constant 0 : index
    %358 = vector.load %arg10[%c6_226, %c0_227, %c0_228] : memref<8x1x8xf32, #tpu.memory_space<vmem>>, vector<1x1x8xf32>
    %359 = vector.shape_cast %358 : vector<1x1x8xf32> to vector<1x8xf32>
    %360 = vector.broadcast %359 : vector<1x8xf32> to vector<16x8xf32>
    %361 = arith.addf %357, %360 : vector<16x8xf32>
    %c6_229 = arith.constant 6 : index
    %c0_230 = arith.constant 0 : index
    %c0_231 = arith.constant 0 : index
    %362 = vector.load %arg11[%c6_229, %c0_230, %c0_231] : memref<8x32x8xbf16, #tpu.memory_space<vmem>>, vector<1x32x8xbf16>
    %363 = vector.shape_cast %362 : vector<1x32x8xbf16> to vector<32x8xbf16>
    %cst_232 = arith.constant dense<0.000000e+00> : vector<16x8xf32>
    %364 = tpu.matmul %275, %363, %cst_232 {dimension_numbers = #tpu.dot_dimension_numbers<[1], [0], [0], [1], [0, 0, 1, 1], [], []>} : vector<16x32xbf16>, vector<32x8xbf16>, vector<16x8xf32> -> vector<16x8xf32>
    %c6_233 = arith.constant 6 : index
    %c0_234 = arith.constant 0 : index
    %c0_235 = arith.constant 0 : index
    %365 = vector.load %arg12[%c6_233, %c0_234, %c0_235] : memref<8x1x8xf32, #tpu.memory_space<vmem>>, vector<1x1x8xf32>
    %366 = vector.shape_cast %365 : vector<1x1x8xf32> to vector<1x8xf32>
    %367 = vector.broadcast %366 : vector<1x8xf32> to vector<16x8xf32>
    %368 = arith.addf %364, %367 : vector<16x8xf32>
    %cst_236 = arith.constant dense<0.000000e+00> : vector<16x16xf32>
    %369 = tpu.matmul %354, %361, %cst_236 {dimension_numbers = #tpu.dot_dimension_numbers<[1], [1], [0], [0], [0, 0, 1, 0], [], []>} : vector<16x8xf32>, vector<16x8xf32>, vector<16x16xf32> -> vector<16x16xf32>
    %cst_237 = arith.constant 0.353553385 : f32
    %370 = vector.broadcast %cst_237 : f32 to vector<16x16xf32>
    %371 = arith.mulf %369, %370 : vector<16x16xf32>
    %372 = arith.addf %371, %5 : vector<16x16xf32>
    %cst_238 = arith.constant dense<0xFF800000> : vector<16xf32>
    %373 = vector.multi_reduction <maximumf>, %372, %cst_238 [1] : vector<16x16xf32> to vector<16xf32>
    %374 = vector.shape_cast %373 : vector<16xf32> to vector<16x1xf32>
    %375 = vector.broadcast %374 : vector<16x1xf32> to vector<16x16xf32>
    %376 = arith.subf %372, %375 : vector<16x16xf32>
    %377 = math.exp %376 : vector<16x16xf32>
    %cst_239 = arith.constant dense<0.000000e+00> : vector<16xf32>
    %378 = vector.multi_reduction <add>, %377, %cst_239 [1] : vector<16x16xf32> to vector<16xf32>
    %379 = vector.shape_cast %378 : vector<16xf32> to vector<16x1xf32>
    %380 = tpu.reciprocal %379 {approx = true} : vector<16x1xf32> -> vector<16x1xf32>
    %381 = vector.broadcast %380 : vector<16x1xf32> to vector<16x16xf32>
    %382 = arith.mulf %377, %381 : vector<16x16xf32>
    %cst_240 = arith.constant dense<0.000000e+00> : vector<16x8xf32>
    %383 = tpu.matmul %382, %368, %cst_240 {dimension_numbers = #tpu.dot_dimension_numbers<[1], [0], [0], [1], [0, 0, 1, 1], [], []>} : vector<16x16xf32>, vector<16x8xf32>, vector<16x8xf32> -> vector<16x8xf32>
    %c7 = arith.constant 7 : index
    %c0_241 = arith.constant 0 : index
    %c0_242 = arith.constant 0 : index
    %384 = vector.load %arg7[%c7, %c0_241, %c0_242] : memref<8x32x8xbf16, #tpu.memory_space<vmem>>, vector<1x32x8xbf16>
    %385 = vector.shape_cast %384 : vector<1x32x8xbf16> to vector<32x8xbf16>
    %cst_243 = arith.constant dense<0.000000e+00> : vector<16x8xf32>
    %386 = tpu.matmul %275, %385, %cst_243 {dimension_numbers = #tpu.dot_dimension_numbers<[1], [0], [0], [1], [0, 0, 1, 1], [], []>} : vector<16x32xbf16>, vector<32x8xbf16>, vector<16x8xf32> -> vector<16x8xf32>
    %c7_244 = arith.constant 7 : index
    %c0_245 = arith.constant 0 : index
    %c0_246 = arith.constant 0 : index
    %387 = vector.load %arg8[%c7_244, %c0_245, %c0_246] : memref<8x1x8xf32, #tpu.memory_space<vmem>>, vector<1x1x8xf32>
    %388 = vector.shape_cast %387 : vector<1x1x8xf32> to vector<1x8xf32>
    %389 = vector.broadcast %388 : vector<1x8xf32> to vector<16x8xf32>
    %390 = arith.addf %386, %389 : vector<16x8xf32>
    %c7_247 = arith.constant 7 : index
    %c0_248 = arith.constant 0 : index
    %c0_249 = arith.constant 0 : index
    %391 = vector.load %arg9[%c7_247, %c0_248, %c0_249] : memref<8x32x8xbf16, #tpu.memory_space<vmem>>, vector<1x32x8xbf16>
    %392 = vector.shape_cast %391 : vector<1x32x8xbf16> to vector<32x8xbf16>
    %cst_250 = arith.constant dense<0.000000e+00> : vector<16x8xf32>
    %393 = tpu.matmul %275, %392, %cst_250 {dimension_numbers = #tpu.dot_dimension_numbers<[1], [0], [0], [1], [0, 0, 1, 1], [], []>} : vector<16x32xbf16>, vector<32x8xbf16>, vector<16x8xf32> -> vector<16x8xf32>
    %c7_251 = arith.constant 7 : index
    %c0_252 = arith.constant 0 : index
    %c0_253 = arith.constant 0 : index
    %394 = vector.load %arg10[%c7_251, %c0_252, %c0_253] : memref<8x1x8xf32, #tpu.memory_space<vmem>>, vector<1x1x8xf32>
    %395 = vector.shape_cast %394 : vector<1x1x8xf32> to vector<1x8xf32>
    %396 = vector.broadcast %395 : vector<1x8xf32> to vector<16x8xf32>
    %397 = arith.addf %393, %396 : vector<16x8xf32>
    %c7_254 = arith.constant 7 : index
    %c0_255 = arith.constant 0 : index
    %c0_256 = arith.constant 0 : index
    %398 = vector.load %arg11[%c7_254, %c0_255, %c0_256] : memref<8x32x8xbf16, #tpu.memory_space<vmem>>, vector<1x32x8xbf16>
    %399 = vector.shape_cast %398 : vector<1x32x8xbf16> to vector<32x8xbf16>
    %cst_257 = arith.constant dense<0.000000e+00> : vector<16x8xf32>
    %400 = tpu.matmul %275, %399, %cst_257 {dimension_numbers = #tpu.dot_dimension_numbers<[1], [0], [0], [1], [0, 0, 1, 1], [], []>} : vector<16x32xbf16>, vector<32x8xbf16>, vector<16x8xf32> -> vector<16x8xf32>
    %c7_258 = arith.constant 7 : index
    %c0_259 = arith.constant 0 : index
    %c0_260 = arith.constant 0 : index
    %401 = vector.load %arg12[%c7_258, %c0_259, %c0_260] : memref<8x1x8xf32, #tpu.memory_space<vmem>>, vector<1x1x8xf32>
    %402 = vector.shape_cast %401 : vector<1x1x8xf32> to vector<1x8xf32>
    %403 = vector.broadcast %402 : vector<1x8xf32> to vector<16x8xf32>
    %404 = arith.addf %400, %403 : vector<16x8xf32>
    %cst_261 = arith.constant dense<0.000000e+00> : vector<16x16xf32>
    %405 = tpu.matmul %390, %397, %cst_261 {dimension_numbers = #tpu.dot_dimension_numbers<[1], [1], [0], [0], [0, 0, 1, 0], [], []>} : vector<16x8xf32>, vector<16x8xf32>, vector<16x16xf32> -> vector<16x16xf32>
    %cst_262 = arith.constant 0.353553385 : f32
    %406 = vector.broadcast %cst_262 : f32 to vector<16x16xf32>
    %407 = arith.mulf %405, %406 : vector<16x16xf32>
    %408 = arith.addf %407, %5 : vector<16x16xf32>
    %cst_263 = arith.constant dense<0xFF800000> : vector<16xf32>
    %409 = vector.multi_reduction <maximumf>, %408, %cst_263 [1] : vector<16x16xf32> to vector<16xf32>
    %410 = vector.shape_cast %409 : vector<16xf32> to vector<16x1xf32>
    %411 = vector.broadcast %410 : vector<16x1xf32> to vector<16x16xf32>
    %412 = arith.subf %408, %411 : vector<16x16xf32>
    %413 = math.exp %412 : vector<16x16xf32>
    %cst_264 = arith.constant dense<0.000000e+00> : vector<16xf32>
    %414 = vector.multi_reduction <add>, %413, %cst_264 [1] : vector<16x16xf32> to vector<16xf32>
    %415 = vector.shape_cast %414 : vector<16xf32> to vector<16x1xf32>
    %416 = tpu.reciprocal %415 {approx = true} : vector<16x1xf32> -> vector<16x1xf32>
    %417 = vector.broadcast %416 : vector<16x1xf32> to vector<16x16xf32>
    %418 = arith.mulf %413, %417 : vector<16x16xf32>
    %cst_265 = arith.constant dense<0.000000e+00> : vector<16x8xf32>
    %419 = tpu.matmul %418, %404, %cst_265 {dimension_numbers = #tpu.dot_dimension_numbers<[1], [0], [0], [1], [0, 0, 1, 1], [], []>} : vector<16x16xf32>, vector<16x8xf32>, vector<16x8xf32> -> vector<16x8xf32>
    %420 = tpu.concatenate %311, %347, %383, %419 in 1 : vector<16x8xf32>, vector<16x8xf32>, vector<16x8xf32>, vector<16x8xf32> -> vector<16x32xf32>
    %421 = arith.truncf %420 : vector<16x32xf32> to vector<16x32xbf16>
    %c1_266 = arith.constant 1 : index
    %c0_267 = arith.constant 0 : index
    %c0_268 = arith.constant 0 : index
    %422 = vector.load %arg13[%c1_266, %c0_267, %c0_268] : memref<2x32x32xbf16, #tpu.memory_space<vmem>>, vector<1x32x32xbf16>
    %423 = vector.shape_cast %422 : vector<1x32x32xbf16> to vector<32x32xbf16>
    %cst_269 = arith.constant dense<0.000000e+00> : vector<16x32xf32>
    %424 = tpu.matmul %421, %423, %cst_269 {dimension_numbers = #tpu.dot_dimension_numbers<[1], [0], [0], [1], [0, 0, 1, 1], [], []>} : vector<16x32xbf16>, vector<32x32xbf16>, vector<16x32xf32> -> vector<16x32xf32>
    %c1_270 = arith.constant 1 : index
    %c0_271 = arith.constant 0 : index
    %c0_272 = arith.constant 0 : index
    %425 = vector.load %arg14[%c1_270, %c0_271, %c0_272] : memref<2x1x32xf32, #tpu.memory_space<vmem>>, vector<1x1x32xf32>
    %426 = vector.shape_cast %425 : vector<1x1x32xf32> to vector<1x32xf32>
    %427 = vector.broadcast %426 : vector<1x32xf32> to vector<16x32xf32>
    %428 = arith.addf %424, %427 : vector<16x32xf32>
    %429 = arith.addf %428, %246 : vector<16x32xf32>
    %c1_273 = arith.constant 1 : index
    %c0_274 = arith.constant 0 : index
    %c0_275 = arith.constant 0 : index
    %430 = vector.load %arg15[%c1_273, %c0_274, %c0_275] : memref<2x1x32xf32, #tpu.memory_space<vmem>>, vector<1x1x32xf32>
    %431 = vector.shape_cast %430 : vector<1x1x32xf32> to vector<1x32xf32>
    %c1_276 = arith.constant 1 : index
    %c0_277 = arith.constant 0 : index
    %c0_278 = arith.constant 0 : index
    %432 = vector.load %arg16[%c1_276, %c0_277, %c0_278] : memref<2x1x32xf32, #tpu.memory_space<vmem>>, vector<1x1x32xf32>
    %433 = vector.shape_cast %432 : vector<1x1x32xf32> to vector<1x32xf32>
    %cst_279 = arith.constant dense<0.000000e+00> : vector<16xf32>
    %434 = vector.multi_reduction <add>, %429, %cst_279 [1] : vector<16x32xf32> to vector<16xf32>
    %435 = vector.shape_cast %434 : vector<16xf32> to vector<16x1xf32>
    %cst_280 = arith.constant 3.200000e+01 : f32
    %436 = vector.broadcast %cst_280 : f32 to vector<16x1xf32>
    %437 = arith.divf %435, %436 : vector<16x1xf32>
    %438 = vector.broadcast %437 : vector<16x1xf32> to vector<16x32xf32>
    %439 = arith.subf %429, %438 : vector<16x32xf32>
    %440 = vector.broadcast %437 : vector<16x1xf32> to vector<16x32xf32>
    %441 = arith.subf %429, %440 : vector<16x32xf32>
    %442 = arith.mulf %439, %441 : vector<16x32xf32>
    %cst_281 = arith.constant dense<0.000000e+00> : vector<16xf32>
    %443 = vector.multi_reduction <add>, %442, %cst_281 [1] : vector<16x32xf32> to vector<16xf32>
    %444 = vector.shape_cast %443 : vector<16xf32> to vector<16x1xf32>
    %cst_282 = arith.constant 3.200000e+01 : f32
    %445 = vector.broadcast %cst_282 : f32 to vector<16x1xf32>
    %446 = arith.divf %444, %445 : vector<16x1xf32>
    %447 = vector.broadcast %437 : vector<16x1xf32> to vector<16x32xf32>
    %448 = arith.subf %429, %447 : vector<16x32xf32>
    %cst_283 = arith.constant 9.99999996E-13 : f32
    %449 = vector.broadcast %cst_283 : f32 to vector<16x1xf32>
    %450 = arith.addf %446, %449 : vector<16x1xf32>
    %451 = math.rsqrt %450 : vector<16x1xf32>
    %452 = vector.broadcast %451 : vector<16x1xf32> to vector<16x32xf32>
    %453 = arith.mulf %448, %452 : vector<16x32xf32>
    %454 = vector.broadcast %431 : vector<1x32xf32> to vector<16x32xf32>
    %455 = arith.mulf %453, %454 : vector<16x32xf32>
    %456 = vector.broadcast %433 : vector<1x32xf32> to vector<16x32xf32>
    %457 = arith.addf %455, %456 : vector<16x32xf32>
    %458 = arith.truncf %457 : vector<16x32xf32> to vector<16x32xbf16>
    %c1_284 = arith.constant 1 : index
    %c0_285 = arith.constant 0 : index
    %c0_286 = arith.constant 0 : index
    %459 = vector.load %arg17[%c1_284, %c0_285, %c0_286] : memref<2x32x128xbf16, #tpu.memory_space<vmem>>, vector<1x32x128xbf16>
    %460 = vector.shape_cast %459 : vector<1x32x128xbf16> to vector<32x128xbf16>
    %cst_287 = arith.constant dense<0.000000e+00> : vector<16x128xf32>
    %461 = tpu.matmul %458, %460, %cst_287 {dimension_numbers = #tpu.dot_dimension_numbers<[1], [0], [0], [1], [0, 0, 1, 1], [], []>} : vector<16x32xbf16>, vector<32x128xbf16>, vector<16x128xf32> -> vector<16x128xf32>
    %c1_288 = arith.constant 1 : index
    %c0_289 = arith.constant 0 : index
    %c0_290 = arith.constant 0 : index
    %462 = vector.load %arg18[%c1_288, %c0_289, %c0_290] : memref<2x1x128xf32, #tpu.memory_space<vmem>>, vector<1x1x128xf32>
    %463 = vector.shape_cast %462 : vector<1x1x128xf32> to vector<1x128xf32>
    %464 = vector.broadcast %463 : vector<1x128xf32> to vector<16x128xf32>
    %465 = arith.addf %461, %464 : vector<16x128xf32>
    %466 = arith.mulf %465, %465 : vector<16x128xf32>
    %467 = arith.mulf %465, %466 : vector<16x128xf32>
    %cst_291 = arith.constant 4.471500e-02 : f32
    %468 = vector.broadcast %cst_291 : f32 to vector<16x128xf32>
    %469 = arith.mulf %468, %467 : vector<16x128xf32>
    %470 = arith.addf %465, %469 : vector<16x128xf32>
    %cst_292 = arith.constant 0.797884583 : f32
    %471 = vector.broadcast %cst_292 : f32 to vector<16x128xf32>
    %472 = arith.mulf %471, %470 : vector<16x128xf32>
    %473 = math.tanh %472 : vector<16x128xf32>
    %cst_293 = arith.constant 1.000000e+00 : f32
    %474 = vector.broadcast %cst_293 : f32 to vector<16x128xf32>
    %475 = arith.addf %474, %473 : vector<16x128xf32>
    %cst_294 = arith.constant 5.000000e-01 : f32
    %476 = vector.broadcast %cst_294 : f32 to vector<16x128xf32>
    %477 = arith.mulf %476, %475 : vector<16x128xf32>
    %478 = arith.mulf %465, %477 : vector<16x128xf32>
    %479 = arith.truncf %478 : vector<16x128xf32> to vector<16x128xbf16>
    %c1_295 = arith.constant 1 : index
    %c0_296 = arith.constant 0 : index
    %c0_297 = arith.constant 0 : index
    %480 = vector.load %arg19[%c1_295, %c0_296, %c0_297] : memref<2x128x32xbf16, #tpu.memory_space<vmem>>, vector<1x128x32xbf16>
    %481 = vector.shape_cast %480 : vector<1x128x32xbf16> to vector<128x32xbf16>
    %cst_298 = arith.constant dense<0.000000e+00> : vector<16x32xf32>
    %482 = tpu.matmul %479, %481, %cst_298 {dimension_numbers = #tpu.dot_dimension_numbers<[1], [0], [0], [1], [0, 0, 1, 1], [], []>} : vector<16x128xbf16>, vector<128x32xbf16>, vector<16x32xf32> -> vector<16x32xf32>
    %c1_299 = arith.constant 1 : index
    %c0_300 = arith.constant 0 : index
    %c0_301 = arith.constant 0 : index
    %483 = vector.load %arg20[%c1_299, %c0_300, %c0_301] : memref<2x1x32xf32, #tpu.memory_space<vmem>>, vector<1x1x32xf32>
    %484 = vector.shape_cast %483 : vector<1x1x32xf32> to vector<1x32xf32>
    %485 = vector.broadcast %484 : vector<1x32xf32> to vector<16x32xf32>
    %486 = arith.addf %482, %485 : vector<16x32xf32>
    %487 = arith.addf %486, %429 : vector<16x32xf32>
    %c0_302 = arith.constant 0 : index
    %c0_303 = arith.constant 0 : index
    %488 = vector.load %arg21[%c0_302, %c0_303] : memref<1x32xf32, #tpu.memory_space<vmem>>, vector<1x32xf32>
    %c0_304 = arith.constant 0 : index
    %c0_305 = arith.constant 0 : index
    %489 = vector.load %arg22[%c0_304, %c0_305] : memref<1x32xf32, #tpu.memory_space<vmem>>, vector<1x32xf32>
    %cst_306 = arith.constant dense<0.000000e+00> : vector<16xf32>
    %490 = vector.multi_reduction <add>, %487, %cst_306 [1] : vector<16x32xf32> to vector<16xf32>
    %491 = vector.shape_cast %490 : vector<16xf32> to vector<16x1xf32>
    %cst_307 = arith.constant 3.200000e+01 : f32
    %492 = vector.broadcast %cst_307 : f32 to vector<16x1xf32>
    %493 = arith.divf %491, %492 : vector<16x1xf32>
    %494 = vector.broadcast %493 : vector<16x1xf32> to vector<16x32xf32>
    %495 = arith.subf %487, %494 : vector<16x32xf32>
    %496 = vector.broadcast %493 : vector<16x1xf32> to vector<16x32xf32>
    %497 = arith.subf %487, %496 : vector<16x32xf32>
    %498 = arith.mulf %495, %497 : vector<16x32xf32>
    %cst_308 = arith.constant dense<0.000000e+00> : vector<16xf32>
    %499 = vector.multi_reduction <add>, %498, %cst_308 [1] : vector<16x32xf32> to vector<16xf32>
    %500 = vector.shape_cast %499 : vector<16xf32> to vector<16x1xf32>
    %cst_309 = arith.constant 3.200000e+01 : f32
    %501 = vector.broadcast %cst_309 : f32 to vector<16x1xf32>
    %502 = arith.divf %500, %501 : vector<16x1xf32>
    %503 = vector.broadcast %493 : vector<16x1xf32> to vector<16x32xf32>
    %504 = arith.subf %487, %503 : vector<16x32xf32>
    %cst_310 = arith.constant 9.99999996E-13 : f32
    %505 = vector.broadcast %cst_310 : f32 to vector<16x1xf32>
    %506 = arith.addf %502, %505 : vector<16x1xf32>
    %507 = math.rsqrt %506 : vector<16x1xf32>
    %508 = vector.broadcast %507 : vector<16x1xf32> to vector<16x32xf32>
    %509 = arith.mulf %504, %508 : vector<16x32xf32>
    %510 = vector.broadcast %488 : vector<1x32xf32> to vector<16x32xf32>
    %511 = arith.mulf %509, %510 : vector<16x32xf32>
    %512 = vector.broadcast %489 : vector<1x32xf32> to vector<16x32xf32>
    %513 = arith.addf %511, %512 : vector<16x32xf32>
    %c0_311 = arith.constant 0 : index
    %c0_312 = arith.constant 0 : index
    %514 = vector.load %arg23[%c0_311, %c0_312] : memref<16x32xf32, #tpu.memory_space<vmem>>, vector<16x32xf32>
    tpu.vector_store %arg23[%c0_311, %c0_312], %513 {strides = array<i32>} : memref<16x32xf32, #tpu.memory_space<vmem>>, vector<16x32xf32>,
    return
  }
  func.func @transform_0(%arg0: i32) -> (i32, i32) {
    %c0_i32 = arith.constant 0 : i32
    %c0_i32_0 = arith.constant 0 : i32
    %c0_i32_1 = arith.constant 0 : i32
    return %c0_i32, %c0_i32_0 : i32, i32
  }
  func.func @transform_1(%arg0: i32) -> (i32, i32) {
    %c0_i32 = arith.constant 0 : i32
    %c0_i32_0 = arith.constant 0 : i32
    %c0_i32_1 = arith.constant 0 : i32
    return %c0_i32, %c0_i32_0 : i32, i32
  }
  func.func @transform_2(%arg0: i32) -> (i32, i32) {
    %c0_i32 = arith.constant 0 : i32
    %c0_i32_0 = arith.constant 0 : i32
    %c0_i32_1 = arith.constant 0 : i32
    return %c0_i32, %c0_i32_0 : i32, i32
  }
  func.func @transform_3(%arg0: i32) -> (i32, i32) {
    %c0_i32 = arith.constant 0 : i32
    %c0_i32_0 = arith.constant 0 : i32
    %c0_i32_1 = arith.constant 0 : i32
    return %c0_i32, %c0_i32_0 : i32, i32
  }
  func.func @transform_4(%arg0: i32) -> (i32, i32, i32) {
    %c0_i32 = arith.constant 0 : i32
    %c0_i32_0 = arith.constant 0 : i32
    %c0_i32_1 = arith.constant 0 : i32
    %c0_i32_2 = arith.constant 0 : i32
    return %c0_i32, %c0_i32_0, %c0_i32_1 : i32, i32, i32
  }
  func.func @transform_5(%arg0: i32) -> (i32, i32, i32) {
    %c0_i32 = arith.constant 0 : i32
    %c0_i32_0 = arith.constant 0 : i32
    %c0_i32_1 = arith.constant 0 : i32
    %c0_i32_2 = arith.constant 0 : i32
    return %c0_i32, %c0_i32_0, %c0_i32_1 : i32, i32, i32
  }
  func.func @transform_6(%arg0: i32) -> (i32, i32, i32) {
    %c0_i32 = arith.constant 0 : i32
    %c0_i32_0 = arith.constant 0 : i32
    %c0_i32_1 = arith.constant 0 : i32
    %c0_i32_2 = arith.constant 0 : i32
    return %c0_i32, %c0_i32_0, %c0_i32_1 : i32, i32, i32
  }
  func.func @transform_7(%arg0: i32) -> (i32, i32, i32) {
    %c0_i32 = arith.constant 0 : i32
    %c0_i32_0 = arith.constant 0 : i32
    %c0_i32_1 = arith.constant 0 : i32
    %c0_i32_2 = arith.constant 0 : i32
    return %c0_i32, %c0_i32_0, %c0_i32_1 : i32, i32, i32
  }
  func.func @transform_8(%arg0: i32) -> (i32, i32, i32) {
    %c0_i32 = arith.constant 0 : i32
    %c0_i32_0 = arith.constant 0 : i32
    %c0_i32_1 = arith.constant 0 : i32
    %c0_i32_2 = arith.constant 0 : i32
    return %c0_i32, %c0_i32_0, %c0_i32_1 : i32, i32, i32
  }
  func.func @transform_9(%arg0: i32) -> (i32, i32, i32) {
    %c0_i32 = arith.constant 0 : i32
    %c0_i32_0 = arith.constant 0 : i32
    %c0_i32_1 = arith.constant 0 : i32
    %c0_i32_2 = arith.constant 0 : i32
    return %c0_i32, %c0_i32_0, %c0_i32_1 : i32, i32, i32
  }
  func.func @transform_10(%arg0: i32) -> (i32, i32, i32) {
    %c0_i32 = arith.constant 0 : i32
    %c0_i32_0 = arith.constant 0 : i32
    %c0_i32_1 = arith.constant 0 : i32
    %c0_i32_2 = arith.constant 0 : i32
    return %c0_i32, %c0_i32_0, %c0_i32_1 : i32, i32, i32
  }
  func.func @transform_11(%arg0: i32) -> (i32, i32, i32) {
    %c0_i32 = arith.constant 0 : i32
    %c0_i32_0 = arith.constant 0 : i32
    %c0_i32_1 = arith.constant 0 : i32
    %c0_i32_2 = arith.constant 0 : i32
    return %c0_i32, %c0_i32_0, %c0_i32_1 : i32, i32, i32
  }
  func.func @transform_12(%arg0: i32) -> (i32, i32, i32) {
    %c0_i32 = arith.constant 0 : i32
    %c0_i32_0 = arith.constant 0 : i32
    %c0_i32_1 = arith.constant 0 : i32
    %c0_i32_2 = arith.constant 0 : i32
    return %c0_i32, %c0_i32_0, %c0_i32_1 : i32, i32, i32
  }
  func.func @transform_13(%arg0: i32) -> (i32, i32, i32) {
    %c0_i32 = arith.constant 0 : i32
    %c0_i32_0 = arith.constant 0 : i32
    %c0_i32_1 = arith.constant 0 : i32
    %c0_i32_2 = arith.constant 0 : i32
    return %c0_i32, %c0_i32_0, %c0_i32_1 : i32, i32, i32
  }
  func.func @transform_14(%arg0: i32) -> (i32, i32, i32) {
    %c0_i32 = arith.constant 0 : i32
    %c0_i32_0 = arith.constant 0 : i32
    %c0_i32_1 = arith.constant 0 : i32
    %c0_i32_2 = arith.constant 0 : i32
    return %c0_i32, %c0_i32_0, %c0_i32_1 : i32, i32, i32
  }
  func.func @transform_15(%arg0: i32) -> (i32, i32, i32) {
    %c0_i32 = arith.constant 0 : i32
    %c0_i32_0 = arith.constant 0 : i32
    %c0_i32_1 = arith.constant 0 : i32
    %c0_i32_2 = arith.constant 0 : i32
    return %c0_i32, %c0_i32_0, %c0_i32_1 : i32, i32, i32
  }
  func.func @transform_16(%arg0: i32) -> (i32, i32, i32) {
    %c0_i32 = arith.constant 0 : i32
    %c0_i32_0 = arith.constant 0 : i32
    %c0_i32_1 = arith.constant 0 : i32
    %c0_i32_2 = arith.constant 0 : i32
    return %c0_i32, %c0_i32_0, %c0_i32_1 : i32, i32, i32
  }
  func.func @transform_17(%arg0: i32) -> (i32, i32, i32) {
    %c0_i32 = arith.constant 0 : i32
    %c0_i32_0 = arith.constant 0 : i32
    %c0_i32_1 = arith.constant 0 : i32
    %c0_i32_2 = arith.constant 0 : i32
    return %c0_i32, %c0_i32_0, %c0_i32_1 : i32, i32, i32
  }
  func.func @transform_18(%arg0: i32) -> (i32, i32, i32) {
    %c0_i32 = arith.constant 0 : i32
    %c0_i32_0 = arith.constant 0 : i32
    %c0_i32_1 = arith.constant 0 : i32
    %c0_i32_2 = arith.constant 0 : i32
    return %c0_i32, %c0_i32_0, %c0_i32_1 : i32, i32, i32
  }
  func.func @transform_19(%arg0: i32) -> (i32, i32, i32) {
    %c0_i32 = arith.constant 0 : i32
    %c0_i32_0 = arith.constant 0 : i32
    %c0_i32_1 = arith.constant 0 : i32
    %c0_i32_2 = arith.constant 0 : i32
    return %c0_i32, %c0_i32_0, %c0_i32_1 : i32, i32, i32
  }
  func.func @transform_20(%arg0: i32) -> (i32, i32) {
    %c0_i32 = arith.constant 0 : i32
    %c0_i32_0 = arith.constant 0 : i32
    %c0_i32_1 = arith.constant 0 : i32
    return %c0_i32, %c0_i32_0 : i32, i32
  }
  func.func @transform_21(%arg0: i32) -> (i32, i32) {
    %c0_i32 = arith.constant 0 : i32
    %c0_i32_0 = arith.constant 0 : i32
    %c0_i32_1 = arith.constant 0 : i32
    return %c0_i32, %c0_i32_0 : i32, i32
  }
  func.func @transform_22(%arg0: i32) -> (i32, i32) {
    %c0_i32 = arith.constant 0 : i32
    %c0_i32_0 = arith.constant 0 : i32
    %c0_i32_1 = arith.constant 0 : i32
    return %c0_i32, %c0_i32_0 : i32, i32
  }
}

</mosaic_0001>

<llo_original>
// kernel: maskvlm_image_encoder_forward.1
$region0: #{maskvlm_image_encoder_forward.1}
  #allocation0 [shape = 'u32[]', space=smem, size = 0x4, offset = 0x4, fixed_abs, tag = 'smem constant byte address 0x4 - core index']
  #allocation1 [shape = 'u32[144,128]{1,0:T(1,128)}', space=vmem, size = 0x12000, scoped, tag = 'internal scratch']
  %s0 = inlined_call_operand.vmem [shape: f32[16,192], index: 0, kind: input, shape index: {}]
  %s1 = inlined_call_operand.vmem [shape: f32[16,32], index: 1, kind: input, shape index: {}]
  %s2 = inlined_call_operand.vmem [shape: f32[16,16], index: 2, kind: input, shape index: {}]
  %s3 = inlined_call_operand.vmem [shape: f32[192,32], index: 3, kind: input, shape index: {}]
  %s4 = inlined_call_operand.vmem [shape: f32[2,1,32], index: 4, kind: input, shape index: {}]
  %s5 = inlined_call_operand.vmem [shape: f32[2,1,32], index: 5, kind: input, shape index: {}]
  %s6 = inlined_call_operand.vmem [shape: bf16[8,32,8], index: 6, kind: input, shape index: {}]
  %s7 = inlined_call_operand.vmem [shape: f32[8,1,8], index: 7, kind: input, shape index: {}]
  %s8 = inlined_call_operand.vmem [shape: bf16[8,32,8], index: 8, kind: input, shape index: {}]
  %s9 = inlined_call_operand.vmem [shape: f32[8,1,8], index: 9, kind: input, shape index: {}]
  %s10 = inlined_call_operand.vmem [shape: bf16[8,32,8], index: 10, kind: input, shape index: {}]
  %s11 = inlined_call_operand.vmem [shape: f32[8,1,8], index: 11, kind: input, shape index: {}]
  %s12 = inlined_call_operand.vmem [shape: bf16[2,32,32], index: 12, kind: input, shape index: {}]
  %s13 = inlined_call_operand.vmem [shape: f32[2,1,32], index: 13, kind: input, shape index: {}]
  %s14 = inlined_call_operand.vmem [shape: f32[2,1,32], index: 14, kind: input, shape index: {}]
  %s15 = inlined_call_operand.vmem [shape: f32[2,1,32], index: 15, kind: input, shape index: {}]
  %s16 = inlined_call_operand.vmem [shape: bf16[2,32,128], index: 16, kind: input, shape index: {}]
  %s17 = inlined_call_operand.vmem [shape: f32[2,1,128], index: 17, kind: input, shape index: {}]
  %s18 = inlined_call_operand.vmem [shape: bf16[2,128,32], index: 18, kind: input, shape index: {}]
  %s19 = inlined_call_operand.vmem [shape: f32[2,1,32], index: 19, kind: input, shape index: {}]
  %s20 = inlined_call_operand.vmem [shape: f32[1,32], index: 20, kind: input, shape index: {}]
  %s21 = inlined_call_operand.vmem [shape: f32[1,32], index: 21, kind: input, shape index: {}]
  %s22 = inlined_call_operand.vmem [shape: f32[16,32], index: 22, kind: output, shape index: {}]
  %s23 = sld [smem:[#allocation0]]
  $region98: #{maskvlm_image_encoder_forward.1} parent=0
    _
  %s25 = ssub.s32 1, %s23
  %s26 = scalar_select 0, %s25, %s23
  // Predicated region
  $region2: #{maskvlm_image_encoder_forward.1} parent=0 // pred_check
    _
  $region3: #{maskvlm_image_encoder_forward.1} parent=0 // pred_check_branch
    %28 = sbr.rel (0) target = $region5
  $region4: #{maskvlm_image_encoder_forward.1} parent=0 // pred_region
    _
  $region5: #{maskvlm_image_encoder_forward.1} parent=0 // pred_fallthru
    _
  // Predicated region
  $region6: #{maskvlm_image_encoder_forward.1} parent=0 // pred_check
    _
  $region7: #{maskvlm_image_encoder_forward.1} parent=0 // pred_check_branch
    %30 = sbr.rel (0) target = $region9
  $region8: #{maskvlm_image_encoder_forward.1} parent=0 // pred_region
    _
  $region9: #{maskvlm_image_encoder_forward.1} parent=0 // pred_fallthru
    _
  // Predicated region
  $region10: #{maskvlm_image_encoder_forward.1} parent=0 // pred_check
    _
  $region11: #{maskvlm_image_encoder_forward.1} parent=0 // pred_check_branch
    %32 = sbr.rel (0) target = $region13
  $region12: #{maskvlm_image_encoder_forward.1} parent=0 // pred_region
    _
  $region13: #{maskvlm_image_encoder_forward.1} parent=0 // pred_fallthru
    _
  // Predicated region
  $region14: #{maskvlm_image_encoder_forward.1} parent=0 // pred_check
    _
  $region15: #{maskvlm_image_encoder_forward.1} parent=0 // pred_check_branch
    %34 = sbr.rel (0) target = $region17
  $region16: #{maskvlm_image_encoder_forward.1} parent=0 // pred_region
    _
  $region17: #{maskvlm_image_encoder_forward.1} parent=0 // pred_fallthru
    _
  // Predicated region
  $region18: #{maskvlm_image_encoder_forward.1} parent=0 // pred_check
    _
  $region19: #{maskvlm_image_encoder_forward.1} parent=0 // pred_check_branch
    %36 = sbr.rel (0) target = $region21
  $region20: #{maskvlm_image_encoder_forward.1} parent=0 // pred_region
    _
  $region21: #{maskvlm_image_encoder_forward.1} parent=0 // pred_fallthru
    _
  // Predicated region
  $region22: #{maskvlm_image_encoder_forward.1} parent=0 // pred_check
    _
  $region23: #{maskvlm_image_encoder_forward.1} parent=0 // pred_check_branch
    %38 = sbr.rel (0) target = $region25
  $region24: #{maskvlm_image_encoder_forward.1} parent=0 // pred_region
    _
  $region25: #{maskvlm_image_encoder_forward.1} parent=0 // pred_fallthru
    _
  // Predicated region
  $region26: #{maskvlm_image_encoder_forward.1} parent=0 // pred_check
    _
  $region27: #{maskvlm_image_encoder_forward.1} parent=0 // pred_check_branch
    %40 = sbr.rel (0) target = $region29
  $region28: #{maskvlm_image_encoder_forward.1} parent=0 // pred_region
    _
  $region29: #{maskvlm_image_encoder_forward.1} parent=0 // pred_fallthru
    _
  // Predicated region
  $region30: #{maskvlm_image_encoder_forward.1} parent=0 // pred_check
    _
  $region31: #{maskvlm_image_encoder_forward.1} parent=0 // pred_check_branch
    %42 = sbr.rel (0) target = $region33
  $region32: #{maskvlm_image_encoder_forward.1} parent=0 // pred_region
    _
  $region33: #{maskvlm_image_encoder_forward.1} parent=0 // pred_fallthru
    _
  // Predicated region
  $region34: #{maskvlm_image_encoder_forward.1} parent=0 // pred_check
    _
  $region35: #{maskvlm_image_encoder_forward.1} parent=0 // pred_check_branch
    %44 = sbr.rel (0) target = $region37
  $region36: #{maskvlm_image_encoder_forward.1} parent=0 // pred_region
    _
  $region37: #{maskvlm_image_encoder_forward.1} parent=0 // pred_fallthru
    _
  // Predicated region
  $region38: #{maskvlm_image_encoder_forward.1} parent=0 // pred_check
    _
  $region39: #{maskvlm_image_encoder_forward.1} parent=0 // pred_check_branch
    %46 = sbr.rel (0) target = $region41
  $region40: #{maskvlm_image_encoder_forward.1} parent=0 // pred_region
    _
  $region41: #{maskvlm_image_encoder_forward.1} parent=0 // pred_fallthru
    _
  // Predicated region
  $region42: #{maskvlm_image_encoder_forward.1} parent=0 // pred_check
    _
  $region43: #{maskvlm_image_encoder_forward.1} parent=0 // pred_check_branch
    %48 = sbr.rel (0) target = $region45
  $region44: #{maskvlm_image_encoder_forward.1} parent=0 // pred_region
    _
  $region45: #{maskvlm_image_encoder_forward.1} parent=0 // pred_fallthru
    _
  // Predicated region
  $region46: #{maskvlm_image_encoder_forward.1} parent=0 // pred_check
    _
  $region47: #{maskvlm_image_encoder_forward.1} parent=0 // pred_check_branch
    %50 = sbr.rel (0) target = $region49
  $region48: #{maskvlm_image_encoder_forward.1} parent=0 // pred_region
    _
  $region49: #{maskvlm_image_encoder_forward.1} parent=0 // pred_fallthru
    _
  // Predicated region
  $region50: #{maskvlm_image_encoder_forward.1} parent=0 // pred_check
    _
  $region51: #{maskvlm_image_encoder_forward.1} parent=0 // pred_check_branch
    %52 = sbr.rel (0) target = $region53
  $region52: #{maskvlm_image_encoder_forward.1} parent=0 // pred_region
    _
  $region53: #{maskvlm_image_encoder_forward.1} parent=0 // pred_fallthru
    _
  // Predicated region
  $region54: #{maskvlm_image_encoder_forward.1} parent=0 // pred_check
    _
  $region55: #{maskvlm_image_encoder_forward.1} parent=0 // pred_check_branch
    %54 = sbr.rel (0) target = $region57
  $region56: #{maskvlm_image_encoder_forward.1} parent=0 // pred_region
    _
  $region57: #{maskvlm_image_encoder_forward.1} parent=0 // pred_fallthru
    _
  // Predicated region
  $region58: #{maskvlm_image_encoder_forward.1} parent=0 // pred_check
    _
  $region59: #{maskvlm_image_encoder_forward.1} parent=0 // pred_check_branch
    %56 = sbr.rel (0) target = $region61
  $region60: #{maskvlm_image_encoder_forward.1} parent=0 // pred_region
    _
  $region61: #{maskvlm_image_encoder_forward.1} parent=0 // pred_fallthru
    _
  // Predicated region
  $region62: #{maskvlm_image_encoder_forward.1} parent=0 // pred_check
    _
  $region63: #{maskvlm_image_encoder_forward.1} parent=0 // pred_check_branch
    %58 = sbr.rel (0) target = $region65
  $region64: #{maskvlm_image_encoder_forward.1} parent=0 // pred_region
    _
  $region65: #{maskvlm_image_encoder_forward.1} parent=0 // pred_fallthru
    _
  // Predicated region
  $region66: #{maskvlm_image_encoder_forward.1} parent=0 // pred_check
    _
  $region67: #{maskvlm_image_encoder_forward.1} parent=0 // pred_check_branch
    %60 = sbr.rel (0) target = $region69
  $region68: #{maskvlm_image_encoder_forward.1} parent=0 // pred_region
    _
  $region69: #{maskvlm_image_encoder_forward.1} parent=0 // pred_fallthru
    _
  // Predicated region
  $region70: #{maskvlm_image_encoder_forward.1} parent=0 // pred_check
    _
  $region71: #{maskvlm_image_encoder_forward.1} parent=0 // pred_check_branch
    %62 = sbr.rel (0) target = $region73
  $region72: #{maskvlm_image_encoder_forward.1} parent=0 // pred_region
    _
  $region73: #{maskvlm_image_encoder_forward.1} parent=0 // pred_fallthru
    _
  // Predicated region
  $region74: #{maskvlm_image_encoder_forward.1} parent=0 // pred_check
    _
  $region75: #{maskvlm_image_encoder_forward.1} parent=0 // pred_check_branch
    %64 = sbr.rel (0) target = $region77
  $region76: #{maskvlm_image_encoder_forward.1} parent=0 // pred_region
    _
  $region77: #{maskvlm_image_encoder_forward.1} parent=0 // pred_fallthru
    _
  // Predicated region
  $region78: #{maskvlm_image_encoder_forward.1} parent=0 // pred_check
    _
  $region79: #{maskvlm_image_encoder_forward.1} parent=0 // pred_check_branch
    %66 = sbr.rel (0) target = $region81
  $region80: #{maskvlm_image_encoder_forward.1} parent=0 // pred_region
    _
  $region81: #{maskvlm_image_encoder_forward.1} parent=0 // pred_fallthru
    _
  // Predicated region
  $region82: #{maskvlm_image_encoder_forward.1} parent=0 // pred_check
    _
  $region83: #{maskvlm_image_encoder_forward.1} parent=0 // pred_check_branch
    %68 = sbr.rel (0) target = $region85
  $region84: #{maskvlm_image_encoder_forward.1} parent=0 // pred_region
    _
  $region85: #{maskvlm_image_encoder_forward.1} parent=0 // pred_fallthru
    _
  // Predicated region
  $region86: #{maskvlm_image_encoder_forward.1} parent=0 // pred_check
    _
  $region87: #{maskvlm_image_encoder_forward.1} parent=0 // pred_check_branch
    %70 = sbr.rel (0) target = $region89
  $region88: #{maskvlm_image_encoder_forward.1} parent=0 // pred_region
    _
  $region89: #{maskvlm_image_encoder_forward.1} parent=0 // pred_fallthru
    _
  %v72 = vld [vmem:[%s0] sm:$0xff]
  %v73 = vld [vmem:[%s0 + $0x8] sm:$0xff]
  %v74 = vld [vmem:[%s0 + $0x10] sm:$0xff]
  %v75 = vld [vmem:[%s0 + $0x18] sm:$0xff]
  %v76 = vld [vmem:[%s3] sm:$0xff]
  %v77 = vld [vmem:[%s3 + $0x8] sm:$0xff]
  %v78 = vld [vmem:[%s3 + $0x10] sm:$0xff]
  %v79 = vld [vmem:[%s3 + $0x18] sm:$0xff]
  %v80 = vld [vmem:[%s3 + $0x20] sm:$0xff]
  %v81 = vld [vmem:[%s3 + $0x28] sm:$0xff]
  %v82 = vld [vmem:[%s3 + $0x30] sm:$0xff]
  %v83 = vld [vmem:[%s3 + $0x38] sm:$0xff]
  %v84 = vld [vmem:[%s3 + $0x40] sm:$0xff]
  %v85 = vld [vmem:[%s3 + $0x48] sm:$0xff]
  %v86 = vld [vmem:[%s3 + $0x50] sm:$0xff]
  %v87 = vld [vmem:[%s3 + $0x58] sm:$0xff]
  %v88 = vld [vmem:[%s3 + $0x60] sm:$0xff]
  %v89 = vld [vmem:[%s3 + $0x68] sm:$0xff]
  %v90 = vld [vmem:[%s3 + $0x70] sm:$0xff]
  %v91 = vld [vmem:[%s3 + $0x78] sm:$0xff]
  %v92 = vld [vmem:[%s3 + $0x80] sm:$0xff]
  %v93 = vld [vmem:[%s3 + $0x88] sm:$0xff]
  %v94 = vld [vmem:[%s3 + $0x90] sm:$0xff]
  %v95 = vld [vmem:[%s3 + $0x98] sm:$0xff]
  %v96 = vld [vmem:[%s3 + $0xa0] sm:$0xff]
  %v97 = vld [vmem:[%s3 + $0xa8] sm:$0xff]
  %v98 = vld [vmem:[%s3 + $0xb0] sm:$0xff]
  %v99 = vld [vmem:[%s3 + $0xb8] sm:$0xff]
  %v100 = vld [vmem:[%s1] sm:$0xff]
  %v101 = vld [vmem:[%s1 + $0x8] sm:$0xff]
  %vm102 = vcmask 523264
  %v104 = vsel %vm102, %v73, 0
  %v107 = vsel %vm102, %v75, 0
  %109 = vmatprep.subr.mxu0 0.0
  %110 = vmatpush1.msra.mxu0 %v91
  %111 = vmatprep.subr.mxu0 0.0
  %112 = vmatpush1.msra.mxu0 %v90
  %113 = vmatprep.subr.mxu0 0.0
  %114 = vmatpush1.msra.mxu0 %v89
  %115 = vmatprep.subr.mxu0 0.0
  %116 = vmatpush1.msra.mxu0 %v88
  %117 = vmatprep.subr.mxu0 0.0
  %118 = vmatpush1.msra.mxu0 %v87
  %119 = vmatprep.subr.mxu0 0.0
  %120 = vmatpush1.msra.mxu0 %v86
  %121 = vmatprep.subr.mxu0 0.0
  %122 = vmatpush1.msra.mxu0 %v85
  %123 = vmatprep.subr.mxu0 0.0
  %124 = vmatpush1.msra.mxu0 %v84
  %125 = vmatprep.subr.mxu0 0.0
  %126 = vmatpush1.msra.mxu0 %v83
  %127 = vmatprep.subr.mxu0 0.0
  %128 = vmatpush1.msra.mxu0 %v82
  %129 = vmatprep.subr.mxu0 0.0
  %130 = vmatpush1.msra.mxu0 %v81
  %131 = vmatprep.subr.mxu0 0.0
  %132 = vmatpush1.msra.mxu0 %v80
  %133 = vmatprep.subr.mxu0 0.0
  %134 = vmatpush1.msra.mxu0 %v79
  %135 = vmatprep.subr.mxu0 0.0
  %136 = vmatpush1.msra.mxu0 %v78
  %137 = vmatprep.subr.mxu0 0.0
  %138 = vmatpush1.msra.mxu0 %v77
  %139 = vmatprep.subr.mxu0 0.0
  %140 = vmatpush1.msra.mxu0 %v76
  %141 = vmatprep.subr.mxu0 0.0
  %142 = vmatpush2.msra.mxu0 0.0
  %143 = vmatprep.subr.mxu0 0.0
  %144 = vmatpush2.msra.mxu0 0.0
  %145 = vmatprep.subr.mxu0 0.0
  %146 = vmatpush2.msra.mxu0 0.0
  %147 = vmatprep.subr.mxu0 0.0
  %148 = vmatpush2.msra.mxu0 0.0
  %149 = vmatprep.subr.mxu0 0.0
  %150 = vmatpush2.msra.mxu0 0.0
  %151 = vmatprep.subr.mxu0 0.0
  %152 = vmatpush2.msra.mxu0 0.0
  %153 = vmatprep.subr.mxu0 0.0
  %154 = vmatpush2.msra.mxu0 0.0
  %155 = vmatprep.subr.mxu0 0.0
  %156 = vmatpush2.msra.mxu0 0.0
  %157 = vmatprep.subr.mxu0 0.0
  %158 = vmatpush2.msra.mxu0 %v99
  %159 = vmatprep.subr.mxu0 0.0
  %160 = vmatpush2.msra.mxu0 %v98
  %161 = vmatprep.subr.mxu0 0.0
  %162 = vmatpush2.msra.mxu0 %v97
  %163 = vmatprep.subr.mxu0 0.0
  %164 = vmatpush2.msra.mxu0 %v96
  %165 = vmatprep.subr.mxu0 0.0
  %166 = vmatpush2.msra.mxu0 %v95
  %167 = vmatprep.subr.mxu0 0.0
  %168 = vmatpush2.msra.mxu0 %v94
  %169 = vmatprep.subr.mxu0 0.0
  %170 = vmatpush2.msra.mxu0 %v93
  %171 = vmatprep.subr.mxu0 0.0
  %172 = vmatpush2.msra.mxu0 %v92
  %173 = vmatprep.mubr.f32.mxu0 %v104
  %174 = vmatmul.mubr.f32.gmra.mxu0 %v72
  %v175 = vpop.f32.mrf.mxu0
  %v176 = vadd.f32 %v100, %v175
  %v177 = vpop.f32.mrf.mxu0
  %178 = vmatprep.mubr.f32.mxu0 %v107
  %179 = vmatmul.mubr.f32.gmra.mxu0 %v74
  %v180 = vpop.f32.mrf.mxu0
  %v181 = vadd.f32 %v101, %v180
  %v182 = vpop.f32.mrf.mxu0
  %183 = vdwg.mxu0
  %v184 = vld [vmem:[%s2] sm:$0xff]
  %v185 = vld [vmem:[%s2 + $0x8] sm:$0xff]
  %v186 = vld [vmem:[%s4] sm:$0x1]
  %v187 = vld [vmem:[%s5] sm:$0x1]
  %vm188 = vcmask 261120
  %v189 = vsel %vm188, %v176, 0.0
  %190 = vadd.xlane.f32.xlu0 %v189
  %v191 = vpop.xlane.xlu0 %190
  %v192 = vsel %vm188, %v181, 0.0
  %193 = vadd.xlane.f32.xlu0 %v192
  %v194 = vpop.xlane.xlu0 %193
  %v195 = vrcp.pop 32.0
  %v196 = vmul.f32 %v191, %v195
  %v197 = vmul.f32 %v194, %v195
  %v198 = vsub.f32 %v176, %v196
  %v199 = vsub.f32 %v181, %v197
  %v200 = vmul.f32 %v198, %v198
  %v201 = vmul.f32 %v199, %v199
  %v202 = vsel %vm188, %v200, 0.0
  %203 = vadd.xlane.f32.xlu0 %v202
  %v204 = vpop.xlane.xlu0 %203
  %v205 = vsel %vm188, %v201, 0.0
  %206 = vadd.xlane.f32.xlu0 %v205
  %v207 = vpop.xlane.xlu0 %206
  %v208 = vmul.f32 %v204, %v195
  %v209 = vmul.f32 %v207, %v195
  %v210 = vadd.f32 %v208, 1e-12
  %v211 = vadd.f32 %v209, 1e-12
  %v212 = vrsqrt.pop %v210
  %v213 = vrsqrt.pop %v211
  %v214 = vmul.f32 %v198, %v212
  %v215 = vmul.f32 %v199, %v213
  %v217 = vlaneseq
  %v218 = vshrl.u32 %v217, 7
  %v219 = vsub.s32 0, %v218
  %v220 = vrot.slane %v186, %v219
  %v222 = vmul.f32 %v214, %v220
  %v223 = vmul.f32 %v215, %v220
  %v225 = vlaneseq
  %v226 = vshrl.u32 %v225, 7
  %v227 = vsub.s32 0, %v226
  %v228 = vrot.slane %v187, %v227
  %v230 = vadd.f32 %v222, %v228
  %v231 = vadd.f32 %v223, %v228
  %v232 = vpack.c.bf16 %v231, %v230
  %v233 = vld [vmem:[%s6] sm:$0xf]
  %v234 = vld [vmem:[%s6 + $0x4] sm:$0xf]
  %v235 = vld [vmem:[%s6 + $0x8] sm:$0xf]
  %v236 = vld [vmem:[%s6 + $0xc] sm:$0xf]
  %v237 = vld [vmem:[%s7] sm:$0x1]
  %v239 = vlaneseq
  %v240 = vshrl.u32 %v239, 7
  %v241 = vsub.s32 0, %v240
  %v242 = vrot.slane %v237, %v241
  %v248 = vunpack.c.l.b16 %v233
  %v249 = vunpack.c.l.b16 %v234
  %v250 = vunpack.c.l.b16 %v235
  %v251 = vunpack.c.l.b16 %v236
  %v252 = vpack.c.b16 %v249, %v248
  %v253 = vpack.c.b16 %v251, %v250
  %v257 = vsel %vm188, %v232, 0
  %259 = vmatprep.subr.bf16.mxu0 0
  %260 = vmatpush1.bf16.msra.mxu0 0
  %261 = vmatprep.subr.bf16.mxu0 0
  %262 = vmatpush1.bf16.msra.mxu0 0
  %263 = vmatprep.subr.bf16.mxu0 0
  %264 = vmatpush1.bf16.msra.mxu0 0
  %265 = vmatprep.subr.bf16.mxu0 0
  %266 = vmatpush1.bf16.msra.mxu0 0
  %267 = vmatprep.subr.bf16.mxu0 0
  %268 = vmatpush1.bf16.msra.mxu0 0
  %269 = vmatprep.subr.bf16.mxu0 0
  %270 = vmatpush1.bf16.msra.mxu0 0
  %271 = vmatprep.subr.bf16.mxu0 0
  %272 = vmatpush1.bf16.msra.mxu0 %v253
  %273 = vmatprep.subr.bf16.mxu0 0
  %274 = vmatpush1.bf16.msra.mxu0 %v252
  %275 = vmatprep.subr.bf16.mxu0 0
  %276 = vmatpush2.bf16.msra.mxu0 0
  %277 = vmatprep.subr.bf16.mxu0 0
  %278 = vmatpush2.bf16.msra.mxu0 0
  %279 = vmatprep.subr.bf16.mxu0 0
  %280 = vmatpush2.bf16.msra.mxu0 0
  %281 = vmatprep.subr.bf16.mxu0 0
  %282 = vmatpush2.bf16.msra.mxu0 0
  %283 = vmatprep.subr.bf16.mxu0 0
  %284 = vmatpush2.bf16.msra.mxu0 0
  %285 = vmatprep.subr.bf16.mxu0 0
  %286 = vmatpush2.bf16.msra.mxu0 0
  %287 = vmatprep.subr.bf16.mxu0 0
  %288 = vmatpush2.bf16.msra.mxu0 0
  %289 = vmatprep.subr.bf16.mxu0 0
  %290 = vmatpush2.bf16.msra.mxu0 0
  %291 = vmatprep.mubr.bf16.mxu0 0
  %292 = vmatmul.mubr.bf16.gmra.mxu0 %v257
  %v293 = vpop.f32.mrf.mxu0
  %v294 = vadd.f32 %v242, %v293
  %v295 = vpop.f32.mrf.mxu0
  %v296 = vpop.f32.mrf.mxu0
  %v297 = vadd.f32 %v242, %v296
  %v298 = vpop.f32.mrf.mxu0
  %299 = vdwg.mxu0
  %v300 = vld [vmem:[%s8] sm:$0xf]
  %v301 = vld [vmem:[%s8 + $0x4] sm:$0xf]
  %v302 = vld [vmem:[%s8 + $0x8] sm:$0xf]
  %v303 = vld [vmem:[%s8 + $0xc] sm:$0xf]
  %v304 = vld [vmem:[%s9] sm:$0x1]
  %v306 = vlaneseq
  %v307 = vshrl.u32 %v306, 7
  %v308 = vsub.s32 0, %v307
  %v309 = vrot.slane %v304, %v308
  %v315 = vunpack.c.l.b16 %v300
  %v316 = vunpack.c.l.b16 %v301
  %v317 = vunpack.c.l.b16 %v302
  %v318 = vunpack.c.l.b16 %v303
  %v319 = vpack.c.b16 %v316, %v315
  %v320 = vpack.c.b16 %v318, %v317
  %323 = vmatprep.subr.bf16.mxu0 0
  %324 = vmatpush1.bf16.msra.mxu0 0
  %325 = vmatprep.subr.bf16.mxu0 0
  %326 = vmatpush1.bf16.msra.mxu0 0
  %327 = vmatprep.subr.bf16.mxu0 0
  %328 = vmatpush1.bf16.msra.mxu0 0
  %329 = vmatprep.subr.bf16.mxu0 0
  %330 = vmatpush1.bf16.msra.mxu0 0
  %331 = vmatprep.subr.bf16.mxu0 0
  %332 = vmatpush1.bf16.msra.mxu0 0
  %333 = vmatprep.subr.bf16.mxu0 0
  %334 = vmatpush1.bf16.msra.mxu0 0
  %335 = vmatprep.subr.bf16.mxu0 0
  %336 = vmatpush1.bf16.msra.mxu0 %v320
  %337 = vmatprep.subr.bf16.mxu0 0
  %338 = vmatpush1.bf16.msra.mxu0 %v319
  %339 = vmatprep.subr.bf16.mxu0 0
  %340 = vmatpush2.bf16.msra.mxu0 0
  %341 = vmatprep.subr.bf16.mxu0 0
  %342 = vmatpush2.bf16.msra.mxu0 0
  %343 = vmatprep.subr.bf16.mxu0 0
  %344 = vmatpush2.bf16.msra.mxu0 0
  %345 = vmatprep.subr.bf16.mxu0 0
  %346 = vmatpush2.bf16.msra.mxu0 0
  %347 = vmatprep.subr.bf16.mxu0 0
  %348 = vmatpush2.bf16.msra.mxu0 0
  %349 = vmatprep.subr.bf16.mxu0 0
  %350 = vmatpush2.bf16.msra.mxu0 0
  %351 = vmatprep.subr.bf16.mxu0 0
  %352 = vmatpush2.bf16.msra.mxu0 0
  %353 = vmatprep.subr.bf16.mxu0 0
  %354 = vmatpush2.bf16.msra.mxu0 0
  %355 = vmatprep.mubr.bf16.mxu0 0
  %356 = vmatmul.mubr.bf16.gmra.mxu0 %v257
  %v357 = vpop.f32.mrf.mxu0
  %v358 = vadd.f32 %v309, %v357
  %v359 = vpop.f32.mrf.mxu0
  %v360 = vpop.f32.mrf.mxu0
  %v361 = vadd.f32 %v309, %v360
  %v362 = vpop.f32.mrf.mxu0
  %363 = vdwg.mxu0
  %v364 = vld [vmem:[%s10] sm:$0xf]
  %v365 = vld [vmem:[%s10 + $0x4] sm:$0xf]
  %v366 = vld [vmem:[%s10 + $0x8] sm:$0xf]
  %v367 = vld [vmem:[%s10 + $0xc] sm:$0xf]
  %v368 = vld [vmem:[%s11] sm:$0x1]
  %v370 = vlaneseq
  %v371 = vshrl.u32 %v370, 7
  %v372 = vsub.s32 0, %v371
  %v373 = vrot.slane %v368, %v372
  %v379 = vunpack.c.l.b16 %v364
  %v380 = vunpack.c.l.b16 %v365
  %v381 = vunpack.c.l.b16 %v366
  %v382 = vunpack.c.l.b16 %v367
  %v383 = vpack.c.b16 %v380, %v379
  %v384 = vpack.c.b16 %v382, %v381
  %387 = vmatprep.subr.bf16.mxu0 0
  %388 = vmatpush1.bf16.msra.mxu0 0
  %389 = vmatprep.subr.bf16.mxu0 0
  %390 = vmatpush1.bf16.msra.mxu0 0
  %391 = vmatprep.subr.bf16.mxu0 0
  %392 = vmatpush1.bf16.msra.mxu0 0
  %393 = vmatprep.subr.bf16.mxu0 0
  %394 = vmatpush1.bf16.msra.mxu0 0
  %395 = vmatprep.subr.bf16.mxu0 0
  %396 = vmatpush1.bf16.msra.mxu0 0
  %397 = vmatprep.subr.bf16.mxu0 0
  %398 = vmatpush1.bf16.msra.mxu0 0
  %399 = vmatprep.subr.bf16.mxu0 0
  %400 = vmatpush1.bf16.msra.mxu0 %v384
  %401 = vmatprep.subr.bf16.mxu0 0
  %402 = vmatpush1.bf16.msra.mxu0 %v383
  %403 = vmatprep.subr.bf16.mxu0 0
  %404 = vmatpush2.bf16.msra.mxu0 0
  %405 = vmatprep.subr.bf16.mxu0 0
  %406 = vmatpush2.bf16.msra.mxu0 0
  %407 = vmatprep.subr.bf16.mxu0 0
  %408 = vmatpush2.bf16.msra.mxu0 0
  %409 = vmatprep.subr.bf16.mxu0 0
  %410 = vmatpush2.bf16.msra.mxu0 0
  %411 = vmatprep.subr.bf16.mxu0 0
  %412 = vmatpush2.bf16.msra.mxu0 0
  %413 = vmatprep.subr.bf16.mxu0 0
  %414 = vmatpush2.bf16.msra.mxu0 0
  %415 = vmatprep.subr.bf16.mxu0 0
  %416 = vmatpush2.bf16.msra.mxu0 0
  %417 = vmatprep.subr.bf16.mxu0 0
  %418 = vmatpush2.bf16.msra.mxu0 0
  %419 = vmatprep.mubr.bf16.mxu0 0
  %420 = vmatmul.mubr.bf16.gmra.mxu0 %v257
  %v421 = vpop.f32.mrf.mxu0
  %v422 = vadd.f32 %v373, %v421
  %v423 = vpop.f32.mrf.mxu0
  %v424 = vpop.f32.mrf.mxu0
  %v425 = vadd.f32 %v373, %v424
  %v426 = vpop.f32.mrf.mxu0
  %427 = vdwg.mxu0
  %vm428 = vcmask 64512
  %v430 = vsel %vm428, %v294, 0
  %v433 = vsel %vm428, %v297, 0
  %v436 = vsel %vm428, %v358, 0
  %v439 = vsel %vm428, %v361, 0
  %441 = vmatprep.subr.mxu0 0.0
  %442 = vmatpush1.xpose.msra.mxu0 0.0
  %443 = vmatprep.subr.mxu0 0.0
  %444 = vmatpush1.xpose.msra.mxu0 0.0
  %445 = vmatprep.subr.mxu0 0.0
  %446 = vmatpush1.xpose.msra.mxu0 0.0
  %447 = vmatprep.subr.mxu0 0.0
  %448 = vmatpush1.xpose.msra.mxu0 0.0
  %449 = vmatprep.subr.mxu0 0.0
  %450 = vmatpush1.xpose.msra.mxu0 0.0
  %451 = vmatprep.subr.mxu0 0.0
  %452 = vmatpush1.xpose.msra.mxu0 0.0
  %453 = vmatprep.subr.mxu0 0.0
  %454 = vmatpush1.xpose.msra.mxu0 0.0
  %455 = vmatprep.subr.mxu0 0.0
  %456 = vmatpush1.xpose.msra.mxu0 0.0
  %457 = vmatprep.subr.mxu0 0.0
  %458 = vmatpush1.xpose.msra.mxu0 0.0
  %459 = vmatprep.subr.mxu0 0.0
  %460 = vmatpush1.xpose.msra.mxu0 0.0
  %461 = vmatprep.subr.mxu0 0.0
  %462 = vmatpush1.xpose.msra.mxu0 0.0
  %463 = vmatprep.subr.mxu0 0.0
  %464 = vmatpush1.xpose.msra.mxu0 0.0
  %465 = vmatprep.subr.mxu0 0.0
  %466 = vmatpush1.xpose.msra.mxu0 0.0
  %467 = vmatprep.subr.mxu0 0.0
  %468 = vmatpush1.xpose.msra.mxu0 0.0
  %469 = vmatprep.subr.mxu0 0.0
  %470 = vmatpush1.xpose.msra.mxu0 %v439
  %471 = vmatprep.subr.mxu0 0.0
  %472 = vmatpush1.xpose.msra.mxu0 %v436
  %473 = vmatprep.subr.mxu0 0.0
  %474 = vmatpush2.xpose.msra.mxu0 0.0
  %475 = vmatprep.subr.mxu0 0.0
  %476 = vmatpush2.xpose.msra.mxu0 0.0
  %477 = vmatprep.subr.mxu0 0.0
  %478 = vmatpush2.xpose.msra.mxu0 0.0
  %479 = vmatprep.subr.mxu0 0.0
  %480 = vmatpush2.xpose.msra.mxu0 0.0
  %481 = vmatprep.subr.mxu0 0.0
  %482 = vmatpush2.xpose.msra.mxu0 0.0
  %483 = vmatprep.subr.mxu0 0.0
  %484 = vmatpush2.xpose.msra.mxu0 0.0
  %485 = vmatprep.subr.mxu0 0.0
  %486 = vmatpush2.xpose.msra.mxu0 0.0
  %487 = vmatprep.subr.mxu0 0.0
  %488 = vmatpush2.xpose.msra.mxu0 0.0
  %489 = vmatprep.subr.mxu0 0.0
  %490 = vmatpush2.xpose.msra.mxu0 0.0
  %491 = vmatprep.subr.mxu0 0.0
  %492 = vmatpush2.xpose.msra.mxu0 0.0
  %493 = vmatprep.subr.mxu0 0.0
  %494 = vmatpush2.xpose.msra.mxu0 0.0
  %495 = vmatprep.subr.mxu0 0.0
  %496 = vmatpush2.xpose.msra.mxu0 0.0
  %497 = vmatprep.subr.mxu0 0.0
  %498 = vmatpush2.xpose.msra.mxu0 0.0
  %499 = vmatprep.subr.mxu0 0.0
  %500 = vmatpush2.xpose.msra.mxu0 0.0
  %501 = vmatprep.subr.mxu0 0.0
  %502 = vmatpush2.xpose.msra.mxu0 0.0
  %503 = vmatprep.subr.mxu0 0.0
  %504 = vmatpush2.xpose.msra.mxu0 0.0
  %505 = vmatprep.mubr.f32.mxu0 0.0
  %506 = vmatmul.mubr.f32.gmra.mxu0 %v430
  %v507 = vpop.f32.mrf.mxu0
  %v508 = vadd.f32 0.0, %v507
  %v509 = vpop.f32.mrf.mxu0
  %510 = vmatprep.mubr.f32.mxu0 0.0
  %511 = vmatmul.mubr.f32.gmra.mxu0 %v433
  %v512 = vpop.f32.mrf.mxu0
  %v513 = vadd.f32 0.0, %v512
  %v514 = vpop.f32.mrf.mxu0
  %515 = vdwg.mxu0
  %v516 = vmul.f32 %v508, 0.35355338
  %v517 = vmul.f32 %v513, 0.35355338
  %v518 = vadd.f32 %v516, %v184
  %v519 = vadd.f32 %v517, %v185
  %vm520 = vcmask 130048
  %v521 = vsel %vm520, %v518, -inf
  %522 = vmax.xlane.f32.xlu0 %v521
  %v523 = vpop.xlane.xlu0 %522
  %v524 = vsel %vm520, %v519, -inf
  %525 = vmax.xlane.f32.xlu0 %v524
  %v526 = vpop.xlane.xlu0 %525
  %v527 = vsub.f32 %v518, %v523
  %v528 = vsub.f32 %v519, %v526
  %v529 = vmul.f32 %v527, 1.442695
  %v530 = vpow.pop %v529
  %v531 = vmul.f32 %v528, 1.442695
  %v532 = vpow.pop %v531
  %v533 = vsel %vm520, %v530, 0.0
  %534 = vadd.xlane.f32.xlu0 %v533
  %v535 = vpop.xlane.xlu0 %534
  %v536 = vsel %vm520, %v532, 0.0
  %537 = vadd.xlane.f32.xlu0 %v536
  %v538 = vpop.xlane.xlu0 %537
  %v539 = vrcp.pop %v535
  %v540 = vrcp.pop %v538
  %v541 = vmul.f32 %v530, %v539
  %v542 = vmul.f32 %v532, %v540
  %v544 = vsel %vm520, %v541, 0
  %v547 = vsel %vm520, %v542, 0
  %549 = vmatprep.subr.mxu0 0.0
  %550 = vmatpush1.msra.mxu0 0.0
  %551 = vmatprep.subr.mxu0 0.0
  %552 = vmatpush1.msra.mxu0 0.0
  %553 = vmatprep.subr.mxu0 0.0
  %554 = vmatpush1.msra.mxu0 0.0
  %555 = vmatprep.subr.mxu0 0.0
  %556 = vmatpush1.msra.mxu0 0.0
  %557 = vmatprep.subr.mxu0 0.0
  %558 = vmatpush1.msra.mxu0 0.0
  %559 = vmatprep.subr.mxu0 0.0
  %560 = vmatpush1.msra.mxu0 0.0
  %561 = vmatprep.subr.mxu0 0.0
  %562 = vmatpush1.msra.mxu0 0.0
  %563 = vmatprep.subr.mxu0 0.0
  %564 = vmatpush1.msra.mxu0 0.0
  %565 = vmatprep.subr.mxu0 0.0
  %566 = vmatpush1.msra.mxu0 0.0
  %567 = vmatprep.subr.mxu0 0.0
  %568 = vmatpush1.msra.mxu0 0.0
  %569 = vmatprep.subr.mxu0 0.0
  %570 = vmatpush1.msra.mxu0 0.0
  %571 = vmatprep.subr.mxu0 0.0
  %572 = vmatpush1.msra.mxu0 0.0
  %573 = vmatprep.subr.mxu0 0.0
  %574 = vmatpush1.msra.mxu0 0.0
  %575 = vmatprep.subr.mxu0 0.0
  %576 = vmatpush1.msra.mxu0 0.0
  %577 = vmatprep.subr.mxu0 0.0
  %578 = vmatpush1.msra.mxu0 %v425
  %579 = vmatprep.subr.mxu0 0.0
  %580 = vmatpush1.msra.mxu0 %v422
  %581 = vmatprep.subr.mxu0 0.0
  %582 = vmatpush2.msra.mxu0 0.0
  %583 = vmatprep.subr.mxu0 0.0
  %584 = vmatpush2.msra.mxu0 0.0
  %585 = vmatprep.subr.mxu0 0.0
  %586 = vmatpush2.msra.mxu0 0.0
  %587 = vmatprep.subr.mxu0 0.0
  %588 = vmatpush2.msra.mxu0 0.0
  %589 = vmatprep.subr.mxu0 0.0
  %590 = vmatpush2.msra.mxu0 0.0
  %591 = vmatprep.subr.mxu0 0.0
  %592 = vmatpush2.msra.mxu0 0.0
  %593 = vmatprep.subr.mxu0 0.0
  %594 = vmatpush2.msra.mxu0 0.0
  %595 = vmatprep.subr.mxu0 0.0
  %596 = vmatpush2.msra.mxu0 0.0
  %597 = vmatprep.subr.mxu0 0.0
  %598 = vmatpush2.msra.mxu0 0.0
  %599 = vmatprep.subr.mxu0 0.0
  %600 = vmatpush2.msra.mxu0 0.0
  %601 = vmatprep.subr.mxu0 0.0
  %602 = vmatpush2.msra.mxu0 0.0
  %603 = vmatprep.subr.mxu0 0.0
  %604 = vmatpush2.msra.mxu0 0.0
  %605 = vmatprep.subr.mxu0 0.0
  %606 = vmatpush2.msra.mxu0 0.0
  %607 = vmatprep.subr.mxu0 0.0
  %608 = vmatpush2.msra.mxu0 0.0
  %609 = vmatprep.subr.mxu0 0.0
  %610 = vmatpush2.msra.mxu0 0.0
  %611 = vmatprep.subr.mxu0 0.0
  %612 = vmatpush2.msra.mxu0 0.0
  %613 = vmatprep.mubr.f32.mxu0 0.0
  %614 = vmatmul.mubr.f32.gmra.mxu0 %v544
  %v615 = vpop.f32.mrf.mxu0
  %v616 = vadd.f32 0.0, %v615
  %v617 = vpop.f32.mrf.mxu0
  %618 = vmatprep.mubr.f32.mxu0 0.0
  %619 = vmatmul.mubr.f32.gmra.mxu0 %v547
  %v620 = vpop.f32.mrf.mxu0
  %v621 = vadd.f32 0.0, %v620
  %v622 = vpop.f32.mrf.mxu0
  %623 = vdwg.mxu0
  %s624 = scalar_lea.vmem %s6, 16
  %v625 = vld [vmem:[%s624] sm:$0xf]
  %v626 = vld [vmem:[%s624 + $0x4] sm:$0xf]
  %v627 = vld [vmem:[%s624 + $0x8] sm:$0xf]
  %v628 = vld [vmem:[%s624 + $0xc] sm:$0xf]
  %s629 = scalar_lea.vmem %s7, 1
  %v630 = vld [vmem:[%s629] sm:$0x1]
  %v632 = vlaneseq
  %v633 = vshrl.u32 %v632, 7
  %v634 = vsub.s32 0, %v633
  %v635 = vrot.slane %v630, %v634
  %v641 = vunpack.c.l.b16 %v625
  %v642 = vunpack.c.l.b16 %v626
  %v643 = vunpack.c.l.b16 %v627
  %v644 = vunpack.c.l.b16 %v628
  %v645 = vpack.c.b16 %v642, %v641
  %v646 = vpack.c.b16 %v644, %v643
  %649 = vmatprep.subr.bf16.mxu0 0
  %650 = vmatpush1.bf16.msra.mxu0 0
  %651 = vmatprep.subr.bf16.mxu0 0
  %652 = vmatpush1.bf16.msra.mxu0 0
  %653 = vmatprep.subr.bf16.mxu0 0
  %654 = vmatpush1.bf16.msra.mxu0 0
  %655 = vmatprep.subr.bf16.mxu0 0
  %656 = vmatpush1.bf16.msra.mxu0 0
  %657 = vmatprep.subr.bf16.mxu0 0
  %658 = vmatpush1.bf16.msra.mxu0 0
  %659 = vmatprep.subr.bf16.mxu0 0
  %660 = vmatpush1.bf16.msra.mxu0 0
  %661 = vmatprep.subr.bf16.mxu0 0
  %662 = vmatpush1.bf16.msra.mxu0 %v646
  %663 = vmatprep.subr.bf16.mxu0 0
  %664 = vmatpush1.bf16.msra.mxu0 %v645
  %665 = vmatprep.subr.bf16.mxu0 0
  %666 = vmatpush2.bf16.msra.mxu0 0
  %667 = vmatprep.subr.bf16.mxu0 0
  %668 = vmatpush2.bf16.msra.mxu0 0
  %669 = vmatprep.subr.bf16.mxu0 0
  %670 = vmatpush2.bf16.msra.mxu0 0
  %671 = vmatprep.subr.bf16.mxu0 0
  %672 = vmatpush2.bf16.msra.mxu0 0
  %673 = vmatprep.subr.bf16.mxu0 0
  %674 = vmatpush2.bf16.msra.mxu0 0
  %675 = vmatprep.subr.bf16.mxu0 0
  %676 = vmatpush2.bf16.msra.mxu0 0
  %677 = vmatprep.subr.bf16.mxu0 0
  %678 = vmatpush2.bf16.msra.mxu0 0
  %679 = vmatprep.subr.bf16.mxu0 0
  %680 = vmatpush2.bf16.msra.mxu0 0
  %681 = vmatprep.mubr.bf16.mxu0 0
  %682 = vmatmul.mubr.bf16.gmra.mxu0 %v257
  %v683 = vpop.f32.mrf.mxu0
  %v684 = vadd.f32 %v635, %v683
  %v685 = vpop.f32.mrf.mxu0
  %v686 = vpop.f32.mrf.mxu0
  %v687 = vadd.f32 %v635, %v686
  %v688 = vpop.f32.mrf.mxu0
  %689 = vdwg.mxu0
  %s690 = scalar_lea.vmem %s8, 16
  %v691 = vld [vmem:[%s690] sm:$0xf]
  %v692 = vld [vmem:[%s690 + $0x4] sm:$0xf]
  %v693 = vld [vmem:[%s690 + $0x8] sm:$0xf]
  %v694 = vld [vmem:[%s690 + $0xc] sm:$0xf]
  %s695 = scalar_lea.vmem %s9, 1
  %v696 = vld [vmem:[%s695] sm:$0x1]
  %v698 = vlaneseq
  %v699 = vshrl.u32 %v698, 7
  %v700 = vsub.s32 0, %v699
  %v701 = vrot.slane %v696, %v700
  %v707 = vunpack.c.l.b16 %v691
  %v708 = vunpack.c.l.b16 %v692
  %v709 = vunpack.c.l.b16 %v693
  %v710 = vunpack.c.l.b16 %v694
  %v711 = vpack.c.b16 %v708, %v707
  %v712 = vpack.c.b16 %v710, %v709
  %715 = vmatprep.subr.bf16.mxu0 0
  %716 = vmatpush1.bf16.msra.mxu0 0
  %717 = vmatprep.subr.bf16.mxu0 0
  %718 = vmatpush1.bf16.msra.mxu0 0
  %719 = vmatprep.subr.bf16.mxu0 0
  %720 = vmatpush1.bf16.msra.mxu0 0
  %721 = vmatprep.subr.bf16.mxu0 0
  %722 = vmatpush1.bf16.msra.mxu0 0
  %723 = vmatprep.subr.bf16.mxu0 0
  %724 = vmatpush1.bf16.msra.mxu0 0
  %725 = vmatprep.subr.bf16.mxu0 0
  %726 = vmatpush1.bf16.msra.mxu0 0
  %727 = vmatprep.subr.bf16.mxu0 0
  %728 = vmatpush1.bf16.msra.mxu0 %v712
  %729 = vmatprep.subr.bf16.mxu0 0
  %730 = vmatpush1.bf16.msra.mxu0 %v711
  %731 = vmatprep.subr.bf16.mxu0 0
  %732 = vmatpush2.bf16.msra.mxu0 0
  %733 = vmatprep.subr.bf16.mxu0 0
  %734 = vmatpush2.bf16.msra.mxu0 0
  %735 = vmatprep.subr.bf16.mxu0 0
  %736 = vmatpush2.bf16.msra.mxu0 0
  %737 = vmatprep.subr.bf16.mxu0 0
  %738 = vmatpush2.bf16.msra.mxu0 0
  %739 = vmatprep.subr.bf16.mxu0 0
  %740 = vmatpush2.bf16.msra.mxu0 0
  %741 = vmatprep.subr.bf16.mxu0 0
  %742 = vmatpush2.bf16.msra.mxu0 0
  %743 = vmatprep.subr.bf16.mxu0 0
  %744 = vmatpush2.bf16.msra.mxu0 0
  %745 = vmatprep.subr.bf16.mxu0 0
  %746 = vmatpush2.bf16.msra.mxu0 0
  %747 = vmatprep.mubr.bf16.mxu0 0
  %748 = vmatmul.mubr.bf16.gmra.mxu0 %v257
  %v749 = vpop.f32.mrf.mxu0
  %v750 = vadd.f32 %v701, %v749
  %v751 = vpop.f32.mrf.mxu0
  %v752 = vpop.f32.mrf.mxu0
  %v753 = vadd.f32 %v701, %v752
  %v754 = vpop.f32.mrf.mxu0
  %755 = vdwg.mxu0
  %s756 = scalar_lea.vmem %s10, 16
  %v757 = vld [vmem:[%s756] sm:$0xf]
  %v758 = vld [vmem:[%s756 + $0x4] sm:$0xf]
  %v759 = vld [vmem:[%s756 + $0x8] sm:$0xf]
  %v760 = vld [vmem:[%s756 + $0xc] sm:$0xf]
  %s761 = scalar_lea.vmem %s11, 1
  %v762 = vld [vmem:[%s761] sm:$0x1]
  %v764 = vlaneseq
  %v765 = vshrl.u32 %v764, 7
  %v766 = vsub.s32 0, %v765
  %v767 = vrot.slane %v762, %v766
  %v773 = vunpack.c.l.b16 %v757
  %v774 = vunpack.c.l.b16 %v758
  %v775 = vunpack.c.l.b16 %v759
  %v776 = vunpack.c.l.b16 %v760
  %v777 = vpack.c.b16 %v774, %v773
  %v778 = vpack.c.b16 %v776, %v775
  %781 = vmatprep.subr.bf16.mxu0 0
  %782 = vmatpush1.bf16.msra.mxu0 0
  %783 = vmatprep.subr.bf16.mxu0 0
  %784 = vmatpush1.bf16.msra.mxu0 0
  %785 = vmatprep.subr.bf16.mxu0 0
  %786 = vmatpush1.bf16.msra.mxu0 0
  %787 = vmatprep.subr.bf16.mxu0 0
  %788 = vmatpush1.bf16.msra.mxu0 0
  %789 = vmatprep.subr.bf16.mxu0 0
  %790 = vmatpush1.bf16.msra.mxu0 0
  %791 = vmatprep.subr.bf16.mxu0 0
  %792 = vmatpush1.bf16.msra.mxu0 0
  %793 = vmatprep.subr.bf16.mxu0 0
  %794 = vmatpush1.bf16.msra.mxu0 %v778
  %795 = vmatprep.subr.bf16.mxu0 0
  %796 = vmatpush1.bf16.msra.mxu0 %v777
  %797 = vmatprep.subr.bf16.mxu0 0
  %798 = vmatpush2.bf16.msra.mxu0 0
  %799 = vmatprep.subr.bf16.mxu0 0
  %800 = vmatpush2.bf16.msra.mxu0 0
  %801 = vmatprep.subr.bf16.mxu0 0
  %802 = vmatpush2.bf16.msra.mxu0 0
  %803 = vmatprep.subr.bf16.mxu0 0
  %804 = vmatpush2.bf16.msra.mxu0 0
  %805 = vmatprep.subr.bf16.mxu0 0
  %806 = vmatpush2.bf16.msra.mxu0 0
  %807 = vmatprep.subr.bf16.mxu0 0
  %808 = vmatpush2.bf16.msra.mxu0 0
  %809 = vmatprep.subr.bf16.mxu0 0
  %810 = vmatpush2.bf16.msra.mxu0 0
  %811 = vmatprep.subr.bf16.mxu0 0
  %812 = vmatpush2.bf16.msra.mxu0 0
  %813 = vmatprep.mubr.bf16.mxu0 0
  %814 = vmatmul.mubr.bf16.gmra.mxu0 %v257
  %v815 = vpop.f32.mrf.mxu0
  %v816 = vadd.f32 %v767, %v815
  %v817 = vpop.f32.mrf.mxu0
  %v818 = vpop.f32.mrf.mxu0
  %v819 = vadd.f32 %v767, %v818
  %v820 = vpop.f32.mrf.mxu0
  %821 = vdwg.mxu0
  %v823 = vsel %vm428, %v684, 0
  %v826 = vsel %vm428, %v687, 0
  %v829 = vsel %vm428, %v750, 0
  %v832 = vsel %vm428, %v753, 0
  %834 = vmatprep.subr.mxu0 0.0
  %835 = vmatpush1.xpose.msra.mxu0 0.0
  %836 = vmatprep.subr.mxu0 0.0
  %837 = vmatpush1.xpose.msra.mxu0 0.0
  %838 = vmatprep.subr.mxu0 0.0
  %839 = vmatpush1.xpose.msra.mxu0 0.0
  %840 = vmatprep.subr.mxu0 0.0
  %841 = vmatpush1.xpose.msra.mxu0 0.0
  %842 = vmatprep.subr.mxu0 0.0
  %843 = vmatpush1.xpose.msra.mxu0 0.0
  %844 = vmatprep.subr.mxu0 0.0
  %845 = vmatpush1.xpose.msra.mxu0 0.0
  %846 = vmatprep.subr.mxu0 0.0
  %847 = vmatpush1.xpose.msra.mxu0 0.0
  %848 = vmatprep.subr.mxu0 0.0
  %849 = vmatpush1.xpose.msra.mxu0 0.0
  %850 = vmatprep.subr.mxu0 0.0
  %851 = vmatpush1.xpose.msra.mxu0 0.0
  %852 = vmatprep.subr.mxu0 0.0
  %853 = vmatpush1.xpose.msra.mxu0 0.0
  %854 = vmatprep.subr.mxu0 0.0
  %855 = vmatpush1.xpose.msra.mxu0 0.0
  %856 = vmatprep.subr.mxu0 0.0
  %857 = vmatpush1.xpose.msra.mxu0 0.0
  %858 = vmatprep.subr.mxu0 0.0
  %859 = vmatpush1.xpose.msra.mxu0 0.0
  %860 = vmatprep.subr.mxu0 0.0
  %861 = vmatpush1.xpose.msra.mxu0 0.0
  %862 = vmatprep.subr.mxu0 0.0
  %863 = vmatpush1.xpose.msra.mxu0 %v832
  %864 = vmatprep.subr.mxu0 0.0
  %865 = vmatpush1.xpose.msra.mxu0 %v829
  %866 = vmatprep.subr.mxu0 0.0
  %867 = vmatpush2.xpose.msra.mxu0 0.0
  %868 = vmatprep.subr.mxu0 0.0
  %869 = vmatpush2.xpose.msra.mxu0 0.0
  %870 = vmatprep.subr.mxu0 0.0
  %871 = vmatpush2.xpose.msra.mxu0 0.0
  %872 = vmatprep.subr.mxu0 0.0
  %873 = vmatpush2.xpose.msra.mxu0 0.0
  %874 = vmatprep.subr.mxu0 0.0
  %875 = vmatpush2.xpose.msra.mxu0 0.0
  %876 = vmatprep.subr.mxu0 0.0
  %877 = vmatpush2.xpose.msra.mxu0 0.0
  %878 = vmatprep.subr.mxu0 0.0
  %879 = vmatpush2.xpose.msra.mxu0 0.0
  %880 = vmatprep.subr.mxu0 0.0
  %881 = vmatpush2.xpose.msra.mxu0 0.0
  %882 = vmatprep.subr.mxu0 0.0
  %883 = vmatpush2.xpose.msra.mxu0 0.0
  %884 = vmatprep.subr.mxu0 0.0
  %885 = vmatpush2.xpose.msra.mxu0 0.0
  %886 = vmatprep.subr.mxu0 0.0
  %887 = vmatpush2.xpose.msra.mxu0 0.0
  %888 = vmatprep.subr.mxu0 0.0
  %889 = vmatpush2.xpose.msra.mxu0 0.0
  %890 = vmatprep.subr.mxu0 0.0
  %891 = vmatpush2.xpose.msra.mxu0 0.0
  %892 = vmatprep.subr.mxu0 0.0
  %893 = vmatpush2.xpose.msra.mxu0 0.0
  %894 = vmatprep.subr.mxu0 0.0
  %895 = vmatpush2.xpose.msra.mxu0 0.0
  %896 = vmatprep.subr.mxu0 0.0
  %897 = vmatpush2.xpose.msra.mxu0 0.0
  %898 = vmatprep.mubr.f32.mxu0 0.0
  %899 = vmatmul.mubr.f32.gmra.mxu0 %v823
  %v900 = vpop.f32.mrf.mxu0
  %v901 = vadd.f32 0.0, %v900
  %v902 = vpop.f32.mrf.mxu0
  %903 = vmatprep.mubr.f32.mxu0 0.0
  %904 = vmatmul.mubr.f32.gmra.mxu0 %v826
  %v905 = vpop.f32.mrf.mxu0
  %v906 = vadd.f32 0.0, %v905
  %v907 = vpop.f32.mrf.mxu0
  %908 = vdwg.mxu0
  %v909 = vmul.f32 %v901, 0.35355338
  %v910 = vmul.f32 %v906, 0.35355338
  %v911 = vadd.f32 %v909, %v184
  %v912 = vadd.f32 %v910, %v185
  %v913 = vsel %vm520, %v911, -inf
  %914 = vmax.xlane.f32.xlu0 %v913
  %v915 = vpop.xlane.xlu0 %914
  %v916 = vsel %vm520, %v912, -inf
  %917 = vmax.xlane.f32.xlu0 %v916
  %v918 = vpop.xlane.xlu0 %917
  %v919 = vsub.f32 %v911, %v915
  %v920 = vsub.f32 %v912, %v918
  %v921 = vmul.f32 %v919, 1.442695
  %v922 = vpow.pop %v921
  %v923 = vmul.f32 %v920, 1.442695
  %v924 = vpow.pop %v923
  %v925 = vsel %vm520, %v922, 0.0
  %926 = vadd.xlane.f32.xlu0 %v925
  %v927 = vpop.xlane.xlu0 %926
  %v928 = vsel %vm520, %v924, 0.0
  %929 = vadd.xlane.f32.xlu0 %v928
  %v930 = vpop.xlane.xlu0 %929
  %v931 = vrcp.pop %v927
  %v932 = vrcp.pop %v930
  %v933 = vmul.f32 %v922, %v931
  %v934 = vmul.f32 %v924, %v932
  %v936 = vsel %vm520, %v933, 0
  %v939 = vsel %vm520, %v934, 0
  %941 = vmatprep.subr.mxu0 0.0
  %942 = vmatpush1.msra.mxu0 0.0
  %943 = vmatprep.subr.mxu0 0.0
  %944 = vmatpush1.msra.mxu0 0.0
  %945 = vmatprep.subr.mxu0 0.0
  %946 = vmatpush1.msra.mxu0 0.0
  %947 = vmatprep.subr.mxu0 0.0
  %948 = vmatpush1.msra.mxu0 0.0
  %949 = vmatprep.subr.mxu0 0.0
  %950 = vmatpush1.msra.mxu0 0.0
  %951 = vmatprep.subr.mxu0 0.0
  %952 = vmatpush1.msra.mxu0 0.0
  %953 = vmatprep.subr.mxu0 0.0
  %954 = vmatpush1.msra.mxu0 0.0
  %955 = vmatprep.subr.mxu0 0.0
  %956 = vmatpush1.msra.mxu0 0.0
  %957 = vmatprep.subr.mxu0 0.0
  %958 = vmatpush1.msra.mxu0 0.0
  %959 = vmatprep.subr.mxu0 0.0
  %960 = vmatpush1.msra.mxu0 0.0
  %961 = vmatprep.subr.mxu0 0.0
  %962 = vmatpush1.msra.mxu0 0.0
  %963 = vmatprep.subr.mxu0 0.0
  %964 = vmatpush1.msra.mxu0 0.0
  %965 = vmatprep.subr.mxu0 0.0
  %966 = vmatpush1.msra.mxu0 0.0
  %967 = vmatprep.subr.mxu0 0.0
  %968 = vmatpush1.msra.mxu0 0.0
  %969 = vmatprep.subr.mxu0 0.0
  %970 = vmatpush1.msra.mxu0 %v819
  %971 = vmatprep.subr.mxu0 0.0
  %972 = vmatpush1.msra.mxu0 %v816
  %973 = vmatprep.subr.mxu0 0.0
  %974 = vmatpush2.msra.mxu0 0.0
  %975 = vmatprep.subr.mxu0 0.0
  %976 = vmatpush2.msra.mxu0 0.0
  %977 = vmatprep.subr.mxu0 0.0
  %978 = vmatpush2.msra.mxu0 0.0
  %979 = vmatprep.subr.mxu0 0.0
  %980 = vmatpush2.msra.mxu0 0.0
  %981 = vmatprep.subr.mxu0 0.0
  %982 = vmatpush2.msra.mxu0 0.0
  %983 = vmatprep.subr.mxu0 0.0
  %984 = vmatpush2.msra.mxu0 0.0
  %985 = vmatprep.subr.mxu0 0.0
  %986 = vmatpush2.msra.mxu0 0.0
  %987 = vmatprep.subr.mxu0 0.0
  %988 = vmatpush2.msra.mxu0 0.0
  %989 = vmatprep.subr.mxu0 0.0
  %990 = vmatpush2.msra.mxu0 0.0
  %991 = vmatprep.subr.mxu0 0.0
  %992 = vmatpush2.msra.mxu0 0.0
  %993 = vmatprep.subr.mxu0 0.0
  %994 = vmatpush2.msra.mxu0 0.0
  %995 = vmatprep.subr.mxu0 0.0
  %996 = vmatpush2.msra.mxu0 0.0
  %997 = vmatprep.subr.mxu0 0.0
  %998 = vmatpush2.msra.mxu0 0.0
  %999 = vmatprep.subr.mxu0 0.0
  %1000 = vmatpush2.msra.mxu0 0.0
  %1001 = vmatprep.subr.mxu0 0.0
  %1002 = vmatpush2.msra.mxu0 0.0
  %1003 = vmatprep.subr.mxu0 0.0
  %1004 = vmatpush2.msra.mxu0 0.0
  %1005 = vmatprep.mubr.f32.mxu0 0.0
  %1006 = vmatmul.mubr.f32.gmra.mxu0 %v936
  %v1007 = vpop.f32.mrf.mxu0
  %v1008 = vadd.f32 0.0, %v1007
  %v1009 = vpop.f32.mrf.mxu0
  %1010 = vmatprep.mubr.f32.mxu0 0.0
  %1011 = vmatmul.mubr.f32.gmra.mxu0 %v939
  %v1012 = vpop.f32.mrf.mxu0
  %v1013 = vadd.f32 0.0, %v1012
  %v1014 = vpop.f32.mrf.mxu0
  %1015 = vdwg.mxu0
  %s1016 = scalar_lea.vmem %s6, 32
  %v1017 = vld [vmem:[%s1016] sm:$0xf]
  %v1018 = vld [vmem:[%s1016 + $0x4] sm:$0xf]
  %v1019 = vld [vmem:[%s1016 + $0x8] sm:$0xf]
  %v1020 = vld [vmem:[%s1016 + $0xc] sm:$0xf]
  %s1021 = scalar_lea.vmem %s7, 2
  %v1022 = vld [vmem:[%s1021] sm:$0x1]
  %v1024 = vlaneseq
  %v1025 = vshrl.u32 %v1024, 7
  %v1026 = vsub.s32 0, %v1025
  %v1027 = vrot.slane %v1022, %v1026
  %v1033 = vunpack.c.l.b16 %v1017
  %v1034 = vunpack.c.l.b16 %v1018
  %v1035 = vunpack.c.l.b16 %v1019
  %v1036 = vunpack.c.l.b16 %v1020
  %v1037 = vpack.c.b16 %v1034, %v1033
  %v1038 = vpack.c.b16 %v1036, %v1035
  %1041 = vmatprep.subr.bf16.mxu0 0
  %1042 = vmatpush1.bf16.msra.mxu0 0
  %1043 = vmatprep.subr.bf16.mxu0 0
  %1044 = vmatpush1.bf16.msra.mxu0 0
  %1045 = vmatprep.subr.bf16.mxu0 0
  %1046 = vmatpush1.bf16.msra.mxu0 0
  %1047 = vmatprep.subr.bf16.mxu0 0
  %1048 = vmatpush1.bf16.msra.mxu0 0
  %1049 = vmatprep.subr.bf16.mxu0 0
  %1050 = vmatpush1.bf16.msra.mxu0 0
  %1051 = vmatprep.subr.bf16.mxu0 0
  %1052 = vmatpush1.bf16.msra.mxu0 0
  %1053 = vmatprep.subr.bf16.mxu0 0
  %1054 = vmatpush1.bf16.msra.mxu0 %v1038
  %1055 = vmatprep.subr.bf16.mxu0 0
  %1056 = vmatpush1.bf16.msra.mxu0 %v1037
  %1057 = vmatprep.subr.bf16.mxu0 0
  %1058 = vmatpush2.bf16.msra.mxu0 0
  %1059 = vmatprep.subr.bf16.mxu0 0
  %1060 = vmatpush2.bf16.msra.mxu0 0
  %1061 = vmatprep.subr.bf16.mxu0 0
  %1062 = vmatpush2.bf16.msra.mxu0 0
  %1063 = vmatprep.subr.bf16.mxu0 0
  %1064 = vmatpush2.bf16.msra.mxu0 0
  %1065 = vmatprep.subr.bf16.mxu0 0
  %1066 = vmatpush2.bf16.msra.mxu0 0
  %1067 = vmatprep.subr.bf16.mxu0 0
  %1068 = vmatpush2.bf16.msra.mxu0 0
  %1069 = vmatprep.subr.bf16.mxu0 0
  %1070 = vmatpush2.bf16.msra.mxu0 0
  %1071 = vmatprep.subr.bf16.mxu0 0
  %1072 = vmatpush2.bf16.msra.mxu0 0
  %1073 = vmatprep.mubr.bf16.mxu0 0
  %1074 = vmatmul.mubr.bf16.gmra.mxu0 %v257
  %v1075 = vpop.f32.mrf.mxu0
  %v1076 = vadd.f32 %v1027, %v1075
  %v1077 = vpop.f32.mrf.mxu0
  %v1078 = vpop.f32.mrf.mxu0
  %v1079 = vadd.f32 %v1027, %v1078
  %v1080 = vpop.f32.mrf.mxu0
  %1081 = vdwg.mxu0
  %s1082 = scalar_lea.vmem %s8, 32
  %v1083 = vld [vmem:[%s1082] sm:$0xf]
  %v1084 = vld [vmem:[%s1082 + $0x4] sm:$0xf]
  %v1085 = vld [vmem:[%s1082 + $0x8] sm:$0xf]
  %v1086 = vld [vmem:[%s1082 + $0xc] sm:$0xf]
  %s1087 = scalar_lea.vmem %s9, 2
  %v1088 = vld [vmem:[%s1087] sm:$0x1]
  %v1090 = vlaneseq
  %v1091 = vshrl.u32 %v1090, 7
  %v1092 = vsub.s32 0, %v1091
  %v1093 = vrot.slane %v1088, %v1092
  %v1099 = vunpack.c.l.b16 %v1083
  %v1100 = vunpack.c.l.b16 %v1084
  %v1101 = vunpack.c.l.b16 %v1085
  %v1102 = vunpack.c.l.b16 %v1086
  %v1103 = vpack.c.b16 %v1100, %v1099
  %v1104 = vpack.c.b16 %v1102, %v1101
  %1107 = vmatprep.subr.bf16.mxu0 0
  %1108 = vmatpush1.bf16.msra.mxu0 0
  %1109 = vmatprep.subr.bf16.mxu0 0
  %1110 = vmatpush1.bf16.msra.mxu0 0
  %1111 = vmatprep.subr.bf16.mxu0 0
  %1112 = vmatpush1.bf16.msra.mxu0 0
  %1113 = vmatprep.subr.bf16.mxu0 0
  %1114 = vmatpush1.bf16.msra.mxu0 0
  %1115 = vmatprep.subr.bf16.mxu0 0
  %1116 = vmatpush1.bf16.msra.mxu0 0
  %1117 = vmatprep.subr.bf16.mxu0 0
  %1118 = vmatpush1.bf16.msra.mxu0 0
  %1119 = vmatprep.subr.bf16.mxu0 0
  %1120 = vmatpush1.bf16.msra.mxu0 %v1104
  %1121 = vmatprep.subr.bf16.mxu0 0
  %1122 = vmatpush1.bf16.msra.mxu0 %v1103
  %1123 = vmatprep.subr.bf16.mxu0 0
  %1124 = vmatpush2.bf16.msra.mxu0 0
  %1125 = vmatprep.subr.bf16.mxu0 0
  %1126 = vmatpush2.bf16.msra.mxu0 0
  %1127 = vmatprep.subr.bf16.mxu0 0
  %1128 = vmatpush2.bf16.msra.mxu0 0
  %1129 = vmatprep.subr.bf16.mxu0 0
  %1130 = vmatpush2.bf16.msra.mxu0 0
  %1131 = vmatprep.subr.bf16.mxu0 0
  %1132 = vmatpush2.bf16.msra.mxu0 0
  %1133 = vmatprep.subr.bf16.mxu0 0
  %1134 = vmatpush2.bf16.msra.mxu0 0
  %1135 = vmatprep.subr.bf16.mxu0 0
  %1136 = vmatpush2.bf16.msra.mxu0 0
  %1137 = vmatprep.subr.bf16.mxu0 0
  %1138 = vmatpush2.bf16.msra.mxu0 0
  %1139 = vmatprep.mubr.bf16.mxu0 0
  %1140 = vmatmul.mubr.bf16.gmra.mxu0 %v257
  %v1141 = vpop.f32.mrf.mxu0
  %v1142 = vadd.f32 %v1093, %v1141
  %v1143 = vpop.f32.mrf.mxu0
  %v1144 = vpop.f32.mrf.mxu0
  %v1145 = vadd.f32 %v1093, %v1144
  %v1146 = vpop.f32.mrf.mxu0
  %1147 = vdwg.mxu0
  %s1148 = scalar_lea.vmem %s10, 32
  %v1149 = vld [vmem:[%s1148] sm:$0xf]
  %v1150 = vld [vmem:[%s1148 + $0x4] sm:$0xf]
  %v1151 = vld [vmem:[%s1148 + $0x8] sm:$0xf]
  %v1152 = vld [vmem:[%s1148 + $0xc] sm:$0xf]
  %s1153 = scalar_lea.vmem %s11, 2
  %v1154 = vld [vmem:[%s1153] sm:$0x1]
  %v1156 = vlaneseq
  %v1157 = vshrl.u32 %v1156, 7
  %v1158 = vsub.s32 0, %v1157
  %v1159 = vrot.slane %v1154, %v1158
  %v1165 = vunpack.c.l.b16 %v1149
  %v1166 = vunpack.c.l.b16 %v1150
  %v1167 = vunpack.c.l.b16 %v1151
  %v1168 = vunpack.c.l.b16 %v1152
  %v1169 = vpack.c.b16 %v1166, %v1165
  %v1170 = vpack.c.b16 %v1168, %v1167
  %1173 = vmatprep.subr.bf16.mxu0 0
  %1174 = vmatpush1.bf16.msra.mxu0 0
  %1175 = vmatprep.subr.bf16.mxu0 0
  %1176 = vmatpush1.bf16.msra.mxu0 0
  %1177 = vmatprep.subr.bf16.mxu0 0
  %1178 = vmatpush1.bf16.msra.mxu0 0
  %1179 = vmatprep.subr.bf16.mxu0 0
  %1180 = vmatpush1.bf16.msra.mxu0 0
  %1181 = vmatprep.subr.bf16.mxu0 0
  %1182 = vmatpush1.bf16.msra.mxu0 0
  %1183 = vmatprep.subr.bf16.mxu0 0
  %1184 = vmatpush1.bf16.msra.mxu0 0
  %1185 = vmatprep.subr.bf16.mxu0 0
  %1186 = vmatpush1.bf16.msra.mxu0 %v1170
  %1187 = vmatprep.subr.bf16.mxu0 0
  %1188 = vmatpush1.bf16.msra.mxu0 %v1169
  %1189 = vmatprep.subr.bf16.mxu0 0
  %1190 = vmatpush2.bf16.msra.mxu0 0
  %1191 = vmatprep.subr.bf16.mxu0 0
  %1192 = vmatpush2.bf16.msra.mxu0 0
  %1193 = vmatprep.subr.bf16.mxu0 0
  %1194 = vmatpush2.bf16.msra.mxu0 0
  %1195 = vmatprep.subr.bf16.mxu0 0
  %1196 = vmatpush2.bf16.msra.mxu0 0
  %1197 = vmatprep.subr.bf16.mxu0 0
  %1198 = vmatpush2.bf16.msra.mxu0 0
  %1199 = vmatprep.subr.bf16.mxu0 0
  %1200 = vmatpush2.bf16.msra.mxu0 0
  %1201 = vmatprep.subr.bf16.mxu0 0
  %1202 = vmatpush2.bf16.msra.mxu0 0
  %1203 = vmatprep.subr.bf16.mxu0 0
  %1204 = vmatpush2.bf16.msra.mxu0 0
  %1205 = vmatprep.mubr.bf16.mxu0 0
  %1206 = vmatmul.mubr.bf16.gmra.mxu0 %v257
  %v1207 = vpop.f32.mrf.mxu0
  %v1208 = vadd.f32 %v1159, %v1207
  %v1209 = vpop.f32.mrf.mxu0
  %v1210 = vpop.f32.mrf.mxu0
  %v1211 = vadd.f32 %v1159, %v1210
  %v1212 = vpop.f32.mrf.mxu0
  %1213 = vdwg.mxu0
  %v1215 = vsel %vm428, %v1076, 0
  %v1218 = vsel %vm428, %v1079, 0
  %v1221 = vsel %vm428, %v1142, 0
  %v1224 = vsel %vm428, %v1145, 0
  %1226 = vmatprep.subr.mxu0 0.0
  %1227 = vmatpush1.xpose.msra.mxu0 0.0
  %1228 = vmatprep.subr.mxu0 0.0
  %1229 = vmatpush1.xpose.msra.mxu0 0.0
  %1230 = vmatprep.subr.mxu0 0.0
  %1231 = vmatpush1.xpose.msra.mxu0 0.0
  %1232 = vmatprep.subr.mxu0 0.0
  %1233 = vmatpush1.xpose.msra.mxu0 0.0
  %1234 = vmatprep.subr.mxu0 0.0
  %1235 = vmatpush1.xpose.msra.mxu0 0.0
  %1236 = vmatprep.subr.mxu0 0.0
  %1237 = vmatpush1.xpose.msra.mxu0 0.0
  %1238 = vmatprep.subr.mxu0 0.0
  %1239 = vmatpush1.xpose.msra.mxu0 0.0
  %1240 = vmatprep.subr.mxu0 0.0
  %1241 = vmatpush1.xpose.msra.mxu0 0.0
  %1242 = vmatprep.subr.mxu0 0.0
  %1243 = vmatpush1.xpose.msra.mxu0 0.0
  %1244 = vmatprep.subr.mxu0 0.0
  %1245 = vmatpush1.xpose.msra.mxu0 0.0
  %1246 = vmatprep.subr.mxu0 0.0
  %1247 = vmatpush1.xpose.msra.mxu0 0.0
  %1248 = vmatprep.subr.mxu0 0.0
  %1249 = vmatpush1.xpose.msra.mxu0 0.0
  %1250 = vmatprep.subr.mxu0 0.0
  %1251 = vmatpush1.xpose.msra.mxu0 0.0
  %1252 = vmatprep.subr.mxu0 0.0
  %1253 = vmatpush1.xpose.msra.mxu0 0.0
  %1254 = vmatprep.subr.mxu0 0.0
  %1255 = vmatpush1.xpose.msra.mxu0 %v1224
  %1256 = vmatprep.subr.mxu0 0.0
  %1257 = vmatpush1.xpose.msra.mxu0 %v1221
  %1258 = vmatprep.subr.mxu0 0.0
  %1259 = vmatpush2.xpose.msra.mxu0 0.0
  %1260 = vmatprep.subr.mxu0 0.0
  %1261 = vmatpush2.xpose.msra.mxu0 0.0
  %1262 = vmatprep.subr.mxu0 0.0
  %1263 = vmatpush2.xpose.msra.mxu0 0.0
  %1264 = vmatprep.subr.mxu0 0.0
  %1265 = vmatpush2.xpose.msra.mxu0 0.0
  %1266 = vmatprep.subr.mxu0 0.0
  %1267 = vmatpush2.xpose.msra.mxu0 0.0
  %1268 = vmatprep.subr.mxu0 0.0
  %1269 = vmatpush2.xpose.msra.mxu0 0.0
  %1270 = vmatprep.subr.mxu0 0.0
  %1271 = vmatpush2.xpose.msra.mxu0 0.0
  %1272 = vmatprep.subr.mxu0 0.0
  %1273 = vmatpush2.xpose.msra.mxu0 0.0
  %1274 = vmatprep.subr.mxu0 0.0
  %1275 = vmatpush2.xpose.msra.mxu0 0.0
  %1276 = vmatprep.subr.mxu0 0.0
  %1277 = vmatpush2.xpose.msra.mxu0 0.0
  %1278 = vmatprep.subr.mxu0 0.0
  %1279 = vmatpush2.xpose.msra.mxu0 0.0
  %1280 = vmatprep.subr.mxu0 0.0
  %1281 = vmatpush2.xpose.msra.mxu0 0.0
  %1282 = vmatprep.subr.mxu0 0.0
  %1283 = vmatpush2.xpose.msra.mxu0 0.0
  %1284 = vmatprep.subr.mxu0 0.0
  %1285 = vmatpush2.xpose.msra.mxu0 0.0
  %1286 = vmatprep.subr.mxu0 0.0
  %1287 = vmatpush2.xpose.msra.mxu0 0.0
  %1288 = vmatprep.subr.mxu0 0.0
  %1289 = vmatpush2.xpose.msra.mxu0 0.0
  %1290 = vmatprep.mubr.f32.mxu0 0.0
  %1291 = vmatmul.mubr.f32.gmra.mxu0 %v1215
  %v1292 = vpop.f32.mrf.mxu0
  %v1293 = vadd.f32 0.0, %v1292
  %v1294 = vpop.f32.mrf.mxu0
  %1295 = vmatprep.mubr.f32.mxu0 0.0
  %1296 = vmatmul.mubr.f32.gmra.mxu0 %v1218
  %v1297 = vpop.f32.mrf.mxu0
  %v1298 = vadd.f32 0.0, %v1297
  %v1299 = vpop.f32.mrf.mxu0
  %1300 = vdwg.mxu0
  %v1301 = vmul.f32 %v1293, 0.35355338
  %v1302 = vmul.f32 %v1298, 0.35355338
  %v1303 = vadd.f32 %v1301, %v184
  %v1304 = vadd.f32 %v1302, %v185
  %v1305 = vsel %vm520, %v1303, -inf
  %1306 = vmax.xlane.f32.xlu0 %v1305
  %v1307 = vpop.xlane.xlu0 %1306
  %v1308 = vsel %vm520, %v1304, -inf
  %1309 = vmax.xlane.f32.xlu0 %v1308
  %v1310 = vpop.xlane.xlu0 %1309
  %v1311 = vsub.f32 %v1303, %v1307
  %v1312 = vsub.f32 %v1304, %v1310
  %v1313 = vmul.f32 %v1311, 1.442695
  %v1314 = vpow.pop %v1313
  %v1315 = vmul.f32 %v1312, 1.442695
  %v1316 = vpow.pop %v1315
  %v1317 = vsel %vm520, %v1314, 0.0
  %1318 = vadd.xlane.f32.xlu0 %v1317
  %v1319 = vpop.xlane.xlu0 %1318
  %v1320 = vsel %vm520, %v1316, 0.0
  %1321 = vadd.xlane.f32.xlu0 %v1320
  %v1322 = vpop.xlane.xlu0 %1321
  %v1323 = vrcp.pop %v1319
  %v1324 = vrcp.pop %v1322
  %v1325 = vmul.f32 %v1314, %v1323
  %v1326 = vmul.f32 %v1316, %v1324
  %v1328 = vsel %vm520, %v1325, 0
  %v1331 = vsel %vm520, %v1326, 0
  %1333 = vmatprep.subr.mxu0 0.0
  %1334 = vmatpush1.msra.mxu0 0.0
  %1335 = vmatprep.subr.mxu0 0.0
  %1336 = vmatpush1.msra.mxu0 0.0
  %1337 = vmatprep.subr.mxu0 0.0
  %1338 = vmatpush1.msra.mxu0 0.0
  %1339 = vmatprep.subr.mxu0 0.0
  %1340 = vmatpush1.msra.mxu0 0.0
  %1341 = vmatprep.subr.mxu0 0.0
  %1342 = vmatpush1.msra.mxu0 0.0
  %1343 = vmatprep.subr.mxu0 0.0
  %1344 = vmatpush1.msra.mxu0 0.0
  %1345 = vmatprep.subr.mxu0 0.0
  %1346 = vmatpush1.msra.mxu0 0.0
  %1347 = vmatprep.subr.mxu0 0.0
  %1348 = vmatpush1.msra.mxu0 0.0
  %1349 = vmatprep.subr.mxu0 0.0
  %1350 = vmatpush1.msra.mxu0 0.0
  %1351 = vmatprep.subr.mxu0 0.0
  %1352 = vmatpush1.msra.mxu0 0.0
  %1353 = vmatprep.subr.mxu0 0.0
  %1354 = vmatpush1.msra.mxu0 0.0
  %1355 = vmatprep.subr.mxu0 0.0
  %1356 = vmatpush1.msra.mxu0 0.0
  %1357 = vmatprep.subr.mxu0 0.0
  %1358 = vmatpush1.msra.mxu0 0.0
  %1359 = vmatprep.subr.mxu0 0.0
  %1360 = vmatpush1.msra.mxu0 0.0
  %1361 = vmatprep.subr.mxu0 0.0
  %1362 = vmatpush1.msra.mxu0 %v1211
  %1363 = vmatprep.subr.mxu0 0.0
  %1364 = vmatpush1.msra.mxu0 %v1208
  %1365 = vmatprep.subr.mxu0 0.0
  %1366 = vmatpush2.msra.mxu0 0.0
  %1367 = vmatprep.subr.mxu0 0.0
  %1368 = vmatpush2.msra.mxu0 0.0
  %1369 = vmatprep.subr.mxu0 0.0
  %1370 = vmatpush2.msra.mxu0 0.0
  %1371 = vmatprep.subr.mxu0 0.0
  %1372 = vmatpush2.msra.mxu0 0.0
  %1373 = vmatprep.subr.mxu0 0.0
  %1374 = vmatpush2.msra.mxu0 0.0
  %1375 = vmatprep.subr.mxu0 0.0
  %1376 = vmatpush2.msra.mxu0 0.0
  %1377 = vmatprep.subr.mxu0 0.0
  %1378 = vmatpush2.msra.mxu0 0.0
  %1379 = vmatprep.subr.mxu0 0.0
  %1380 = vmatpush2.msra.mxu0 0.0
  %1381 = vmatprep.subr.mxu0 0.0
  %1382 = vmatpush2.msra.mxu0 0.0
  %1383 = vmatprep.subr.mxu0 0.0
  %1384 = vmatpush2.msra.mxu0 0.0
  %1385 = vmatprep.subr.mxu0 0.0
  %1386 = vmatpush2.msra.mxu0 0.0
  %1387 = vmatprep.subr.mxu0 0.0
  %1388 = vmatpush2.msra.mxu0 0.0
  %1389 = vmatprep.subr.mxu0 0.0
  %1390 = vmatpush2.msra.mxu0 0.0
  %1391 = vmatprep.subr.mxu0 0.0
  %1392 = vmatpush2.msra.mxu0 0.0
  %1393 = vmatprep.subr.mxu0 0.0
  %1394 = vmatpush2.msra.mxu0 0.0
  %1395 = vmatprep.subr.mxu0 0.0
  %1396 = vmatpush2.msra.mxu0 0.0
  %1397 = vmatprep.mubr.f32.mxu0 0.0
  %1398 = vmatmul.mubr.f32.gmra.mxu0 %v1328
  %v1399 = vpop.f32.mrf.mxu0
  %v1400 = vadd.f32 0.0, %v1399
  %v1401 = vpop.f32.mrf.mxu0
  %1402 = vmatprep.mubr.f32.mxu0 0.0
  %1403 = vmatmul.mubr.f32.gmra.mxu0 %v1331
  %v1404 = vpop.f32.mrf.mxu0
  %v1405 = vadd.f32 0.0, %v1404
  %v1406 = vpop.f32.mrf.mxu0
  %1407 = vdwg.mxu0
  %s1408 = scalar_lea.vmem %s6, 48
  %v1409 = vld [vmem:[%s1408] sm:$0xf]
  %v1410 = vld [vmem:[%s1408 + $0x4] sm:$0xf]
  %v1411 = vld [vmem:[%s1408 + $0x8] sm:$0xf]
  %v1412 = vld [vmem:[%s1408 + $0xc] sm:$0xf]
  %s1413 = scalar_lea.vmem %s7, 3
  %v1414 = vld [vmem:[%s1413] sm:$0x1]
  %v1416 = vlaneseq
  %v1417 = vshrl.u32 %v1416, 7
  %v1418 = vsub.s32 0, %v1417
  %v1419 = vrot.slane %v1414, %v1418
  %v1425 = vunpack.c.l.b16 %v1409
  %v1426 = vunpack.c.l.b16 %v1410
  %v1427 = vunpack.c.l.b16 %v1411
  %v1428 = vunpack.c.l.b16 %v1412
  %v1429 = vpack.c.b16 %v1426, %v1425
  %v1430 = vpack.c.b16 %v1428, %v1427
  %1433 = vmatprep.subr.bf16.mxu0 0
  %1434 = vmatpush1.bf16.msra.mxu0 0
  %1435 = vmatprep.subr.bf16.mxu0 0
  %1436 = vmatpush1.bf16.msra.mxu0 0
  %1437 = vmatprep.subr.bf16.mxu0 0
  %1438 = vmatpush1.bf16.msra.mxu0 0
  %1439 = vmatprep.subr.bf16.mxu0 0
  %1440 = vmatpush1.bf16.msra.mxu0 0
  %1441 = vmatprep.subr.bf16.mxu0 0
  %1442 = vmatpush1.bf16.msra.mxu0 0
  %1443 = vmatprep.subr.bf16.mxu0 0
  %1444 = vmatpush1.bf16.msra.mxu0 0
  %1445 = vmatprep.subr.bf16.mxu0 0
  %1446 = vmatpush1.bf16.msra.mxu0 %v1430
  %1447 = vmatprep.subr.bf16.mxu0 0
  %1448 = vmatpush1.bf16.msra.mxu0 %v1429
  %1449 = vmatprep.subr.bf16.mxu0 0
  %1450 = vmatpush2.bf16.msra.mxu0 0
  %1451 = vmatprep.subr.bf16.mxu0 0
  %1452 = vmatpush2.bf16.msra.mxu0 0
  %1453 = vmatprep.subr.bf16.mxu0 0
  %1454 = vmatpush2.bf16.msra.mxu0 0
  %1455 = vmatprep.subr.bf16.mxu0 0
  %1456 = vmatpush2.bf16.msra.mxu0 0
  %1457 = vmatprep.subr.bf16.mxu0 0
  %1458 = vmatpush2.bf16.msra.mxu0 0
  %1459 = vmatprep.subr.bf16.mxu0 0
  %1460 = vmatpush2.bf16.msra.mxu0 0
  %1461 = vmatprep.subr.bf16.mxu0 0
  %1462 = vmatpush2.bf16.msra.mxu0 0
  %1463 = vmatprep.subr.bf16.mxu0 0
  %1464 = vmatpush2.bf16.msra.mxu0 0
  %1465 = vmatprep.mubr.bf16.mxu0 0
  %1466 = vmatmul.mubr.bf16.gmra.mxu0 %v257
  %v1467 = vpop.f32.mrf.mxu0
  %v1468 = vadd.f32 %v1419, %v1467
  %v1469 = vpop.f32.mrf.mxu0
  %v1470 = vpop.f32.mrf.mxu0
  %v1471 = vadd.f32 %v1419, %v1470
  %v1472 = vpop.f32.mrf.mxu0
  %1473 = vdwg.mxu0
  %s1474 = scalar_lea.vmem %s8, 48
  %v1475 = vld [vmem:[%s1474] sm:$0xf]
  %v1476 = vld [vmem:[%s1474 + $0x4] sm:$0xf]
  %v1477 = vld [vmem:[%s1474 + $0x8] sm:$0xf]
  %v1478 = vld [vmem:[%s1474 + $0xc] sm:$0xf]
  %s1479 = scalar_lea.vmem %s9, 3
  %v1480 = vld [vmem:[%s1479] sm:$0x1]
  %v1482 = vlaneseq
  %v1483 = vshrl.u32 %v1482, 7
  %v1484 = vsub.s32 0, %v1483
  %v1485 = vrot.slane %v1480, %v1484
  %v1491 = vunpack.c.l.b16 %v1475
  %v1492 = vunpack.c.l.b16 %v1476
  %v1493 = vunpack.c.l.b16 %v1477
  %v1494 = vunpack.c.l.b16 %v1478
  %v1495 = vpack.c.b16 %v1492, %v1491
  %v1496 = vpack.c.b16 %v1494, %v1493
  %1499 = vmatprep.subr.bf16.mxu0 0
  %1500 = vmatpush1.bf16.msra.mxu0 0
  %1501 = vmatprep.subr.bf16.mxu0 0
  %1502 = vmatpush1.bf16.msra.mxu0 0
  %1503 = vmatprep.subr.bf16.mxu0 0
  %1504 = vmatpush1.bf16.msra.mxu0 0
  %1505 = vmatprep.subr.bf16.mxu0 0
  %1506 = vmatpush1.bf16.msra.mxu0 0
  %1507 = vmatprep.subr.bf16.mxu0 0
  %1508 = vmatpush1.bf16.msra.mxu0 0
  %1509 = vmatprep.subr.bf16.mxu0 0
  %1510 = vmatpush1.bf16.msra.mxu0 0
  %1511 = vmatprep.subr.bf16.mxu0 0
  %1512 = vmatpush1.bf16.msra.mxu0 %v1496
  %1513 = vmatprep.subr.bf16.mxu0 0
  %1514 = vmatpush1.bf16.msra.mxu0 %v1495
  %1515 = vmatprep.subr.bf16.mxu0 0
  %1516 = vmatpush2.bf16.msra.mxu0 0
  %1517 = vmatprep.subr.bf16.mxu0 0
  %1518 = vmatpush2.bf16.msra.mxu0 0
  %1519 = vmatprep.subr.bf16.mxu0 0
  %1520 = vmatpush2.bf16.msra.mxu0 0
  %1521 = vmatprep.subr.bf16.mxu0 0
  %1522 = vmatpush2.bf16.msra.mxu0 0
  %1523 = vmatprep.subr.bf16.mxu0 0
  %1524 = vmatpush2.bf16.msra.mxu0 0
  %1525 = vmatprep.subr.bf16.mxu0 0
  %1526 = vmatpush2.bf16.msra.mxu0 0
  %1527 = vmatprep.subr.bf16.mxu0 0
  %1528 = vmatpush2.bf16.msra.mxu0 0
  %1529 = vmatprep.subr.bf16.mxu0 0
  %1530 = vmatpush2.bf16.msra.mxu0 0
  %1531 = vmatprep.mubr.bf16.mxu0 0
  %1532 = vmatmul.mubr.bf16.gmra.mxu0 %v257
  %v1533 = vpop.f32.mrf.mxu0
  %v1534 = vadd.f32 %v1485, %v1533
  %v1535 = vpop.f32.mrf.mxu0
  %v1536 = vpop.f32.mrf.mxu0
  %v1537 = vadd.f32 %v1485, %v1536
  %v1538 = vpop.f32.mrf.mxu0
  %1539 = vdwg.mxu0
  %s1540 = scalar_lea.vmem %s10, 48
  %v1541 = vld [vmem:[%s1540] sm:$0xf]
  %v1542 = vld [vmem:[%s1540 + $0x4] sm:$0xf]
  %v1543 = vld [vmem:[%s1540 + $0x8] sm:$0xf]
  %v1544 = vld [vmem:[%s1540 + $0xc] sm:$0xf]
  %s1545 = scalar_lea.vmem %s11, 3
  %v1546 = vld [vmem:[%s1545] sm:$0x1]
  %v1548 = vlaneseq
  %v1549 = vshrl.u32 %v1548, 7
  %v1550 = vsub.s32 0, %v1549
  %v1551 = vrot.slane %v1546, %v1550
  %v1557 = vunpack.c.l.b16 %v1541
  %v1558 = vunpack.c.l.b16 %v1542
  %v1559 = vunpack.c.l.b16 %v1543
  %v1560 = vunpack.c.l.b16 %v1544
  %v1561 = vpack.c.b16 %v1558, %v1557
  %v1562 = vpack.c.b16 %v1560, %v1559
  %1565 = vmatprep.subr.bf16.mxu0 0
  %1566 = vmatpush1.bf16.msra.mxu0 0
  %1567 = vmatprep.subr.bf16.mxu0 0
  %1568 = vmatpush1.bf16.msra.mxu0 0
  %1569 = vmatprep.subr.bf16.mxu0 0
  %1570 = vmatpush1.bf16.msra.mxu0 0
  %1571 = vmatprep.subr.bf16.mxu0 0
  %1572 = vmatpush1.bf16.msra.mxu0 0
  %1573 = vmatprep.subr.bf16.mxu0 0
  %1574 = vmatpush1.bf16.msra.mxu0 0
  %1575 = vmatprep.subr.bf16.mxu0 0
  %1576 = vmatpush1.bf16.msra.mxu0 0
  %1577 = vmatprep.subr.bf16.mxu0 0
  %1578 = vmatpush1.bf16.msra.mxu0 %v1562
  %1579 = vmatprep.subr.bf16.mxu0 0
  %1580 = vmatpush1.bf16.msra.mxu0 %v1561
  %1581 = vmatprep.subr.bf16.mxu0 0
  %1582 = vmatpush2.bf16.msra.mxu0 0
  %1583 = vmatprep.subr.bf16.mxu0 0
  %1584 = vmatpush2.bf16.msra.mxu0 0
  %1585 = vmatprep.subr.bf16.mxu0 0
  %1586 = vmatpush2.bf16.msra.mxu0 0
  %1587 = vmatprep.subr.bf16.mxu0 0
  %1588 = vmatpush2.bf16.msra.mxu0 0
  %1589 = vmatprep.subr.bf16.mxu0 0
  %1590 = vmatpush2.bf16.msra.mxu0 0
  %1591 = vmatprep.subr.bf16.mxu0 0
  %1592 = vmatpush2.bf16.msra.mxu0 0
  %1593 = vmatprep.subr.bf16.mxu0 0
  %1594 = vmatpush2.bf16.msra.mxu0 0
  %1595 = vmatprep.subr.bf16.mxu0 0
  %1596 = vmatpush2.bf16.msra.mxu0 0
  %1597 = vmatprep.mubr.bf16.mxu0 0
  %1598 = vmatmul.mubr.bf16.gmra.mxu0 %v257
  %v1599 = vpop.f32.mrf.mxu0
  %v1600 = vadd.f32 %v1551, %v1599
  %v1601 = vpop.f32.mrf.mxu0
  %v1602 = vpop.f32.mrf.mxu0
  %v1603 = vadd.f32 %v1551, %v1602
  %v1604 = vpop.f32.mrf.mxu0
  %1605 = vdwg.mxu0
  %v1607 = vsel %vm428, %v1468, 0
  %v1610 = vsel %vm428, %v1471, 0
  %v1613 = vsel %vm428, %v1534, 0
  %v1616 = vsel %vm428, %v1537, 0
  %1618 = vmatprep.subr.mxu0 0.0
  %1619 = vmatpush1.xpose.msra.mxu0 0.0
  %1620 = vmatprep.subr.mxu0 0.0
  %1621 = vmatpush1.xpose.msra.mxu0 0.0
  %1622 = vmatprep.subr.mxu0 0.0
  %1623 = vmatpush1.xpose.msra.mxu0 0.0
  %1624 = vmatprep.subr.mxu0 0.0
  %1625 = vmatpush1.xpose.msra.mxu0 0.0
  %1626 = vmatprep.subr.mxu0 0.0
  %1627 = vmatpush1.xpose.msra.mxu0 0.0
  %1628 = vmatprep.subr.mxu0 0.0
  %1629 = vmatpush1.xpose.msra.mxu0 0.0
  %1630 = vmatprep.subr.mxu0 0.0
  %1631 = vmatpush1.xpose.msra.mxu0 0.0
  %1632 = vmatprep.subr.mxu0 0.0
  %1633 = vmatpush1.xpose.msra.mxu0 0.0
  %1634 = vmatprep.subr.mxu0 0.0
  %1635 = vmatpush1.xpose.msra.mxu0 0.0
  %1636 = vmatprep.subr.mxu0 0.0
  %1637 = vmatpush1.xpose.msra.mxu0 0.0
  %1638 = vmatprep.subr.mxu0 0.0
  %1639 = vmatpush1.xpose.msra.mxu0 0.0
  %1640 = vmatprep.subr.mxu0 0.0
  %1641 = vmatpush1.xpose.msra.mxu0 0.0
  %1642 = vmatprep.subr.mxu0 0.0
  %1643 = vmatpush1.xpose.msra.mxu0 0.0
  %1644 = vmatprep.subr.mxu0 0.0
  %1645 = vmatpush1.xpose.msra.mxu0 0.0
  %1646 = vmatprep.subr.mxu0 0.0
  %1647 = vmatpush1.xpose.msra.mxu0 %v1616
  %1648 = vmatprep.subr.mxu0 0.0
  %1649 = vmatpush1.xpose.msra.mxu0 %v1613
  %1650 = vmatprep.subr.mxu0 0.0
  %1651 = vmatpush2.xpose.msra.mxu0 0.0
  %1652 = vmatprep.subr.mxu0 0.0
  %1653 = vmatpush2.xpose.msra.mxu0 0.0
  %1654 = vmatprep.subr.mxu0 0.0
  %1655 = vmatpush2.xpose.msra.mxu0 0.0
  %1656 = vmatprep.subr.mxu0 0.0
  %1657 = vmatpush2.xpose.msra.mxu0 0.0
  %1658 = vmatprep.subr.mxu0 0.0
  %1659 = vmatpush2.xpose.msra.mxu0 0.0
  %1660 = vmatprep.subr.mxu0 0.0
  %1661 = vmatpush2.xpose.msra.mxu0 0.0
  %1662 = vmatprep.subr.mxu0 0.0
  %1663 = vmatpush2.xpose.msra.mxu0 0.0
  %1664 = vmatprep.subr.mxu0 0.0
  %1665 = vmatpush2.xpose.msra.mxu0 0.0
  %1666 = vmatprep.subr.mxu0 0.0
  %1667 = vmatpush2.xpose.msra.mxu0 0.0
  %1668 = vmatprep.subr.mxu0 0.0
  %1669 = vmatpush2.xpose.msra.mxu0 0.0
  %1670 = vmatprep.subr.mxu0 0.0
  %1671 = vmatpush2.xpose.msra.mxu0 0.0
  %1672 = vmatprep.subr.mxu0 0.0
  %1673 = vmatpush2.xpose.msra.mxu0 0.0
  %1674 = vmatprep.subr.mxu0 0.0
  %1675 = vmatpush2.xpose.msra.mxu0 0.0
  %1676 = vmatprep.subr.mxu0 0.0
  %1677 = vmatpush2.xpose.msra.mxu0 0.0
  %1678 = vmatprep.subr.mxu0 0.0
  %1679 = vmatpush2.xpose.msra.mxu0 0.0
  %1680 = vmatprep.subr.mxu0 0.0
  %1681 = vmatpush2.xpose.msra.mxu0 0.0
  %1682 = vmatprep.mubr.f32.mxu0 0.0
  %1683 = vmatmul.mubr.f32.gmra.mxu0 %v1607
  %v1684 = vpop.f32.mrf.mxu0
  %v1685 = vadd.f32 0.0, %v1684
  %v1686 = vpop.f32.mrf.mxu0
  %1687 = vmatprep.mubr.f32.mxu0 0.0
  %1688 = vmatmul.mubr.f32.gmra.mxu0 %v1610
  %v1689 = vpop.f32.mrf.mxu0
  %v1690 = vadd.f32 0.0, %v1689
  %v1691 = vpop.f32.mrf.mxu0
  %1692 = vdwg.mxu0
  %v1693 = vmul.f32 %v1685, 0.35355338
  %v1694 = vmul.f32 %v1690, 0.35355338
  %v1695 = vadd.f32 %v1693, %v184
  %v1696 = vadd.f32 %v1694, %v185
  %v1697 = vsel %vm520, %v1695, -inf
  %1698 = vmax.xlane.f32.xlu0 %v1697
  %v1699 = vpop.xlane.xlu0 %1698
  %v1700 = vsel %vm520, %v1696, -inf
  %1701 = vmax.xlane.f32.xlu0 %v1700
  %v1702 = vpop.xlane.xlu0 %1701
  %v1703 = vsub.f32 %v1695, %v1699
  %v1704 = vsub.f32 %v1696, %v1702
  %v1705 = vmul.f32 %v1703, 1.442695
  %v1706 = vpow.pop %v1705
  %v1707 = vmul.f32 %v1704, 1.442695
  %v1708 = vpow.pop %v1707
  %v1709 = vsel %vm520, %v1706, 0.0
  %1710 = vadd.xlane.f32.xlu0 %v1709
  %v1711 = vpop.xlane.xlu0 %1710
  %v1712 = vsel %vm520, %v1708, 0.0
  %1713 = vadd.xlane.f32.xlu0 %v1712
  %v1714 = vpop.xlane.xlu0 %1713
  %v1715 = vrcp.pop %v1711
  %v1716 = vrcp.pop %v1714
  %v1717 = vmul.f32 %v1706, %v1715
  %v1718 = vmul.f32 %v1708, %v1716
  %v1720 = vsel %vm520, %v1717, 0
  %v1723 = vsel %vm520, %v1718, 0
  %1725 = vmatprep.subr.mxu0 0.0
  %1726 = vmatpush1.msra.mxu0 0.0
  %1727 = vmatprep.subr.mxu0 0.0
  %1728 = vmatpush1.msra.mxu0 0.0
  %1729 = vmatprep.subr.mxu0 0.0
  %1730 = vmatpush1.msra.mxu0 0.0
  %1731 = vmatprep.subr.mxu0 0.0
  %1732 = vmatpush1.msra.mxu0 0.0
  %1733 = vmatprep.subr.mxu0 0.0
  %1734 = vmatpush1.msra.mxu0 0.0
  %1735 = vmatprep.subr.mxu0 0.0
  %1736 = vmatpush1.msra.mxu0 0.0
  %1737 = vmatprep.subr.mxu0 0.0
  %1738 = vmatpush1.msra.mxu0 0.0
  %1739 = vmatprep.subr.mxu0 0.0
  %1740 = vmatpush1.msra.mxu0 0.0
  %1741 = vmatprep.subr.mxu0 0.0
  %1742 = vmatpush1.msra.mxu0 0.0
  %1743 = vmatprep.subr.mxu0 0.0
  %1744 = vmatpush1.msra.mxu0 0.0
  %1745 = vmatprep.subr.mxu0 0.0
  %1746 = vmatpush1.msra.mxu0 0.0
  %1747 = vmatprep.subr.mxu0 0.0
  %1748 = vmatpush1.msra.mxu0 0.0
  %1749 = vmatprep.subr.mxu0 0.0
  %1750 = vmatpush1.msra.mxu0 0.0
  %1751 = vmatprep.subr.mxu0 0.0
  %1752 = vmatpush1.msra.mxu0 0.0
  %1753 = vmatprep.subr.mxu0 0.0
  %1754 = vmatpush1.msra.mxu0 %v1603
  %1755 = vmatprep.subr.mxu0 0.0
  %1756 = vmatpush1.msra.mxu0 %v1600
  %1757 = vmatprep.subr.mxu0 0.0
  %1758 = vmatpush2.msra.mxu0 0.0
  %1759 = vmatprep.subr.mxu0 0.0
  %1760 = vmatpush2.msra.mxu0 0.0
  %1761 = vmatprep.subr.mxu0 0.0
  %1762 = vmatpush2.msra.mxu0 0.0
  %1763 = vmatprep.subr.mxu0 0.0
  %1764 = vmatpush2.msra.mxu0 0.0
  %1765 = vmatprep.subr.mxu0 0.0
  %1766 = vmatpush2.msra.mxu0 0.0
  %1767 = vmatprep.subr.mxu0 0.0
  %1768 = vmatpush2.msra.mxu0 0.0
  %1769 = vmatprep.subr.mxu0 0.0
  %1770 = vmatpush2.msra.mxu0 0.0
  %1771 = vmatprep.subr.mxu0 0.0
  %1772 = vmatpush2.msra.mxu0 0.0
  %1773 = vmatprep.subr.mxu0 0.0
  %1774 = vmatpush2.msra.mxu0 0.0
  %1775 = vmatprep.subr.mxu0 0.0
  %1776 = vmatpush2.msra.mxu0 0.0
  %1777 = vmatprep.subr.mxu0 0.0
  %1778 = vmatpush2.msra.mxu0 0.0
  %1779 = vmatprep.subr.mxu0 0.0
  %1780 = vmatpush2.msra.mxu0 0.0
  %1781 = vmatprep.subr.mxu0 0.0
  %1782 = vmatpush2.msra.mxu0 0.0
  %1783 = vmatprep.subr.mxu0 0.0
  %1784 = vmatpush2.msra.mxu0 0.0
  %1785 = vmatprep.subr.mxu0 0.0
  %1786 = vmatpush2.msra.mxu0 0.0
  %1787 = vmatprep.subr.mxu0 0.0
  %1788 = vmatpush2.msra.mxu0 0.0
  %1789 = vmatprep.mubr.f32.mxu0 0.0
  %1790 = vmatmul.mubr.f32.gmra.mxu0 %v1720
  %v1791 = vpop.f32.mrf.mxu0
  %v1792 = vadd.f32 0.0, %v1791
  %v1793 = vpop.f32.mrf.mxu0
  %1794 = vmatprep.mubr.f32.mxu0 0.0
  %1795 = vmatmul.mubr.f32.gmra.mxu0 %v1723
  %v1796 = vpop.f32.mrf.mxu0
  %v1797 = vadd.f32 0.0, %v1796
  %v1798 = vpop.f32.mrf.mxu0
  %1799 = vdwg.mxu0
  %1802 = vrot.lane.b32.xlu0 %v1008, 8
  %v1803 = vpop.permute.xlu0 %1802
  %1804 = vrot.lane.b32.xlu0 %v1013, 8
  %v1805 = vpop.permute.xlu0 %1804
  %1810 = vrot.lane.b32.xlu0 %v1400, 16
  %v1811 = vpop.permute.xlu0 %1810
  %1812 = vrot.lane.b32.xlu0 %v1405, 16
  %v1813 = vpop.permute.xlu0 %1812
  %1818 = vrot.lane.b32.xlu0 %v1792, 24
  %v1819 = vpop.permute.xlu0 %1818
  %1820 = vrot.lane.b32.xlu0 %v1797, 24
  %v1821 = vpop.permute.xlu0 %1820
  %v1824 = vsel %vm428, %v616, %v1803
  %v1825 = vsel %vm428, %v621, %v1805
  %v1826 = vsel %vm520, %v1824, %v1811
  %v1827 = vsel %vm520, %v1825, %v1813
  %vm1828 = vcmask 195584
  %v1829 = vsel %vm1828, %v1826, %v1819
  %v1830 = vsel %vm1828, %v1827, %v1821
  %v1831 = vpack.c.bf16 %v1830, %v1829
  %v1832 = vld [vmem:[%s12] sm:$0xf]
  %v1833 = vld [vmem:[%s12 + $0x4] sm:$0xf]
  %v1834 = vld [vmem:[%s12 + $0x8] sm:$0xf]
  %v1835 = vld [vmem:[%s12 + $0xc] sm:$0xf]
  %v1836 = vld [vmem:[%s13] sm:$0x1]
  %v1838 = vlaneseq
  %v1839 = vshrl.u32 %v1838, 7
  %v1840 = vsub.s32 0, %v1839
  %v1841 = vrot.slane %v1836, %v1840
  %v1847 = vunpack.c.l.b16 %v1832
  %v1848 = vunpack.c.l.b16 %v1833
  %v1849 = vunpack.c.l.b16 %v1834
  %v1850 = vunpack.c.l.b16 %v1835
  %v1851 = vpack.c.b16 %v1848, %v1847
  %v1852 = vpack.c.b16 %v1850, %v1849
  %v1856 = vsel %vm188, %v1831, 0
  %1858 = vmatprep.subr.bf16.mxu0 0
  %1859 = vmatpush1.bf16.msra.mxu0 0
  %1860 = vmatprep.subr.bf16.mxu0 0
  %1861 = vmatpush1.bf16.msra.mxu0 0
  %1862 = vmatprep.subr.bf16.mxu0 0
  %1863 = vmatpush1.bf16.msra.mxu0 0
  %1864 = vmatprep.subr.bf16.mxu0 0
  %1865 = vmatpush1.bf16.msra.mxu0 0
  %1866 = vmatprep.subr.bf16.mxu0 0
  %1867 = vmatpush1.bf16.msra.mxu0 0
  %1868 = vmatprep.subr.bf16.mxu0 0
  %1869 = vmatpush1.bf16.msra.mxu0 0
  %1870 = vmatprep.subr.bf16.mxu0 0
  %1871 = vmatpush1.bf16.msra.mxu0 %v1852
  %1872 = vmatprep.subr.bf16.mxu0 0
  %1873 = vmatpush1.bf16.msra.mxu0 %v1851
  %1874 = vmatprep.subr.bf16.mxu0 0
  %1875 = vmatpush2.bf16.msra.mxu0 0
  %1876 = vmatprep.subr.bf16.mxu0 0
  %1877 = vmatpush2.bf16.msra.mxu0 0
  %1878 = vmatprep.subr.bf16.mxu0 0
  %1879 = vmatpush2.bf16.msra.mxu0 0
  %1880 = vmatprep.subr.bf16.mxu0 0
  %1881 = vmatpush2.bf16.msra.mxu0 0
  %1882 = vmatprep.subr.bf16.mxu0 0
  %1883 = vmatpush2.bf16.msra.mxu0 0
  %1884 = vmatprep.subr.bf16.mxu0 0
  %1885 = vmatpush2.bf16.msra.mxu0 0
  %1886 = vmatprep.subr.bf16.mxu0 0
  %1887 = vmatpush2.bf16.msra.mxu0 0
  %1888 = vmatprep.subr.bf16.mxu0 0
  %1889 = vmatpush2.bf16.msra.mxu0 0
  %1890 = vmatprep.mubr.bf16.mxu0 0
  %1891 = vmatmul.mubr.bf16.gmra.mxu0 %v1856
  %v1892 = vpop.f32.mrf.mxu0
  %v1893 = vadd.f32 %v1841, %v1892
  %v1894 = vpop.f32.mrf.mxu0
  %v1895 = vpop.f32.mrf.mxu0
  %v1896 = vadd.f32 %v1841, %v1895
  %v1897 = vpop.f32.mrf.mxu0
  %1898 = vdwg.mxu0
  %v1899 = vadd.f32 %v1893, %v176
  %v1900 = vadd.f32 %v1896, %v181
  %v1901 = vld [vmem:[%s14] sm:$0x1]
  %v1902 = vld [vmem:[%s15] sm:$0x1]
  %v1903 = vsel %vm188, %v1899, 0.0
  %1904 = vadd.xlane.f32.xlu0 %v1903
  %v1905 = vpop.xlane.xlu0 %1904
  %v1906 = vsel %vm188, %v1900, 0.0
  %1907 = vadd.xlane.f32.xlu0 %v1906
  %v1908 = vpop.xlane.xlu0 %1907
  %v1909 = vmul.f32 %v1905, %v195
  %v1910 = vmul.f32 %v1908, %v195
  %v1911 = vsub.f32 %v1899, %v1909
  %v1912 = vsub.f32 %v1900, %v1910
  %v1913 = vmul.f32 %v1911, %v1911
  %v1914 = vmul.f32 %v1912, %v1912
  %v1915 = vsel %vm188, %v1913, 0.0
  %1916 = vadd.xlane.f32.xlu0 %v1915
  %v1917 = vpop.xlane.xlu0 %1916
  %v1918 = vsel %vm188, %v1914, 0.0
  %1919 = vadd.xlane.f32.xlu0 %v1918
  %v1920 = vpop.xlane.xlu0 %1919
  %v1921 = vmul.f32 %v1917, %v195
  %v1922 = vmul.f32 %v1920, %v195
  %v1923 = vadd.f32 %v1921, 1e-12
  %v1924 = vadd.f32 %v1922, 1e-12
  %v1925 = vrsqrt.pop %v1923
  %v1926 = vrsqrt.pop %v1924
  %v1927 = vmul.f32 %v1911, %v1925
  %v1928 = vmul.f32 %v1912, %v1926
  %v1930 = vlaneseq
  %v1931 = vshrl.u32 %v1930, 7
  %v1932 = vsub.s32 0, %v1931
  %v1933 = vrot.slane %v1901, %v1932
  %v1935 = vmul.f32 %v1927, %v1933
  %v1936 = vmul.f32 %v1928, %v1933
  %v1938 = vlaneseq
  %v1939 = vshrl.u32 %v1938, 7
  %v1940 = vsub.s32 0, %v1939
  %v1941 = vrot.slane %v1902, %v1940
  %v1943 = vadd.f32 %v1935, %v1941
  %v1944 = vadd.f32 %v1936, %v1941
  %v1945 = vpack.c.bf16 %v1944, %v1943
  %v1946 = vld [vmem:[%s16] sm:$0xf]
  %v1947 = vld [vmem:[%s16 + $0x4] sm:$0xf]
  %v1948 = vld [vmem:[%s16 + $0x8] sm:$0xf]
  %v1949 = vld [vmem:[%s16 + $0xc] sm:$0xf]
  %v1950 = vld [vmem:[%s17] sm:$0x1]
  %v1952 = vlaneseq
  %v1953 = vshrl.u32 %v1952, 7
  %v1954 = vsub.s32 0, %v1953
  %v1955 = vrot.slane %v1950, %v1954
  %v1961 = vunpack.c.l.b16 %v1946
  %v1962 = vunpack.c.l.b16 %v1947
  %v1963 = vunpack.c.l.b16 %v1948
  %v1964 = vunpack.c.l.b16 %v1949
  %v1965 = vpack.c.b16 %v1962, %v1961
  %v1966 = vpack.c.b16 %v1964, %v1963
  %v1970 = vsel %vm188, %v1945, 0
  %1972 = vmatprep.subr.bf16.mxu0 0
  %1973 = vmatpush1.bf16.msra.mxu0 0
  %1974 = vmatprep.subr.bf16.mxu0 0
  %1975 = vmatpush1.bf16.msra.mxu0 0
  %1976 = vmatprep.subr.bf16.mxu0 0
  %1977 = vmatpush1.bf16.msra.mxu0 0
  %1978 = vmatprep.subr.bf16.mxu0 0
  %1979 = vmatpush1.bf16.msra.mxu0 0
  %1980 = vmatprep.subr.bf16.mxu0 0
  %1981 = vmatpush1.bf16.msra.mxu0 0
  %1982 = vmatprep.subr.bf16.mxu0 0
  %1983 = vmatpush1.bf16.msra.mxu0 0
  %1984 = vmatprep.subr.bf16.mxu0 0
  %1985 = vmatpush1.bf16.msra.mxu0 %v1966
  %1986 = vmatprep.subr.bf16.mxu0 0
  %1987 = vmatpush1.bf16.msra.mxu0 %v1965
  %1988 = vmatprep.subr.bf16.mxu0 0
  %1989 = vmatpush2.bf16.msra.mxu0 0
  %1990 = vmatprep.subr.bf16.mxu0 0
  %1991 = vmatpush2.bf16.msra.mxu0 0
  %1992 = vmatprep.subr.bf16.mxu0 0
  %1993 = vmatpush2.bf16.msra.mxu0 0
  %1994 = vmatprep.subr.bf16.mxu0 0
  %1995 = vmatpush2.bf16.msra.mxu0 0
  %1996 = vmatprep.subr.bf16.mxu0 0
  %1997 = vmatpush2.bf16.msra.mxu0 0
  %1998 = vmatprep.subr.bf16.mxu0 0
  %1999 = vmatpush2.bf16.msra.mxu0 0
  %2000 = vmatprep.subr.bf16.mxu0 0
  %2001 = vmatpush2.bf16.msra.mxu0 0
  %2002 = vmatprep.subr.bf16.mxu0 0
  %2003 = vmatpush2.bf16.msra.mxu0 0
  %2004 = vmatprep.mubr.bf16.mxu0 0
  %2005 = vmatmul.mubr.bf16.gmra.mxu0 %v1970
  %v2006 = vpop.f32.mrf.mxu0
  %v2007 = vadd.f32 %v1955, %v2006
  %v2008 = vpop.f32.mrf.mxu0
  %v2009 = vpop.f32.mrf.mxu0
  %v2010 = vadd.f32 %v1955, %v2009
  %v2011 = vpop.f32.mrf.mxu0
  %2012 = vdwg.mxu0
  %v2013 = vmul.f32 %v2007, %v2007
  %v2014 = vmul.f32 %v2010, %v2010
  %v2015 = vmul.f32 %v2007, %v2013
  %v2016 = vmul.f32 %v2010, %v2014
  %v2017 = vmul.f32 %v2015, 0.044715
  %v2018 = vmul.f32 %v2016, 0.044715
  %v2019 = vadd.f32 %v2007, %v2017
  %v2020 = vadd.f32 %v2010, %v2018
  %v2021 = vmul.f32 %v2019, 0.7978846
  %v2022 = vmul.f32 %v2020, 0.7978846
  %v2023 = vtanh.pop %v2021
  %v2024 = vtanh.pop %v2022
  %v2025 = vadd.f32 %v2023, 1.0
  %v2026 = vadd.f32 %v2024, 1.0
  %v2027 = vmul.f32 %v2025, 0.5
  %v2028 = vmul.f32 %v2026, 0.5
  %v2029 = vmul.f32 %v2007, %v2027
  %v2030 = vmul.f32 %v2010, %v2028
  %v2031 = vpack.c.bf16 %v2030, %v2029
  %v2032 = vld [vmem:[%s18] sm:$0xf]
  %v2033 = vld [vmem:[%s18 + $0x4] sm:$0xf]
  %v2034 = vld [vmem:[%s18 + $0x8] sm:$0xf]
  %v2035 = vld [vmem:[%s18 + $0xc] sm:$0xf]
  %v2036 = vld [vmem:[%s18 + $0x10] sm:$0xf]
  %v2037 = vld [vmem:[%s18 + $0x14] sm:$0xf]
  %v2038 = vld [vmem:[%s18 + $0x18] sm:$0xf]
  %v2039 = vld [vmem:[%s18 + $0x1c] sm:$0xf]
  %v2040 = vld [vmem:[%s18 + $0x20] sm:$0xf]
  %v2041 = vld [vmem:[%s18 + $0x24] sm:$0xf]
  %v2042 = vld [vmem:[%s18 + $0x28] sm:$0xf]
  %v2043 = vld [vmem:[%s18 + $0x2c] sm:$0xf]
  %v2044 = vld [vmem:[%s18 + $0x30] sm:$0xf]
  %v2045 = vld [vmem:[%s18 + $0x34] sm:$0xf]
  %v2046 = vld [vmem:[%s18 + $0x38] sm:$0xf]
  %v2047 = vld [vmem:[%s18 + $0x3c] sm:$0xf]
  %v2048 = vld [vmem:[%s19] sm:$0x1]
  %v2050 = vlaneseq
  %v2051 = vshrl.u32 %v2050, 7
  %v2052 = vsub.s32 0, %v2051
  %v2053 = vrot.slane %v2048, %v2052
  %v2071 = vunpack.c.l.b16 %v2032
  %v2072 = vunpack.c.l.b16 %v2033
  %v2073 = vunpack.c.l.b16 %v2034
  %v2074 = vunpack.c.l.b16 %v2035
  %v2075 = vunpack.c.l.b16 %v2036
  %v2076 = vunpack.c.l.b16 %v2037
  %v2077 = vunpack.c.l.b16 %v2038
  %v2078 = vunpack.c.l.b16 %v2039
  %v2079 = vunpack.c.l.b16 %v2040
  %v2080 = vunpack.c.l.b16 %v2041
  %v2081 = vunpack.c.l.b16 %v2042
  %v2082 = vunpack.c.l.b16 %v2043
  %v2083 = vunpack.c.l.b16 %v2044
  %v2084 = vunpack.c.l.b16 %v2045
  %v2085 = vunpack.c.l.b16 %v2046
  %v2086 = vunpack.c.l.b16 %v2047
  %v2087 = vpack.c.b16 %v2072, %v2071
  %v2088 = vpack.c.b16 %v2074, %v2073
  %v2089 = vpack.c.b16 %v2076, %v2075
  %v2090 = vpack.c.b16 %v2078, %v2077
  %v2091 = vpack.c.b16 %v2080, %v2079
  %v2092 = vpack.c.b16 %v2082, %v2081
  %v2093 = vpack.c.b16 %v2084, %v2083
  %v2094 = vpack.c.b16 %v2086, %v2085
  %2103 = vmatprep.subr.bf16.mxu0 0
  %2104 = vmatpush1.bf16.msra.mxu0 %v2094
  %2105 = vmatprep.subr.bf16.mxu0 0
  %2106 = vmatpush1.bf16.msra.mxu0 %v2093
  %2107 = vmatprep.subr.bf16.mxu0 0
  %2108 = vmatpush1.bf16.msra.mxu0 %v2092
  %2109 = vmatprep.subr.bf16.mxu0 0
  %2110 = vmatpush1.bf16.msra.mxu0 %v2091
  %2111 = vmatprep.subr.bf16.mxu0 0
  %2112 = vmatpush1.bf16.msra.mxu0 %v2090
  %2113 = vmatprep.subr.bf16.mxu0 0
  %2114 = vmatpush1.bf16.msra.mxu0 %v2089
  %2115 = vmatprep.subr.bf16.mxu0 0
  %2116 = vmatpush1.bf16.msra.mxu0 %v2088
  %2117 = vmatprep.subr.bf16.mxu0 0
  %2118 = vmatpush1.bf16.msra.mxu0 %v2087
  %2119 = vmatprep.subr.bf16.mxu0 0
  %2120 = vmatpush2.bf16.msra.mxu0 0
  %2121 = vmatprep.subr.bf16.mxu0 0
  %2122 = vmatpush2.bf16.msra.mxu0 0
  %2123 = vmatprep.subr.bf16.mxu0 0
  %2124 = vmatpush2.bf16.msra.mxu0 0
  %2125 = vmatprep.subr.bf16.mxu0 0
  %2126 = vmatpush2.bf16.msra.mxu0 0
  %2127 = vmatprep.subr.bf16.mxu0 0
  %2128 = vmatpush2.bf16.msra.mxu0 0
  %2129 = vmatprep.subr.bf16.mxu0 0
  %2130 = vmatpush2.bf16.msra.mxu0 0
  %2131 = vmatprep.subr.bf16.mxu0 0
  %2132 = vmatpush2.bf16.msra.mxu0 0
  %2133 = vmatprep.subr.bf16.mxu0 0
  %2134 = vmatpush2.bf16.msra.mxu0 0
  %2135 = vmatprep.mubr.bf16.mxu0 0
  %2136 = vmatmul.mubr.bf16.gmra.mxu0 %v2031
  %v2137 = vpop.f32.mrf.mxu0
  %v2138 = vadd.f32 %v2053, %v2137
  %v2139 = vpop.f32.mrf.mxu0
  %v2140 = vpop.f32.mrf.mxu0
  %v2141 = vadd.f32 %v2053, %v2140
  %v2142 = vpop.f32.mrf.mxu0
  %2143 = vdwg.mxu0
  %v2144 = vadd.f32 %v2138, %v1899
  %v2145 = vadd.f32 %v2141, %v1900
  %s2146 = scalar_lea.vmem %s4, 1
  %v2147 = vld [vmem:[%s2146] sm:$0x1]
  %s2148 = scalar_lea.vmem %s5, 1
  %v2149 = vld [vmem:[%s2148] sm:$0x1]
  %v2150 = vsel %vm188, %v2144, 0.0
  %2151 = vadd.xlane.f32.xlu0 %v2150
  %v2152 = vpop.xlane.xlu0 %2151
  %v2153 = vsel %vm188, %v2145, 0.0
  %2154 = vadd.xlane.f32.xlu0 %v2153
  %v2155 = vpop.xlane.xlu0 %2154
  %v2156 = vmul.f32 %v2152, %v195
  %v2157 = vmul.f32 %v2155, %v195
  %v2158 = vsub.f32 %v2144, %v2156
  %v2159 = vsub.f32 %v2145, %v2157
  %v2160 = vmul.f32 %v2158, %v2158
  %v2161 = vmul.f32 %v2159, %v2159
  %v2162 = vsel %vm188, %v2160, 0.0
  %2163 = vadd.xlane.f32.xlu0 %v2162
  %v2164 = vpop.xlane.xlu0 %2163
  %v2165 = vsel %vm188, %v2161, 0.0
  %2166 = vadd.xlane.f32.xlu0 %v2165
  %v2167 = vpop.xlane.xlu0 %2166
  %v2168 = vmul.f32 %v2164, %v195
  %v2169 = vmul.f32 %v2167, %v195
  %v2170 = vadd.f32 %v2168, 1e-12
  %v2171 = vadd.f32 %v2169, 1e-12
  %v2172 = vrsqrt.pop %v2170
  %v2173 = vrsqrt.pop %v2171
  %v2174 = vmul.f32 %v2158, %v2172
  %v2175 = vmul.f32 %v2159, %v2173
  %v2177 = vlaneseq
  %v2178 = vshrl.u32 %v2177, 7
  %v2179 = vsub.s32 0, %v2178
  %v2180 = vrot.slane %v2147, %v2179
  %v2182 = vmul.f32 %v2174, %v2180
  %v2183 = vmul.f32 %v2175, %v2180
  %v2185 = vlaneseq
  %v2186 = vshrl.u32 %v2185, 7
  %v2187 = vsub.s32 0, %v2186
  %v2188 = vrot.slane %v2149, %v2187
  %v2190 = vadd.f32 %v2182, %v2188
  %v2191 = vadd.f32 %v2183, %v2188
  %v2192 = vpack.c.bf16 %v2191, %v2190
  %s2193 = scalar_lea.vmem %s6, 64
  %v2194 = vld [vmem:[%s2193] sm:$0xf]
  %v2195 = vld [vmem:[%s2193 + $0x4] sm:$0xf]
  %v2196 = vld [vmem:[%s2193 + $0x8] sm:$0xf]
  %v2197 = vld [vmem:[%s2193 + $0xc] sm:$0xf]
  %s2198 = scalar_lea.vmem %s7, 4
  %v2199 = vld [vmem:[%s2198] sm:$0x1]
  %v2201 = vlaneseq
  %v2202 = vshrl.u32 %v2201, 7
  %v2203 = vsub.s32 0, %v2202
  %v2204 = vrot.slane %v2199, %v2203
  %v2210 = vunpack.c.l.b16 %v2194
  %v2211 = vunpack.c.l.b16 %v2195
  %v2212 = vunpack.c.l.b16 %v2196
  %v2213 = vunpack.c.l.b16 %v2197
  %v2214 = vpack.c.b16 %v2211, %v2210
  %v2215 = vpack.c.b16 %v2213, %v2212
  %v2219 = vsel %vm188, %v2192, 0
  %2221 = vmatprep.subr.bf16.mxu0 0
  %2222 = vmatpush1.bf16.msra.mxu0 0
  %2223 = vmatprep.subr.bf16.mxu0 0
  %2224 = vmatpush1.bf16.msra.mxu0 0
  %2225 = vmatprep.subr.bf16.mxu0 0
  %2226 = vmatpush1.bf16.msra.mxu0 0
  %2227 = vmatprep.subr.bf16.mxu0 0
  %2228 = vmatpush1.bf16.msra.mxu0 0
  %2229 = vmatprep.subr.bf16.mxu0 0
  %2230 = vmatpush1.bf16.msra.mxu0 0
  %2231 = vmatprep.subr.bf16.mxu0 0
  %2232 = vmatpush1.bf16.msra.mxu0 0
  %2233 = vmatprep.subr.bf16.mxu0 0
  %2234 = vmatpush1.bf16.msra.mxu0 %v2215
  %2235 = vmatprep.subr.bf16.mxu0 0
  %2236 = vmatpush1.bf16.msra.mxu0 %v2214
  %2237 = vmatprep.subr.bf16.mxu0 0
  %2238 = vmatpush2.bf16.msra.mxu0 0
  %2239 = vmatprep.subr.bf16.mxu0 0
  %2240 = vmatpush2.bf16.msra.mxu0 0
  %2241 = vmatprep.subr.bf16.mxu0 0
  %2242 = vmatpush2.bf16.msra.mxu0 0
  %2243 = vmatprep.subr.bf16.mxu0 0
  %2244 = vmatpush2.bf16.msra.mxu0 0
  %2245 = vmatprep.subr.bf16.mxu0 0
  %2246 = vmatpush2.bf16.msra.mxu0 0
  %2247 = vmatprep.subr.bf16.mxu0 0
  %2248 = vmatpush2.bf16.msra.mxu0 0
  %2249 = vmatprep.subr.bf16.mxu0 0
  %2250 = vmatpush2.bf16.msra.mxu0 0
  %2251 = vmatprep.subr.bf16.mxu0 0
  %2252 = vmatpush2.bf16.msra.mxu0 0
  %2253 = vmatprep.mubr.bf16.mxu0 0
  %2254 = vmatmul.mubr.bf16.gmra.mxu0 %v2219
  %v2255 = vpop.f32.mrf.mxu0
  %v2256 = vadd.f32 %v2204, %v2255
  %v2257 = vpop.f32.mrf.mxu0
  %v2258 = vpop.f32.mrf.mxu0
  %v2259 = vadd.f32 %v2204, %v2258
  %v2260 = vpop.f32.mrf.mxu0
  %2261 = vdwg.mxu0
  %s2262 = scalar_lea.vmem %s8, 64
  %v2263 = vld [vmem:[%s2262] sm:$0xf]
  %v2264 = vld [vmem:[%s2262 + $0x4] sm:$0xf]
  %v2265 = vld [vmem:[%s2262 + $0x8] sm:$0xf]
  %v2266 = vld [vmem:[%s2262 + $0xc] sm:$0xf]
  %s2267 = scalar_lea.vmem %s9, 4
  %v2268 = vld [vmem:[%s2267] sm:$0x1]
  %v2270 = vlaneseq
  %v2271 = vshrl.u32 %v2270, 7
  %v2272 = vsub.s32 0, %v2271
  %v2273 = vrot.slane %v2268, %v2272
  %v2279 = vunpack.c.l.b16 %v2263
  %v2280 = vunpack.c.l.b16 %v2264
  %v2281 = vunpack.c.l.b16 %v2265
  %v2282 = vunpack.c.l.b16 %v2266
  %v2283 = vpack.c.b16 %v2280, %v2279
  %v2284 = vpack.c.b16 %v2282, %v2281
  %2287 = vmatprep.subr.bf16.mxu0 0
  %2288 = vmatpush1.bf16.msra.mxu0 0
  %2289 = vmatprep.subr.bf16.mxu0 0
  %2290 = vmatpush1.bf16.msra.mxu0 0
  %2291 = vmatprep.subr.bf16.mxu0 0
  %2292 = vmatpush1.bf16.msra.mxu0 0
  %2293 = vmatprep.subr.bf16.mxu0 0
  %2294 = vmatpush1.bf16.msra.mxu0 0
  %2295 = vmatprep.subr.bf16.mxu0 0
  %2296 = vmatpush1.bf16.msra.mxu0 0
  %2297 = vmatprep.subr.bf16.mxu0 0
  %2298 = vmatpush1.bf16.msra.mxu0 0
  %2299 = vmatprep.subr.bf16.mxu0 0
  %2300 = vmatpush1.bf16.msra.mxu0 %v2284
  %2301 = vmatprep.subr.bf16.mxu0 0
  %2302 = vmatpush1.bf16.msra.mxu0 %v2283
  %2303 = vmatprep.subr.bf16.mxu0 0
  %2304 = vmatpush2.bf16.msra.mxu0 0
  %2305 = vmatprep.subr.bf16.mxu0 0
  %2306 = vmatpush2.bf16.msra.mxu0 0
  %2307 = vmatprep.subr.bf16.mxu0 0
  %2308 = vmatpush2.bf16.msra.mxu0 0
  %2309 = vmatprep.subr.bf16.mxu0 0
  %2310 = vmatpush2.bf16.msra.mxu0 0
  %2311 = vmatprep.subr.bf16.mxu0 0
  %2312 = vmatpush2.bf16.msra.mxu0 0
  %2313 = vmatprep.subr.bf16.mxu0 0
  %2314 = vmatpush2.bf16.msra.mxu0 0
  %2315 = vmatprep.subr.bf16.mxu0 0
  %2316 = vmatpush2.bf16.msra.mxu0 0
  %2317 = vmatprep.subr.bf16.mxu0 0
  %2318 = vmatpush2.bf16.msra.mxu0 0
  %2319 = vmatprep.mubr.bf16.mxu0 0
  %2320 = vmatmul.mubr.bf16.gmra.mxu0 %v2219
  %v2321 = vpop.f32.mrf.mxu0
  %v2322 = vadd.f32 %v2273, %v2321
  %v2323 = vpop.f32.mrf.mxu0
  %v2324 = vpop.f32.mrf.mxu0
  %v2325 = vadd.f32 %v2273, %v2324
  %v2326 = vpop.f32.mrf.mxu0
  %2327 = vdwg.mxu0
  %s2328 = scalar_lea.vmem %s10, 64
  %v2329 = vld [vmem:[%s2328] sm:$0xf]
  %v2330 = vld [vmem:[%s2328 + $0x4] sm:$0xf]
  %v2331 = vld [vmem:[%s2328 + $0x8] sm:$0xf]
  %v2332 = vld [vmem:[%s2328 + $0xc] sm:$0xf]
  %s2333 = scalar_lea.vmem %s11, 4
  %v2334 = vld [vmem:[%s2333] sm:$0x1]
  %v2336 = vlaneseq
  %v2337 = vshrl.u32 %v2336, 7
  %v2338 = vsub.s32 0, %v2337
  %v2339 = vrot.slane %v2334, %v2338
  %v2345 = vunpack.c.l.b16 %v2329
  %v2346 = vunpack.c.l.b16 %v2330
  %v2347 = vunpack.c.l.b16 %v2331
  %v2348 = vunpack.c.l.b16 %v2332
  %v2349 = vpack.c.b16 %v2346, %v2345
  %v2350 = vpack.c.b16 %v2348, %v2347
  %2353 = vmatprep.subr.bf16.mxu0 0
  %2354 = vmatpush1.bf16.msra.mxu0 0
  %2355 = vmatprep.subr.bf16.mxu0 0
  %2356 = vmatpush1.bf16.msra.mxu0 0
  %2357 = vmatprep.subr.bf16.mxu0 0
  %2358 = vmatpush1.bf16.msra.mxu0 0
  %2359 = vmatprep.subr.bf16.mxu0 0
  %2360 = vmatpush1.bf16.msra.mxu0 0
  %2361 = vmatprep.subr.bf16.mxu0 0
  %2362 = vmatpush1.bf16.msra.mxu0 0
  %2363 = vmatprep.subr.bf16.mxu0 0
  %2364 = vmatpush1.bf16.msra.mxu0 0
  %2365 = vmatprep.subr.bf16.mxu0 0
  %2366 = vmatpush1.bf16.msra.mxu0 %v2350
  %2367 = vmatprep.subr.bf16.mxu0 0
  %2368 = vmatpush1.bf16.msra.mxu0 %v2349
  %2369 = vmatprep.subr.bf16.mxu0 0
  %2370 = vmatpush2.bf16.msra.mxu0 0
  %2371 = vmatprep.subr.bf16.mxu0 0
  %2372 = vmatpush2.bf16.msra.mxu0 0
  %2373 = vmatprep.subr.bf16.mxu0 0
  %2374 = vmatpush2.bf16.msra.mxu0 0
  %2375 = vmatprep.subr.bf16.mxu0 0
  %2376 = vmatpush2.bf16.msra.mxu0 0
  %2377 = vmatprep.subr.bf16.mxu0 0
  %2378 = vmatpush2.bf16.msra.mxu0 0
  %2379 = vmatprep.subr.bf16.mxu0 0
  %2380 = vmatpush2.bf16.msra.mxu0 0
  %2381 = vmatprep.subr.bf16.mxu0 0
  %2382 = vmatpush2.bf16.msra.mxu0 0
  %2383 = vmatprep.subr.bf16.mxu0 0
  %2384 = vmatpush2.bf16.msra.mxu0 0
  %2385 = vmatprep.mubr.bf16.mxu0 0
  %2386 = vmatmul.mubr.bf16.gmra.mxu0 %v2219
  %v2387 = vpop.f32.mrf.mxu0
  %v2388 = vadd.f32 %v2339, %v2387
  %v2389 = vpop.f32.mrf.mxu0
  %v2390 = vpop.f32.mrf.mxu0
  %v2391 = vadd.f32 %v2339, %v2390
  %v2392 = vpop.f32.mrf.mxu0
  %2393 = vdwg.mxu0
  %v2395 = vsel %vm428, %v2256, 0
  %v2398 = vsel %vm428, %v2259, 0
  %v2401 = vsel %vm428, %v2322, 0
  %v2404 = vsel %vm428, %v2325, 0
  %2406 = vmatprep.subr.mxu0 0.0
  %2407 = vmatpush1.xpose.msra.mxu0 0.0
  %2408 = vmatprep.subr.mxu0 0.0
  %2409 = vmatpush1.xpose.msra.mxu0 0.0
  %2410 = vmatprep.subr.mxu0 0.0
  %2411 = vmatpush1.xpose.msra.mxu0 0.0
  %2412 = vmatprep.subr.mxu0 0.0
  %2413 = vmatpush1.xpose.msra.mxu0 0.0
  %2414 = vmatprep.subr.mxu0 0.0
  %2415 = vmatpush1.xpose.msra.mxu0 0.0
  %2416 = vmatprep.subr.mxu0 0.0
  %2417 = vmatpush1.xpose.msra.mxu0 0.0
  %2418 = vmatprep.subr.mxu0 0.0
  %2419 = vmatpush1.xpose.msra.mxu0 0.0
  %2420 = vmatprep.subr.mxu0 0.0
  %2421 = vmatpush1.xpose.msra.mxu0 0.0
  %2422 = vmatprep.subr.mxu0 0.0
  %2423 = vmatpush1.xpose.msra.mxu0 0.0
  %2424 = vmatprep.subr.mxu0 0.0
  %2425 = vmatpush1.xpose.msra.mxu0 0.0
  %2426 = vmatprep.subr.mxu0 0.0
  %2427 = vmatpush1.xpose.msra.mxu0 0.0
  %2428 = vmatprep.subr.mxu0 0.0
  %2429 = vmatpush1.xpose.msra.mxu0 0.0
  %2430 = vmatprep.subr.mxu0 0.0
  %2431 = vmatpush1.xpose.msra.mxu0 0.0
  %2432 = vmatprep.subr.mxu0 0.0
  %2433 = vmatpush1.xpose.msra.mxu0 0.0
  %2434 = vmatprep.subr.mxu0 0.0
  %2435 = vmatpush1.xpose.msra.mxu0 %v2404
  %2436 = vmatprep.subr.mxu0 0.0
  %2437 = vmatpush1.xpose.msra.mxu0 %v2401
  %2438 = vmatprep.subr.mxu0 0.0
  %2439 = vmatpush2.xpose.msra.mxu0 0.0
  %2440 = vmatprep.subr.mxu0 0.0
  %2441 = vmatpush2.xpose.msra.mxu0 0.0
  %2442 = vmatprep.subr.mxu0 0.0
  %2443 = vmatpush2.xpose.msra.mxu0 0.0
  %2444 = vmatprep.subr.mxu0 0.0
  %2445 = vmatpush2.xpose.msra.mxu0 0.0
  %2446 = vmatprep.subr.mxu0 0.0
  %2447 = vmatpush2.xpose.msra.mxu0 0.0
  %2448 = vmatprep.subr.mxu0 0.0
  %2449 = vmatpush2.xpose.msra.mxu0 0.0
  %2450 = vmatprep.subr.mxu0 0.0
  %2451 = vmatpush2.xpose.msra.mxu0 0.0
  %2452 = vmatprep.subr.mxu0 0.0
  %2453 = vmatpush2.xpose.msra.mxu0 0.0
  %2454 = vmatprep.subr.mxu0 0.0
  %2455 = vmatpush2.xpose.msra.mxu0 0.0
  %2456 = vmatprep.subr.mxu0 0.0
  %2457 = vmatpush2.xpose.msra.mxu0 0.0
  %2458 = vmatprep.subr.mxu0 0.0
  %2459 = vmatpush2.xpose.msra.mxu0 0.0
  %2460 = vmatprep.subr.mxu0 0.0
  %2461 = vmatpush2.xpose.msra.mxu0 0.0
  %2462 = vmatprep.subr.mxu0 0.0
  %2463 = vmatpush2.xpose.msra.mxu0 0.0
  %2464 = vmatprep.subr.mxu0 0.0
  %2465 = vmatpush2.xpose.msra.mxu0 0.0
  %2466 = vmatprep.subr.mxu0 0.0
  %2467 = vmatpush2.xpose.msra.mxu0 0.0
  %2468 = vmatprep.subr.mxu0 0.0
  %2469 = vmatpush2.xpose.msra.mxu0 0.0
  %2470 = vmatprep.mubr.f32.mxu0 0.0
  %2471 = vmatmul.mubr.f32.gmra.mxu0 %v2395
  %v2472 = vpop.f32.mrf.mxu0
  %v2473 = vadd.f32 0.0, %v2472
  %v2474 = vpop.f32.mrf.mxu0
  %2475 = vmatprep.mubr.f32.mxu0 0.0
  %2476 = vmatmul.mubr.f32.gmra.mxu0 %v2398
  %v2477 = vpop.f32.mrf.mxu0
  %v2478 = vadd.f32 0.0, %v2477
  %v2479 = vpop.f32.mrf.mxu0
  %2480 = vdwg.mxu0
  %v2481 = vmul.f32 %v2473, 0.35355338
  %v2482 = vmul.f32 %v2478, 0.35355338
  %v2483 = vadd.f32 %v2481, %v184
  %v2484 = vadd.f32 %v2482, %v185
  %v2485 = vsel %vm520, %v2483, -inf
  %2486 = vmax.xlane.f32.xlu0 %v2485
  %v2487 = vpop.xlane.xlu0 %2486
  %v2488 = vsel %vm520, %v2484, -inf
  %2489 = vmax.xlane.f32.xlu0 %v2488
  %v2490 = vpop.xlane.xlu0 %2489
  %v2491 = vsub.f32 %v2483, %v2487
  %v2492 = vsub.f32 %v2484, %v2490
  %v2493 = vmul.f32 %v2491, 1.442695
  %v2494 = vpow.pop %v2493
  %v2495 = vmul.f32 %v2492, 1.442695
  %v2496 = vpow.pop %v2495
  %v2497 = vsel %vm520, %v2494, 0.0
  %2498 = vadd.xlane.f32.xlu0 %v2497
  %v2499 = vpop.xlane.xlu0 %2498
  %v2500 = vsel %vm520, %v2496, 0.0
  %2501 = vadd.xlane.f32.xlu0 %v2500
  %v2502 = vpop.xlane.xlu0 %2501
  %v2503 = vrcp.pop %v2499
  %v2504 = vrcp.pop %v2502
  %v2505 = vmul.f32 %v2494, %v2503
  %v2506 = vmul.f32 %v2496, %v2504
  %v2508 = vsel %vm520, %v2505, 0
  %v2511 = vsel %vm520, %v2506, 0
  %2513 = vmatprep.subr.mxu0 0.0
  %2514 = vmatpush1.msra.mxu0 0.0
  %2515 = vmatprep.subr.mxu0 0.0
  %2516 = vmatpush1.msra.mxu0 0.0
  %2517 = vmatprep.subr.mxu0 0.0
  %2518 = vmatpush1.msra.mxu0 0.0
  %2519 = vmatprep.subr.mxu0 0.0
  %2520 = vmatpush1.msra.mxu0 0.0
  %2521 = vmatprep.subr.mxu0 0.0
  %2522 = vmatpush1.msra.mxu0 0.0
  %2523 = vmatprep.subr.mxu0 0.0
  %2524 = vmatpush1.msra.mxu0 0.0
  %2525 = vmatprep.subr.mxu0 0.0
  %2526 = vmatpush1.msra.mxu0 0.0
  %2527 = vmatprep.subr.mxu0 0.0
  %2528 = vmatpush1.msra.mxu0 0.0
  %2529 = vmatprep.subr.mxu0 0.0
  %2530 = vmatpush1.msra.mxu0 0.0
  %2531 = vmatprep.subr.mxu0 0.0
  %2532 = vmatpush1.msra.mxu0 0.0
  %2533 = vmatprep.subr.mxu0 0.0
  %2534 = vmatpush1.msra.mxu0 0.0
  %2535 = vmatprep.subr.mxu0 0.0
  %2536 = vmatpush1.msra.mxu0 0.0
  %2537 = vmatprep.subr.mxu0 0.0
  %2538 = vmatpush1.msra.mxu0 0.0
  %2539 = vmatprep.subr.mxu0 0.0
  %2540 = vmatpush1.msra.mxu0 0.0
  %2541 = vmatprep.subr.mxu0 0.0
  %2542 = vmatpush1.msra.mxu0 %v2391
  %2543 = vmatprep.subr.mxu0 0.0
  %2544 = vmatpush1.msra.mxu0 %v2388
  %2545 = vmatprep.subr.mxu0 0.0
  %2546 = vmatpush2.msra.mxu0 0.0
  %2547 = vmatprep.subr.mxu0 0.0
  %2548 = vmatpush2.msra.mxu0 0.0
  %2549 = vmatprep.subr.mxu0 0.0
  %2550 = vmatpush2.msra.mxu0 0.0
  %2551 = vmatprep.subr.mxu0 0.0
  %2552 = vmatpush2.msra.mxu0 0.0
  %2553 = vmatprep.subr.mxu0 0.0
  %2554 = vmatpush2.msra.mxu0 0.0
  %2555 = vmatprep.subr.mxu0 0.0
  %2556 = vmatpush2.msra.mxu0 0.0
  %2557 = vmatprep.subr.mxu0 0.0
  %2558 = vmatpush2.msra.mxu0 0.0
  %2559 = vmatprep.subr.mxu0 0.0
  %2560 = vmatpush2.msra.mxu0 0.0
  %2561 = vmatprep.subr.mxu0 0.0
  %2562 = vmatpush2.msra.mxu0 0.0
  %2563 = vmatprep.subr.mxu0 0.0
  %2564 = vmatpush2.msra.mxu0 0.0
  %2565 = vmatprep.subr.mxu0 0.0
  %2566 = vmatpush2.msra.mxu0 0.0
  %2567 = vmatprep.subr.mxu0 0.0
  %2568 = vmatpush2.msra.mxu0 0.0
  %2569 = vmatprep.subr.mxu0 0.0
  %2570 = vmatpush2.msra.mxu0 0.0
  %2571 = vmatprep.subr.mxu0 0.0
  %2572 = vmatpush2.msra.mxu0 0.0
  %2573 = vmatprep.subr.mxu0 0.0
  %2574 = vmatpush2.msra.mxu0 0.0
  %2575 = vmatprep.subr.mxu0 0.0
  %2576 = vmatpush2.msra.mxu0 0.0
  %2577 = vmatprep.mubr.f32.mxu0 0.0
  %2578 = vmatmul.mubr.f32.gmra.mxu0 %v2508
  %v2579 = vpop.f32.mrf.mxu0
  %v2580 = vadd.f32 0.0, %v2579
  %v2581 = vpop.f32.mrf.mxu0
  %2582 = vmatprep.mubr.f32.mxu0 0.0
  %2583 = vmatmul.mubr.f32.gmra.mxu0 %v2511
  %v2584 = vpop.f32.mrf.mxu0
  %v2585 = vadd.f32 0.0, %v2584
  %v2586 = vpop.f32.mrf.mxu0
  %2587 = vdwg.mxu0
  %s2588 = scalar_lea.vmem %s6, 80
  %v2589 = vld [vmem:[%s2588] sm:$0xf]
  %v2590 = vld [vmem:[%s2588 + $0x4] sm:$0xf]
  %v2591 = vld [vmem:[%s2588 + $0x8] sm:$0xf]
  %v2592 = vld [vmem:[%s2588 + $0xc] sm:$0xf]
  %s2593 = scalar_lea.vmem %s7, 5
  %v2594 = vld [vmem:[%s2593] sm:$0x1]
  %v2596 = vlaneseq
  %v2597 = vshrl.u32 %v2596, 7
  %v2598 = vsub.s32 0, %v2597
  %v2599 = vrot.slane %v2594, %v2598
  %v2605 = vunpack.c.l.b16 %v2589
  %v2606 = vunpack.c.l.b16 %v2590
  %v2607 = vunpack.c.l.b16 %v2591
  %v2608 = vunpack.c.l.b16 %v2592
  %v2609 = vpack.c.b16 %v2606, %v2605
  %v2610 = vpack.c.b16 %v2608, %v2607
  %2613 = vmatprep.subr.bf16.mxu0 0
  %2614 = vmatpush1.bf16.msra.mxu0 0
  %2615 = vmatprep.subr.bf16.mxu0 0
  %2616 = vmatpush1.bf16.msra.mxu0 0
  %2617 = vmatprep.subr.bf16.mxu0 0
  %2618 = vmatpush1.bf16.msra.mxu0 0
  %2619 = vmatprep.subr.bf16.mxu0 0
  %2620 = vmatpush1.bf16.msra.mxu0 0
  %2621 = vmatprep.subr.bf16.mxu0 0
  %2622 = vmatpush1.bf16.msra.mxu0 0
  %2623 = vmatprep.subr.bf16.mxu0 0
  %2624 = vmatpush1.bf16.msra.mxu0 0
  %2625 = vmatprep.subr.bf16.mxu0 0
  %2626 = vmatpush1.bf16.msra.mxu0 %v2610
  %2627 = vmatprep.subr.bf16.mxu0 0
  %2628 = vmatpush1.bf16.msra.mxu0 %v2609
  %2629 = vmatprep.subr.bf16.mxu0 0
  %2630 = vmatpush2.bf16.msra.mxu0 0
  %2631 = vmatprep.subr.bf16.mxu0 0
  %2632 = vmatpush2.bf16.msra.mxu0 0
  %2633 = vmatprep.subr.bf16.mxu0 0
  %2634 = vmatpush2.bf16.msra.mxu0 0
  %2635 = vmatprep.subr.bf16.mxu0 0
  %2636 = vmatpush2.bf16.msra.mxu0 0
  %2637 = vmatprep.subr.bf16.mxu0 0
  %2638 = vmatpush2.bf16.msra.mxu0 0
  %2639 = vmatprep.subr.bf16.mxu0 0
  %2640 = vmatpush2.bf16.msra.mxu0 0
  %2641 = vmatprep.subr.bf16.mxu0 0
  %2642 = vmatpush2.bf16.msra.mxu0 0
  %2643 = vmatprep.subr.bf16.mxu0 0
  %2644 = vmatpush2.bf16.msra.mxu0 0
  %2645 = vmatprep.mubr.bf16.mxu0 0
  %2646 = vmatmul.mubr.bf16.gmra.mxu0 %v2219
  %v2647 = vpop.f32.mrf.mxu0
  %v2648 = vadd.f32 %v2599, %v2647
  %v2649 = vpop.f32.mrf.mxu0
  %v2650 = vpop.f32.mrf.mxu0
  %v2651 = vadd.f32 %v2599, %v2650
  %v2652 = vpop.f32.mrf.mxu0
  %2653 = vdwg.mxu0
  %s2654 = scalar_lea.vmem %s8, 80
  %v2655 = vld [vmem:[%s2654] sm:$0xf]
  %v2656 = vld [vmem:[%s2654 + $0x4] sm:$0xf]
  %v2657 = vld [vmem:[%s2654 + $0x8] sm:$0xf]
  %v2658 = vld [vmem:[%s2654 + $0xc] sm:$0xf]
  %s2659 = scalar_lea.vmem %s9, 5
  %v2660 = vld [vmem:[%s2659] sm:$0x1]
  %v2662 = vlaneseq
  %v2663 = vshrl.u32 %v2662, 7
  %v2664 = vsub.s32 0, %v2663
  %v2665 = vrot.slane %v2660, %v2664
  %v2671 = vunpack.c.l.b16 %v2655
  %v2672 = vunpack.c.l.b16 %v2656
  %v2673 = vunpack.c.l.b16 %v2657
  %v2674 = vunpack.c.l.b16 %v2658
  %v2675 = vpack.c.b16 %v2672, %v2671
  %v2676 = vpack.c.b16 %v2674, %v2673
  %2679 = vmatprep.subr.bf16.mxu0 0
  %2680 = vmatpush1.bf16.msra.mxu0 0
  %2681 = vmatprep.subr.bf16.mxu0 0
  %2682 = vmatpush1.bf16.msra.mxu0 0
  %2683 = vmatprep.subr.bf16.mxu0 0
  %2684 = vmatpush1.bf16.msra.mxu0 0
  %2685 = vmatprep.subr.bf16.mxu0 0
  %2686 = vmatpush1.bf16.msra.mxu0 0
  %2687 = vmatprep.subr.bf16.mxu0 0
  %2688 = vmatpush1.bf16.msra.mxu0 0
  %2689 = vmatprep.subr.bf16.mxu0 0
  %2690 = vmatpush1.bf16.msra.mxu0 0
  %2691 = vmatprep.subr.bf16.mxu0 0
  %2692 = vmatpush1.bf16.msra.mxu0 %v2676
  %2693 = vmatprep.subr.bf16.mxu0 0
  %2694 = vmatpush1.bf16.msra.mxu0 %v2675
  %2695 = vmatprep.subr.bf16.mxu0 0
  %2696 = vmatpush2.bf16.msra.mxu0 0
  %2697 = vmatprep.subr.bf16.mxu0 0
  %2698 = vmatpush2.bf16.msra.mxu0 0
  %2699 = vmatprep.subr.bf16.mxu0 0
  %2700 = vmatpush2.bf16.msra.mxu0 0
  %2701 = vmatprep.subr.bf16.mxu0 0
  %2702 = vmatpush2.bf16.msra.mxu0 0
  %2703 = vmatprep.subr.bf16.mxu0 0
  %2704 = vmatpush2.bf16.msra.mxu0 0
  %2705 = vmatprep.subr.bf16.mxu0 0
  %2706 = vmatpush2.bf16.msra.mxu0 0
  %2707 = vmatprep.subr.bf16.mxu0 0
  %2708 = vmatpush2.bf16.msra.mxu0 0
  %2709 = vmatprep.subr.bf16.mxu0 0
  %2710 = vmatpush2.bf16.msra.mxu0 0
  %2711 = vmatprep.mubr.bf16.mxu0 0
  %2712 = vmatmul.mubr.bf16.gmra.mxu0 %v2219
  %v2713 = vpop.f32.mrf.mxu0
  %v2714 = vadd.f32 %v2665, %v2713
  %v2715 = vpop.f32.mrf.mxu0
  %v2716 = vpop.f32.mrf.mxu0
  %v2717 = vadd.f32 %v2665, %v2716
  %v2718 = vpop.f32.mrf.mxu0
  %2719 = vdwg.mxu0
  %s2720 = scalar_lea.vmem %s10, 80
  %v2721 = vld [vmem:[%s2720] sm:$0xf]
  %v2722 = vld [vmem:[%s2720 + $0x4] sm:$0xf]
  %v2723 = vld [vmem:[%s2720 + $0x8] sm:$0xf]
  %v2724 = vld [vmem:[%s2720 + $0xc] sm:$0xf]
  %s2725 = scalar_lea.vmem %s11, 5
  %v2726 = vld [vmem:[%s2725] sm:$0x1]
  %v2728 = vlaneseq
  %v2729 = vshrl.u32 %v2728, 7
  %v2730 = vsub.s32 0, %v2729
  %v2731 = vrot.slane %v2726, %v2730
  %v2737 = vunpack.c.l.b16 %v2721
  %v2738 = vunpack.c.l.b16 %v2722
  %v2739 = vunpack.c.l.b16 %v2723
  %v2740 = vunpack.c.l.b16 %v2724
  %v2741 = vpack.c.b16 %v2738, %v2737
  %v2742 = vpack.c.b16 %v2740, %v2739
  %2745 = vmatprep.subr.bf16.mxu0 0
  %2746 = vmatpush1.bf16.msra.mxu0 0
  %2747 = vmatprep.subr.bf16.mxu0 0
  %2748 = vmatpush1.bf16.msra.mxu0 0
  %2749 = vmatprep.subr.bf16.mxu0 0
  %2750 = vmatpush1.bf16.msra.mxu0 0
  %2751 = vmatprep.subr.bf16.mxu0 0
  %2752 = vmatpush1.bf16.msra.mxu0 0
  %2753 = vmatprep.subr.bf16.mxu0 0
  %2754 = vmatpush1.bf16.msra.mxu0 0
  %2755 = vmatprep.subr.bf16.mxu0 0
  %2756 = vmatpush1.bf16.msra.mxu0 0
  %2757 = vmatprep.subr.bf16.mxu0 0
  %2758 = vmatpush1.bf16.msra.mxu0 %v2742
  %2759 = vmatprep.subr.bf16.mxu0 0
  %2760 = vmatpush1.bf16.msra.mxu0 %v2741
  %2761 = vmatprep.subr.bf16.mxu0 0
  %2762 = vmatpush2.bf16.msra.mxu0 0
  %2763 = vmatprep.subr.bf16.mxu0 0
  %2764 = vmatpush2.bf16.msra.mxu0 0
  %2765 = vmatprep.subr.bf16.mxu0 0
  %2766 = vmatpush2.bf16.msra.mxu0 0
  %2767 = vmatprep.subr.bf16.mxu0 0
  %2768 = vmatpush2.bf16.msra.mxu0 0
  %2769 = vmatprep.subr.bf16.mxu0 0
  %2770 = vmatpush2.bf16.msra.mxu0 0
  %2771 = vmatprep.subr.bf16.mxu0 0
  %2772 = vmatpush2.bf16.msra.mxu0 0
  %2773 = vmatprep.subr.bf16.mxu0 0
  %2774 = vmatpush2.bf16.msra.mxu0 0
  %2775 = vmatprep.subr.bf16.mxu0 0
  %2776 = vmatpush2.bf16.msra.mxu0 0
  %2777 = vmatprep.mubr.bf16.mxu0 0
  %2778 = vmatmul.mubr.bf16.gmra.mxu0 %v2219
  %v2779 = vpop.f32.mrf.mxu0
  %v2780 = vadd.f32 %v2731, %v2779
  %v2781 = vpop.f32.mrf.mxu0
  %v2782 = vpop.f32.mrf.mxu0
  %v2783 = vadd.f32 %v2731, %v2782
  %v2784 = vpop.f32.mrf.mxu0
  %2785 = vdwg.mxu0
  %v2787 = vsel %vm428, %v2648, 0
  %v2790 = vsel %vm428, %v2651, 0
  %v2793 = vsel %vm428, %v2714, 0
  %v2796 = vsel %vm428, %v2717, 0
  %2798 = vmatprep.subr.mxu0 0.0
  %2799 = vmatpush1.xpose.msra.mxu0 0.0
  %2800 = vmatprep.subr.mxu0 0.0
  %2801 = vmatpush1.xpose.msra.mxu0 0.0
  %2802 = vmatprep.subr.mxu0 0.0
  %2803 = vmatpush1.xpose.msra.mxu0 0.0
  %2804 = vmatprep.subr.mxu0 0.0
  %2805 = vmatpush1.xpose.msra.mxu0 0.0
  %2806 = vmatprep.subr.mxu0 0.0
  %2807 = vmatpush1.xpose.msra.mxu0 0.0
  %2808 = vmatprep.subr.mxu0 0.0
  %2809 = vmatpush1.xpose.msra.mxu0 0.0
  %2810 = vmatprep.subr.mxu0 0.0
  %2811 = vmatpush1.xpose.msra.mxu0 0.0
  %2812 = vmatprep.subr.mxu0 0.0
  %2813 = vmatpush1.xpose.msra.mxu0 0.0
  %2814 = vmatprep.subr.mxu0 0.0
  %2815 = vmatpush1.xpose.msra.mxu0 0.0
  %2816 = vmatprep.subr.mxu0 0.0
  %2817 = vmatpush1.xpose.msra.mxu0 0.0
  %2818 = vmatprep.subr.mxu0 0.0
  %2819 = vmatpush1.xpose.msra.mxu0 0.0
  %2820 = vmatprep.subr.mxu0 0.0
  %2821 = vmatpush1.xpose.msra.mxu0 0.0
  %2822 = vmatprep.subr.mxu0 0.0
  %2823 = vmatpush1.xpose.msra.mxu0 0.0
  %2824 = vmatprep.subr.mxu0 0.0
  %2825 = vmatpush1.xpose.msra.mxu0 0.0
  %2826 = vmatprep.subr.mxu0 0.0
  %2827 = vmatpush1.xpose.msra.mxu0 %v2796
  %2828 = vmatprep.subr.mxu0 0.0
  %2829 = vmatpush1.xpose.msra.mxu0 %v2793
  %2830 = vmatprep.subr.mxu0 0.0
  %2831 = vmatpush2.xpose.msra.mxu0 0.0
  %2832 = vmatprep.subr.mxu0 0.0
  %2833 = vmatpush2.xpose.msra.mxu0 0.0
  %2834 = vmatprep.subr.mxu0 0.0
  %2835 = vmatpush2.xpose.msra.mxu0 0.0
  %2836 = vmatprep.subr.mxu0 0.0
  %2837 = vmatpush2.xpose.msra.mxu0 0.0
  %2838 = vmatprep.subr.mxu0 0.0
  %2839 = vmatpush2.xpose.msra.mxu0 0.0
  %2840 = vmatprep.subr.mxu0 0.0
  %2841 = vmatpush2.xpose.msra.mxu0 0.0
  %2842 = vmatprep.subr.mxu0 0.0
  %2843 = vmatpush2.xpose.msra.mxu0 0.0
  %2844 = vmatprep.subr.mxu0 0.0
  %2845 = vmatpush2.xpose.msra.mxu0 0.0
  %2846 = vmatprep.subr.mxu0 0.0
  %2847 = vmatpush2.xpose.msra.mxu0 0.0
  %2848 = vmatprep.subr.mxu0 0.0
  %2849 = vmatpush2.xpose.msra.mxu0 0.0
  %2850 = vmatprep.subr.mxu0 0.0
  %2851 = vmatpush2.xpose.msra.mxu0 0.0
  %2852 = vmatprep.subr.mxu0 0.0
  %2853 = vmatpush2.xpose.msra.mxu0 0.0
  %2854 = vmatprep.subr.mxu0 0.0
  %2855 = vmatpush2.xpose.msra.mxu0 0.0
  %2856 = vmatprep.subr.mxu0 0.0
  %2857 = vmatpush2.xpose.msra.mxu0 0.0
  %2858 = vmatprep.subr.mxu0 0.0
  %2859 = vmatpush2.xpose.msra.mxu0 0.0
  %2860 = vmatprep.subr.mxu0 0.0
  %2861 = vmatpush2.xpose.msra.mxu0 0.0
  %2862 = vmatprep.mubr.f32.mxu0 0.0
  %2863 = vmatmul.mubr.f32.gmra.mxu0 %v2787
  %v2864 = vpop.f32.mrf.mxu0
  %v2865 = vadd.f32 0.0, %v2864
  %v2866 = vpop.f32.mrf.mxu0
  %2867 = vmatprep.mubr.f32.mxu0 0.0
  %2868 = vmatmul.mubr.f32.gmra.mxu0 %v2790
  %v2869 = vpop.f32.mrf.mxu0
  %v2870 = vadd.f32 0.0, %v2869
  %v2871 = vpop.f32.mrf.mxu0
  %2872 = vdwg.mxu0
  %v2873 = vmul.f32 %v2865, 0.35355338
  %v2874 = vmul.f32 %v2870, 0.35355338
  %v2875 = vadd.f32 %v2873, %v184
  %v2876 = vadd.f32 %v2874, %v185
  %v2877 = vsel %vm520, %v2875, -inf
  %2878 = vmax.xlane.f32.xlu0 %v2877
  %v2879 = vpop.xlane.xlu0 %2878
  %v2880 = vsel %vm520, %v2876, -inf
  %2881 = vmax.xlane.f32.xlu0 %v2880
  %v2882 = vpop.xlane.xlu0 %2881
  %v2883 = vsub.f32 %v2875, %v2879
  %v2884 = vsub.f32 %v2876, %v2882
  %v2885 = vmul.f32 %v2883, 1.442695
  %v2886 = vpow.pop %v2885
  %v2887 = vmul.f32 %v2884, 1.442695
  %v2888 = vpow.pop %v2887
  %v2889 = vsel %vm520, %v2886, 0.0
  %2890 = vadd.xlane.f32.xlu0 %v2889
  %v2891 = vpop.xlane.xlu0 %2890
  %v2892 = vsel %vm520, %v2888, 0.0
  %2893 = vadd.xlane.f32.xlu0 %v2892
  %v2894 = vpop.xlane.xlu0 %2893
  %v2895 = vrcp.pop %v2891
  %v2896 = vrcp.pop %v2894
  %v2897 = vmul.f32 %v2886, %v2895
  %v2898 = vmul.f32 %v2888, %v2896
  %v2900 = vsel %vm520, %v2897, 0
  %v2903 = vsel %vm520, %v2898, 0
  %2905 = vmatprep.subr.mxu0 0.0
  %2906 = vmatpush1.msra.mxu0 0.0
  %2907 = vmatprep.subr.mxu0 0.0
  %2908 = vmatpush1.msra.mxu0 0.0
  %2909 = vmatprep.subr.mxu0 0.0
  %2910 = vmatpush1.msra.mxu0 0.0
  %2911 = vmatprep.subr.mxu0 0.0
  %2912 = vmatpush1.msra.mxu0 0.0
  %2913 = vmatprep.subr.mxu0 0.0
  %2914 = vmatpush1.msra.mxu0 0.0
  %2915 = vmatprep.subr.mxu0 0.0
  %2916 = vmatpush1.msra.mxu0 0.0
  %2917 = vmatprep.subr.mxu0 0.0
  %2918 = vmatpush1.msra.mxu0 0.0
  %2919 = vmatprep.subr.mxu0 0.0
  %2920 = vmatpush1.msra.mxu0 0.0
  %2921 = vmatprep.subr.mxu0 0.0
  %2922 = vmatpush1.msra.mxu0 0.0
  %2923 = vmatprep.subr.mxu0 0.0
  %2924 = vmatpush1.msra.mxu0 0.0
  %2925 = vmatprep.subr.mxu0 0.0
  %2926 = vmatpush1.msra.mxu0 0.0
  %2927 = vmatprep.subr.mxu0 0.0
  %2928 = vmatpush1.msra.mxu0 0.0
  %2929 = vmatprep.subr.mxu0 0.0
  %2930 = vmatpush1.msra.mxu0 0.0
  %2931 = vmatprep.subr.mxu0 0.0
  %2932 = vmatpush1.msra.mxu0 0.0
  %2933 = vmatprep.subr.mxu0 0.0
  %2934 = vmatpush1.msra.mxu0 %v2783
  %2935 = vmatprep.subr.mxu0 0.0
  %2936 = vmatpush1.msra.mxu0 %v2780
  %2937 = vmatprep.subr.mxu0 0.0
  %2938 = vmatpush2.msra.mxu0 0.0
  %2939 = vmatprep.subr.mxu0 0.0
  %2940 = vmatpush2.msra.mxu0 0.0
  %2941 = vmatprep.subr.mxu0 0.0
  %2942 = vmatpush2.msra.mxu0 0.0
  %2943 = vmatprep.subr.mxu0 0.0
  %2944 = vmatpush2.msra.mxu0 0.0
  %2945 = vmatprep.subr.mxu0 0.0
  %2946 = vmatpush2.msra.mxu0 0.0
  %2947 = vmatprep.subr.mxu0 0.0
  %2948 = vmatpush2.msra.mxu0 0.0
  %2949 = vmatprep.subr.mxu0 0.0
  %2950 = vmatpush2.msra.mxu0 0.0
  %2951 = vmatprep.subr.mxu0 0.0
  %2952 = vmatpush2.msra.mxu0 0.0
  %2953 = vmatprep.subr.mxu0 0.0
  %2954 = vmatpush2.msra.mxu0 0.0
  %2955 = vmatprep.subr.mxu0 0.0
  %2956 = vmatpush2.msra.mxu0 0.0
  %2957 = vmatprep.subr.mxu0 0.0
  %2958 = vmatpush2.msra.mxu0 0.0
  %2959 = vmatprep.subr.mxu0 0.0
  %2960 = vmatpush2.msra.mxu0 0.0
  %2961 = vmatprep.subr.mxu0 0.0
  %2962 = vmatpush2.msra.mxu0 0.0
  %2963 = vmatprep.subr.mxu0 0.0
  %2964 = vmatpush2.msra.mxu0 0.0
  %2965 = vmatprep.subr.mxu0 0.0
  %2966 = vmatpush2.msra.mxu0 0.0
  %2967 = vmatprep.subr.mxu0 0.0
  %2968 = vmatpush2.msra.mxu0 0.0
  %2969 = vmatprep.mubr.f32.mxu0 0.0
  %2970 = vmatmul.mubr.f32.gmra.mxu0 %v2900
  %v2971 = vpop.f32.mrf.mxu0
  %v2972 = vadd.f32 0.0, %v2971
  %v2973 = vpop.f32.mrf.mxu0
  %2974 = vmatprep.mubr.f32.mxu0 0.0
  %2975 = vmatmul.mubr.f32.gmra.mxu0 %v2903
  %v2976 = vpop.f32.mrf.mxu0
  %v2977 = vadd.f32 0.0, %v2976
  %v2978 = vpop.f32.mrf.mxu0
  %2979 = vdwg.mxu0
  %s2980 = scalar_lea.vmem %s6, 96
  %v2981 = vld [vmem:[%s2980] sm:$0xf]
  %v2982 = vld [vmem:[%s2980 + $0x4] sm:$0xf]
  %v2983 = vld [vmem:[%s2980 + $0x8] sm:$0xf]
  %v2984 = vld [vmem:[%s2980 + $0xc] sm:$0xf]
  %s2985 = scalar_lea.vmem %s7, 6
  %v2986 = vld [vmem:[%s2985] sm:$0x1]
  %v2988 = vlaneseq
  %v2989 = vshrl.u32 %v2988, 7
  %v2990 = vsub.s32 0, %v2989
  %v2991 = vrot.slane %v2986, %v2990
  %v2997 = vunpack.c.l.b16 %v2981
  %v2998 = vunpack.c.l.b16 %v2982
  %v2999 = vunpack.c.l.b16 %v2983
  %v3000 = vunpack.c.l.b16 %v2984
  %v3001 = vpack.c.b16 %v2998, %v2997
  %v3002 = vpack.c.b16 %v3000, %v2999
  %3005 = vmatprep.subr.bf16.mxu0 0
  %3006 = vmatpush1.bf16.msra.mxu0 0
  %3007 = vmatprep.subr.bf16.mxu0 0
  %3008 = vmatpush1.bf16.msra.mxu0 0
  %3009 = vmatprep.subr.bf16.mxu0 0
  %3010 = vmatpush1.bf16.msra.mxu0 0
  %3011 = vmatprep.subr.bf16.mxu0 0
  %3012 = vmatpush1.bf16.msra.mxu0 0
  %3013 = vmatprep.subr.bf16.mxu0 0
  %3014 = vmatpush1.bf16.msra.mxu0 0
  %3015 = vmatprep.subr.bf16.mxu0 0
  %3016 = vmatpush1.bf16.msra.mxu0 0
  %3017 = vmatprep.subr.bf16.mxu0 0
  %3018 = vmatpush1.bf16.msra.mxu0 %v3002
  %3019 = vmatprep.subr.bf16.mxu0 0
  %3020 = vmatpush1.bf16.msra.mxu0 %v3001
  %3021 = vmatprep.subr.bf16.mxu0 0
  %3022 = vmatpush2.bf16.msra.mxu0 0
  %3023 = vmatprep.subr.bf16.mxu0 0
  %3024 = vmatpush2.bf16.msra.mxu0 0
  %3025 = vmatprep.subr.bf16.mxu0 0
  %3026 = vmatpush2.bf16.msra.mxu0 0
  %3027 = vmatprep.subr.bf16.mxu0 0
  %3028 = vmatpush2.bf16.msra.mxu0 0
  %3029 = vmatprep.subr.bf16.mxu0 0
  %3030 = vmatpush2.bf16.msra.mxu0 0
  %3031 = vmatprep.subr.bf16.mxu0 0
  %3032 = vmatpush2.bf16.msra.mxu0 0
  %3033 = vmatprep.subr.bf16.mxu0 0
  %3034 = vmatpush2.bf16.msra.mxu0 0
  %3035 = vmatprep.subr.bf16.mxu0 0
  %3036 = vmatpush2.bf16.msra.mxu0 0
  %3037 = vmatprep.mubr.bf16.mxu0 0
  %3038 = vmatmul.mubr.bf16.gmra.mxu0 %v2219
  %v3039 = vpop.f32.mrf.mxu0
  %v3040 = vadd.f32 %v2991, %v3039
  %v3041 = vpop.f32.mrf.mxu0
  %v3042 = vpop.f32.mrf.mxu0
  %v3043 = vadd.f32 %v2991, %v3042
  %v3044 = vpop.f32.mrf.mxu0
  %3045 = vdwg.mxu0
  %s3046 = scalar_lea.vmem %s8, 96
  %v3047 = vld [vmem:[%s3046] sm:$0xf]
  %v3048 = vld [vmem:[%s3046 + $0x4] sm:$0xf]
  %v3049 = vld [vmem:[%s3046 + $0x8] sm:$0xf]
  %v3050 = vld [vmem:[%s3046 + $0xc] sm:$0xf]
  %s3051 = scalar_lea.vmem %s9, 6
  %v3052 = vld [vmem:[%s3051] sm:$0x1]
  %v3054 = vlaneseq
  %v3055 = vshrl.u32 %v3054, 7
  %v3056 = vsub.s32 0, %v3055
  %v3057 = vrot.slane %v3052, %v3056
  %v3063 = vunpack.c.l.b16 %v3047
  %v3064 = vunpack.c.l.b16 %v3048
  %v3065 = vunpack.c.l.b16 %v3049
  %v3066 = vunpack.c.l.b16 %v3050
  %v3067 = vpack.c.b16 %v3064, %v3063
  %v3068 = vpack.c.b16 %v3066, %v3065
  %3071 = vmatprep.subr.bf16.mxu0 0
  %3072 = vmatpush1.bf16.msra.mxu0 0
  %3073 = vmatprep.subr.bf16.mxu0 0
  %3074 = vmatpush1.bf16.msra.mxu0 0
  %3075 = vmatprep.subr.bf16.mxu0 0
  %3076 = vmatpush1.bf16.msra.mxu0 0
  %3077 = vmatprep.subr.bf16.mxu0 0
  %3078 = vmatpush1.bf16.msra.mxu0 0
  %3079 = vmatprep.subr.bf16.mxu0 0
  %3080 = vmatpush1.bf16.msra.mxu0 0
  %3081 = vmatprep.subr.bf16.mxu0 0
  %3082 = vmatpush1.bf16.msra.mxu0 0
  %3083 = vmatprep.subr.bf16.mxu0 0
  %3084 = vmatpush1.bf16.msra.mxu0 %v3068
  %3085 = vmatprep.subr.bf16.mxu0 0
  %3086 = vmatpush1.bf16.msra.mxu0 %v3067
  %3087 = vmatprep.subr.bf16.mxu0 0
  %3088 = vmatpush2.bf16.msra.mxu0 0
  %3089 = vmatprep.subr.bf16.mxu0 0
  %3090 = vmatpush2.bf16.msra.mxu0 0
  %3091 = vmatprep.subr.bf16.mxu0 0
  %3092 = vmatpush2.bf16.msra.mxu0 0
  %3093 = vmatprep.subr.bf16.mxu0 0
  %3094 = vmatpush2.bf16.msra.mxu0 0
  %3095 = vmatprep.subr.bf16.mxu0 0
  %3096 = vmatpush2.bf16.msra.mxu0 0
  %3097 = vmatprep.subr.bf16.mxu0 0
  %3098 = vmatpush2.bf16.msra.mxu0 0
  %3099 = vmatprep.subr.bf16.mxu0 0
  %3100 = vmatpush2.bf16.msra.mxu0 0
  %3101 = vmatprep.subr.bf16.mxu0 0
  %3102 = vmatpush2.bf16.msra.mxu0 0
  %3103 = vmatprep.mubr.bf16.mxu0 0
  %3104 = vmatmul.mubr.bf16.gmra.mxu0 %v2219
  %v3105 = vpop.f32.mrf.mxu0
  %v3106 = vadd.f32 %v3057, %v3105
  %v3107 = vpop.f32.mrf.mxu0
  %v3108 = vpop.f32.mrf.mxu0
  %v3109 = vadd.f32 %v3057, %v3108
  %v3110 = vpop.f32.mrf.mxu0
  %3111 = vdwg.mxu0
  %s3112 = scalar_lea.vmem %s10, 96
  %v3113 = vld [vmem:[%s3112] sm:$0xf]
  %v3114 = vld [vmem:[%s3112 + $0x4] sm:$0xf]
  %v3115 = vld [vmem:[%s3112 + $0x8] sm:$0xf]
  %v3116 = vld [vmem:[%s3112 + $0xc] sm:$0xf]
  %s3117 = scalar_lea.vmem %s11, 6
  %v3118 = vld [vmem:[%s3117] sm:$0x1]
  %v3120 = vlaneseq
  %v3121 = vshrl.u32 %v3120, 7
  %v3122 = vsub.s32 0, %v3121
  %v3123 = vrot.slane %v3118, %v3122
  %v3129 = vunpack.c.l.b16 %v3113
  %v3130 = vunpack.c.l.b16 %v3114
  %v3131 = vunpack.c.l.b16 %v3115
  %v3132 = vunpack.c.l.b16 %v3116
  %v3133 = vpack.c.b16 %v3130, %v3129
  %v3134 = vpack.c.b16 %v3132, %v3131
  %3137 = vmatprep.subr.bf16.mxu0 0
  %3138 = vmatpush1.bf16.msra.mxu0 0
  %3139 = vmatprep.subr.bf16.mxu0 0
  %3140 = vmatpush1.bf16.msra.mxu0 0
  %3141 = vmatprep.subr.bf16.mxu0 0
  %3142 = vmatpush1.bf16.msra.mxu0 0
  %3143 = vmatprep.subr.bf16.mxu0 0
  %3144 = vmatpush1.bf16.msra.mxu0 0
  %3145 = vmatprep.subr.bf16.mxu0 0
  %3146 = vmatpush1.bf16.msra.mxu0 0
  %3147 = vmatprep.subr.bf16.mxu0 0
  %3148 = vmatpush1.bf16.msra.mxu0 0
  %3149 = vmatprep.subr.bf16.mxu0 0
  %3150 = vmatpush1.bf16.msra.mxu0 %v3134
  %3151 = vmatprep.subr.bf16.mxu0 0
  %3152 = vmatpush1.bf16.msra.mxu0 %v3133
  %3153 = vmatprep.subr.bf16.mxu0 0
  %3154 = vmatpush2.bf16.msra.mxu0 0
  %3155 = vmatprep.subr.bf16.mxu0 0
  %3156 = vmatpush2.bf16.msra.mxu0 0
  %3157 = vmatprep.subr.bf16.mxu0 0
  %3158 = vmatpush2.bf16.msra.mxu0 0
  %3159 = vmatprep.subr.bf16.mxu0 0
  %3160 = vmatpush2.bf16.msra.mxu0 0
  %3161 = vmatprep.subr.bf16.mxu0 0
  %3162 = vmatpush2.bf16.msra.mxu0 0
  %3163 = vmatprep.subr.bf16.mxu0 0
  %3164 = vmatpush2.bf16.msra.mxu0 0
  %3165 = vmatprep.subr.bf16.mxu0 0
  %3166 = vmatpush2.bf16.msra.mxu0 0
  %3167 = vmatprep.subr.bf16.mxu0 0
  %3168 = vmatpush2.bf16.msra.mxu0 0
  %3169 = vmatprep.mubr.bf16.mxu0 0
  %3170 = vmatmul.mubr.bf16.gmra.mxu0 %v2219
  %v3171 = vpop.f32.mrf.mxu0
  %v3172 = vadd.f32 %v3123, %v3171
  %v3173 = vpop.f32.mrf.mxu0
  %v3174 = vpop.f32.mrf.mxu0
  %v3175 = vadd.f32 %v3123, %v3174
  %v3176 = vpop.f32.mrf.mxu0
  %3177 = vdwg.mxu0
  %v3179 = vsel %vm428, %v3040, 0
  %v3182 = vsel %vm428, %v3043, 0
  %v3185 = vsel %vm428, %v3106, 0
  %v3188 = vsel %vm428, %v3109, 0
  %3190 = vmatprep.subr.mxu0 0.0
  %3191 = vmatpush1.xpose.msra.mxu0 0.0
  %3192 = vmatprep.subr.mxu0 0.0
  %3193 = vmatpush1.xpose.msra.mxu0 0.0
  %3194 = vmatprep.subr.mxu0 0.0
  %3195 = vmatpush1.xpose.msra.mxu0 0.0
  %3196 = vmatprep.subr.mxu0 0.0
  %3197 = vmatpush1.xpose.msra.mxu0 0.0
  %3198 = vmatprep.subr.mxu0 0.0
  %3199 = vmatpush1.xpose.msra.mxu0 0.0
  %3200 = vmatprep.subr.mxu0 0.0
  %3201 = vmatpush1.xpose.msra.mxu0 0.0
  %3202 = vmatprep.subr.mxu0 0.0
  %3203 = vmatpush1.xpose.msra.mxu0 0.0
  %3204 = vmatprep.subr.mxu0 0.0
  %3205 = vmatpush1.xpose.msra.mxu0 0.0
  %3206 = vmatprep.subr.mxu0 0.0
  %3207 = vmatpush1.xpose.msra.mxu0 0.0
  %3208 = vmatprep.subr.mxu0 0.0
  %3209 = vmatpush1.xpose.msra.mxu0 0.0
  %3210 = vmatprep.subr.mxu0 0.0
  %3211 = vmatpush1.xpose.msra.mxu0 0.0
  %3212 = vmatprep.subr.mxu0 0.0
  %3213 = vmatpush1.xpose.msra.mxu0 0.0
  %3214 = vmatprep.subr.mxu0 0.0
  %3215 = vmatpush1.xpose.msra.mxu0 0.0
  %3216 = vmatprep.subr.mxu0 0.0
  %3217 = vmatpush1.xpose.msra.mxu0 0.0
  %3218 = vmatprep.subr.mxu0 0.0
  %3219 = vmatpush1.xpose.msra.mxu0 %v3188
  %3220 = vmatprep.subr.mxu0 0.0
  %3221 = vmatpush1.xpose.msra.mxu0 %v3185
  %3222 = vmatprep.subr.mxu0 0.0
  %3223 = vmatpush2.xpose.msra.mxu0 0.0
  %3224 = vmatprep.subr.mxu0 0.0
  %3225 = vmatpush2.xpose.msra.mxu0 0.0
  %3226 = vmatprep.subr.mxu0 0.0
  %3227 = vmatpush2.xpose.msra.mxu0 0.0
  %3228 = vmatprep.subr.mxu0 0.0
  %3229 = vmatpush2.xpose.msra.mxu0 0.0
  %3230 = vmatprep.subr.mxu0 0.0
  %3231 = vmatpush2.xpose.msra.mxu0 0.0
  %3232 = vmatprep.subr.mxu0 0.0
  %3233 = vmatpush2.xpose.msra.mxu0 0.0
  %3234 = vmatprep.subr.mxu0 0.0
  %3235 = vmatpush2.xpose.msra.mxu0 0.0
  %3236 = vmatprep.subr.mxu0 0.0
  %3237 = vmatpush2.xpose.msra.mxu0 0.0
  %3238 = vmatprep.subr.mxu0 0.0
  %3239 = vmatpush2.xpose.msra.mxu0 0.0
  %3240 = vmatprep.subr.mxu0 0.0
  %3241 = vmatpush2.xpose.msra.mxu0 0.0
  %3242 = vmatprep.subr.mxu0 0.0
  %3243 = vmatpush2.xpose.msra.mxu0 0.0
  %3244 = vmatprep.subr.mxu0 0.0
  %3245 = vmatpush2.xpose.msra.mxu0 0.0
  %3246 = vmatprep.subr.mxu0 0.0
  %3247 = vmatpush2.xpose.msra.mxu0 0.0
  %3248 = vmatprep.subr.mxu0 0.0
  %3249 = vmatpush2.xpose.msra.mxu0 0.0
  %3250 = vmatprep.subr.mxu0 0.0
  %3251 = vmatpush2.xpose.msra.mxu0 0.0
  %3252 = vmatprep.subr.mxu0 0.0
  %3253 = vmatpush2.xpose.msra.mxu0 0.0
  %3254 = vmatprep.mubr.f32.mxu0 0.0
  %3255 = vmatmul.mubr.f32.gmra.mxu0 %v3179
  %v3256 = vpop.f32.mrf.mxu0
  %v3257 = vadd.f32 0.0, %v3256
  %v3258 = vpop.f32.mrf.mxu0
  %3259 = vmatprep.mubr.f32.mxu0 0.0
  %3260 = vmatmul.mubr.f32.gmra.mxu0 %v3182
  %v3261 = vpop.f32.mrf.mxu0
  %v3262 = vadd.f32 0.0, %v3261
  %v3263 = vpop.f32.mrf.mxu0
  %3264 = vdwg.mxu0
  %v3265 = vmul.f32 %v3257, 0.35355338
  %v3266 = vmul.f32 %v3262, 0.35355338
  %v3267 = vadd.f32 %v3265, %v184
  %v3268 = vadd.f32 %v3266, %v185
  %v3269 = vsel %vm520, %v3267, -inf
  %3270 = vmax.xlane.f32.xlu0 %v3269
  %v3271 = vpop.xlane.xlu0 %3270
  %v3272 = vsel %vm520, %v3268, -inf
  %3273 = vmax.xlane.f32.xlu0 %v3272
  %v3274 = vpop.xlane.xlu0 %3273
  %v3275 = vsub.f32 %v3267, %v3271
  %v3276 = vsub.f32 %v3268, %v3274
  %v3277 = vmul.f32 %v3275, 1.442695
  %v3278 = vpow.pop %v3277
  %v3279 = vmul.f32 %v3276, 1.442695
  %v3280 = vpow.pop %v3279
  %v3281 = vsel %vm520, %v3278, 0.0
  %3282 = vadd.xlane.f32.xlu0 %v3281
  %v3283 = vpop.xlane.xlu0 %3282
  %v3284 = vsel %vm520, %v3280, 0.0
  %3285 = vadd.xlane.f32.xlu0 %v3284
  %v3286 = vpop.xlane.xlu0 %3285
  %v3287 = vrcp.pop %v3283
  %v3288 = vrcp.pop %v3286
  %v3289 = vmul.f32 %v3278, %v3287
  %v3290 = vmul.f32 %v3280, %v3288
  %v3292 = vsel %vm520, %v3289, 0
  %v3295 = vsel %vm520, %v3290, 0
  %3297 = vmatprep.subr.mxu0 0.0
  %3298 = vmatpush1.msra.mxu0 0.0
  %3299 = vmatprep.subr.mxu0 0.0
  %3300 = vmatpush1.msra.mxu0 0.0
  %3301 = vmatprep.subr.mxu0 0.0
  %3302 = vmatpush1.msra.mxu0 0.0
  %3303 = vmatprep.subr.mxu0 0.0
  %3304 = vmatpush1.msra.mxu0 0.0
  %3305 = vmatprep.subr.mxu0 0.0
  %3306 = vmatpush1.msra.mxu0 0.0
  %3307 = vmatprep.subr.mxu0 0.0
  %3308 = vmatpush1.msra.mxu0 0.0
  %3309 = vmatprep.subr.mxu0 0.0
  %3310 = vmatpush1.msra.mxu0 0.0
  %3311 = vmatprep.subr.mxu0 0.0
  %3312 = vmatpush1.msra.mxu0 0.0
  %3313 = vmatprep.subr.mxu0 0.0
  %3314 = vmatpush1.msra.mxu0 0.0
  %3315 = vmatprep.subr.mxu0 0.0
  %3316 = vmatpush1.msra.mxu0 0.0
  %3317 = vmatprep.subr.mxu0 0.0
  %3318 = vmatpush1.msra.mxu0 0.0
  %3319 = vmatprep.subr.mxu0 0.0
  %3320 = vmatpush1.msra.mxu0 0.0
  %3321 = vmatprep.subr.mxu0 0.0
  %3322 = vmatpush1.msra.mxu0 0.0
  %3323 = vmatprep.subr.mxu0 0.0
  %3324 = vmatpush1.msra.mxu0 0.0
  %3325 = vmatprep.subr.mxu0 0.0
  %3326 = vmatpush1.msra.mxu0 %v3175
  %3327 = vmatprep.subr.mxu0 0.0
  %3328 = vmatpush1.msra.mxu0 %v3172
  %3329 = vmatprep.subr.mxu0 0.0
  %3330 = vmatpush2.msra.mxu0 0.0
  %3331 = vmatprep.subr.mxu0 0.0
  %3332 = vmatpush2.msra.mxu0 0.0
  %3333 = vmatprep.subr.mxu0 0.0
  %3334 = vmatpush2.msra.mxu0 0.0
  %3335 = vmatprep.subr.mxu0 0.0
  %3336 = vmatpush2.msra.mxu0 0.0
  %3337 = vmatprep.subr.mxu0 0.0
  %3338 = vmatpush2.msra.mxu0 0.0
  %3339 = vmatprep.subr.mxu0 0.0
  %3340 = vmatpush2.msra.mxu0 0.0
  %3341 = vmatprep.subr.mxu0 0.0
  %3342 = vmatpush2.msra.mxu0 0.0
  %3343 = vmatprep.subr.mxu0 0.0
  %3344 = vmatpush2.msra.mxu0 0.0
  %3345 = vmatprep.subr.mxu0 0.0
  %3346 = vmatpush2.msra.mxu0 0.0
  %3347 = vmatprep.subr.mxu0 0.0
  %3348 = vmatpush2.msra.mxu0 0.0
  %3349 = vmatprep.subr.mxu0 0.0
  %3350 = vmatpush2.msra.mxu0 0.0
  %3351 = vmatprep.subr.mxu0 0.0
  %3352 = vmatpush2.msra.mxu0 0.0
  %3353 = vmatprep.subr.mxu0 0.0
  %3354 = vmatpush2.msra.mxu0 0.0
  %3355 = vmatprep.subr.mxu0 0.0
  %3356 = vmatpush2.msra.mxu0 0.0
  %3357 = vmatprep.subr.mxu0 0.0
  %3358 = vmatpush2.msra.mxu0 0.0
  %3359 = vmatprep.subr.mxu0 0.0
  %3360 = vmatpush2.msra.mxu0 0.0
  %3361 = vmatprep.mubr.f32.mxu0 0.0
  %3362 = vmatmul.mubr.f32.gmra.mxu0 %v3292
  %v3363 = vpop.f32.mrf.mxu0
  %v3364 = vadd.f32 0.0, %v3363
  %v3365 = vpop.f32.mrf.mxu0
  %3366 = vmatprep.mubr.f32.mxu0 0.0
  %3367 = vmatmul.mubr.f32.gmra.mxu0 %v3295
  %v3368 = vpop.f32.mrf.mxu0
  %v3369 = vadd.f32 0.0, %v3368
  %v3370 = vpop.f32.mrf.mxu0
  %3371 = vdwg.mxu0
  %s3372 = scalar_lea.vmem %s6, 112
  %v3373 = vld [vmem:[%s3372] sm:$0xf]
  %v3374 = vld [vmem:[%s3372 + $0x4] sm:$0xf]
  %v3375 = vld [vmem:[%s3372 + $0x8] sm:$0xf]
  %v3376 = vld [vmem:[%s3372 + $0xc] sm:$0xf]
  %s3377 = scalar_lea.vmem %s7, 7
  %v3378 = vld [vmem:[%s3377] sm:$0x1]
  %v3380 = vlaneseq
  %v3381 = vshrl.u32 %v3380, 7
  %v3382 = vsub.s32 0, %v3381
  %v3383 = vrot.slane %v3378, %v3382
  %v3389 = vunpack.c.l.b16 %v3373
  %v3390 = vunpack.c.l.b16 %v3374
  %v3391 = vunpack.c.l.b16 %v3375
  %v3392 = vunpack.c.l.b16 %v3376
  %v3393 = vpack.c.b16 %v3390, %v3389
  %v3394 = vpack.c.b16 %v3392, %v3391
  %3397 = vmatprep.subr.bf16.mxu0 0
  %3398 = vmatpush1.bf16.msra.mxu0 0
  %3399 = vmatprep.subr.bf16.mxu0 0
  %3400 = vmatpush1.bf16.msra.mxu0 0
  %3401 = vmatprep.subr.bf16.mxu0 0
  %3402 = vmatpush1.bf16.msra.mxu0 0
  %3403 = vmatprep.subr.bf16.mxu0 0
  %3404 = vmatpush1.bf16.msra.mxu0 0
  %3405 = vmatprep.subr.bf16.mxu0 0
  %3406 = vmatpush1.bf16.msra.mxu0 0
  %3407 = vmatprep.subr.bf16.mxu0 0
  %3408 = vmatpush1.bf16.msra.mxu0 0
  %3409 = vmatprep.subr.bf16.mxu0 0
  %3410 = vmatpush1.bf16.msra.mxu0 %v3394
  %3411 = vmatprep.subr.bf16.mxu0 0
  %3412 = vmatpush1.bf16.msra.mxu0 %v3393
  %3413 = vmatprep.subr.bf16.mxu0 0
  %3414 = vmatpush2.bf16.msra.mxu0 0
  %3415 = vmatprep.subr.bf16.mxu0 0
  %3416 = vmatpush2.bf16.msra.mxu0 0
  %3417 = vmatprep.subr.bf16.mxu0 0
  %3418 = vmatpush2.bf16.msra.mxu0 0
  %3419 = vmatprep.subr.bf16.mxu0 0
  %3420 = vmatpush2.bf16.msra.mxu0 0
  %3421 = vmatprep.subr.bf16.mxu0 0
  %3422 = vmatpush2.bf16.msra.mxu0 0
  %3423 = vmatprep.subr.bf16.mxu0 0
  %3424 = vmatpush2.bf16.msra.mxu0 0
  %3425 = vmatprep.subr.bf16.mxu0 0
  %3426 = vmatpush2.bf16.msra.mxu0 0
  %3427 = vmatprep.subr.bf16.mxu0 0
  %3428 = vmatpush2.bf16.msra.mxu0 0
  %3429 = vmatprep.mubr.bf16.mxu0 0
  %3430 = vmatmul.mubr.bf16.gmra.mxu0 %v2219
  %v3431 = vpop.f32.mrf.mxu0
  %v3432 = vadd.f32 %v3383, %v3431
  %v3433 = vpop.f32.mrf.mxu0
  %v3434 = vpop.f32.mrf.mxu0
  %v3435 = vadd.f32 %v3383, %v3434
  %v3436 = vpop.f32.mrf.mxu0
  %3437 = vdwg.mxu0
  %s3438 = scalar_lea.vmem %s8, 112
  %v3439 = vld [vmem:[%s3438] sm:$0xf]
  %v3440 = vld [vmem:[%s3438 + $0x4] sm:$0xf]
  %v3441 = vld [vmem:[%s3438 + $0x8] sm:$0xf]
  %v3442 = vld [vmem:[%s3438 + $0xc] sm:$0xf]
  %s3443 = scalar_lea.vmem %s9, 7
  %v3444 = vld [vmem:[%s3443] sm:$0x1]
  %v3446 = vlaneseq
  %v3447 = vshrl.u32 %v3446, 7
  %v3448 = vsub.s32 0, %v3447
  %v3449 = vrot.slane %v3444, %v3448
  %v3455 = vunpack.c.l.b16 %v3439
  %v3456 = vunpack.c.l.b16 %v3440
  %v3457 = vunpack.c.l.b16 %v3441
  %v3458 = vunpack.c.l.b16 %v3442
  %v3459 = vpack.c.b16 %v3456, %v3455
  %v3460 = vpack.c.b16 %v3458, %v3457
  %3463 = vmatprep.subr.bf16.mxu0 0
  %3464 = vmatpush1.bf16.msra.mxu0 0
  %3465 = vmatprep.subr.bf16.mxu0 0
  %3466 = vmatpush1.bf16.msra.mxu0 0
  %3467 = vmatprep.subr.bf16.mxu0 0
  %3468 = vmatpush1.bf16.msra.mxu0 0
  %3469 = vmatprep.subr.bf16.mxu0 0
  %3470 = vmatpush1.bf16.msra.mxu0 0
  %3471 = vmatprep.subr.bf16.mxu0 0
  %3472 = vmatpush1.bf16.msra.mxu0 0
  %3473 = vmatprep.subr.bf16.mxu0 0
  %3474 = vmatpush1.bf16.msra.mxu0 0
  %3475 = vmatprep.subr.bf16.mxu0 0
  %3476 = vmatpush1.bf16.msra.mxu0 %v3460
  %3477 = vmatprep.subr.bf16.mxu0 0
  %3478 = vmatpush1.bf16.msra.mxu0 %v3459
  %3479 = vmatprep.subr.bf16.mxu0 0
  %3480 = vmatpush2.bf16.msra.mxu0 0
  %3481 = vmatprep.subr.bf16.mxu0 0
  %3482 = vmatpush2.bf16.msra.mxu0 0
  %3483 = vmatprep.subr.bf16.mxu0 0
  %3484 = vmatpush2.bf16.msra.mxu0 0
  %3485 = vmatprep.subr.bf16.mxu0 0
  %3486 = vmatpush2.bf16.msra.mxu0 0
  %3487 = vmatprep.subr.bf16.mxu0 0
  %3488 = vmatpush2.bf16.msra.mxu0 0
  %3489 = vmatprep.subr.bf16.mxu0 0
  %3490 = vmatpush2.bf16.msra.mxu0 0
  %3491 = vmatprep.subr.bf16.mxu0 0
  %3492 = vmatpush2.bf16.msra.mxu0 0
  %3493 = vmatprep.subr.bf16.mxu0 0
  %3494 = vmatpush2.bf16.msra.mxu0 0
  %3495 = vmatprep.mubr.bf16.mxu0 0
  %3496 = vmatmul.mubr.bf16.gmra.mxu0 %v2219
  %v3497 = vpop.f32.mrf.mxu0
  %v3498 = vadd.f32 %v3449, %v3497
  %v3499 = vpop.f32.mrf.mxu0
  %v3500 = vpop.f32.mrf.mxu0
  %v3501 = vadd.f32 %v3449, %v3500
  %v3502 = vpop.f32.mrf.mxu0
  %3503 = vdwg.mxu0
  %s3504 = scalar_lea.vmem %s10, 112
  %v3505 = vld [vmem:[%s3504] sm:$0xf]
  %v3506 = vld [vmem:[%s3504 + $0x4] sm:$0xf]
  %v3507 = vld [vmem:[%s3504 + $0x8] sm:$0xf]
  %v3508 = vld [vmem:[%s3504 + $0xc] sm:$0xf]
  %s3509 = scalar_lea.vmem %s11, 7
  %v3510 = vld [vmem:[%s3509] sm:$0x1]
  %v3512 = vlaneseq
  %v3513 = vshrl.u32 %v3512, 7
  %v3514 = vsub.s32 0, %v3513
  %v3515 = vrot.slane %v3510, %v3514
  %v3521 = vunpack.c.l.b16 %v3505
  %v3522 = vunpack.c.l.b16 %v3506
  %v3523 = vunpack.c.l.b16 %v3507
  %v3524 = vunpack.c.l.b16 %v3508
  %v3525 = vpack.c.b16 %v3522, %v3521
  %v3526 = vpack.c.b16 %v3524, %v3523
  %3529 = vmatprep.subr.bf16.mxu0 0
  %3530 = vmatpush1.bf16.msra.mxu0 0
  %3531 = vmatprep.subr.bf16.mxu0 0
  %3532 = vmatpush1.bf16.msra.mxu0 0
  %3533 = vmatprep.subr.bf16.mxu0 0
  %3534 = vmatpush1.bf16.msra.mxu0 0
  %3535 = vmatprep.subr.bf16.mxu0 0
  %3536 = vmatpush1.bf16.msra.mxu0 0
  %3537 = vmatprep.subr.bf16.mxu0 0
  %3538 = vmatpush1.bf16.msra.mxu0 0
  %3539 = vmatprep.subr.bf16.mxu0 0
  %3540 = vmatpush1.bf16.msra.mxu0 0
  %3541 = vmatprep.subr.bf16.mxu0 0
  %3542 = vmatpush1.bf16.msra.mxu0 %v3526
  %3543 = vmatprep.subr.bf16.mxu0 0
  %3544 = vmatpush1.bf16.msra.mxu0 %v3525
  %3545 = vmatprep.subr.bf16.mxu0 0
  %3546 = vmatpush2.bf16.msra.mxu0 0
  %3547 = vmatprep.subr.bf16.mxu0 0
  %3548 = vmatpush2.bf16.msra.mxu0 0
  %3549 = vmatprep.subr.bf16.mxu0 0
  %3550 = vmatpush2.bf16.msra.mxu0 0
  %3551 = vmatprep.subr.bf16.mxu0 0
  %3552 = vmatpush2.bf16.msra.mxu0 0
  %3553 = vmatprep.subr.bf16.mxu0 0
  %3554 = vmatpush2.bf16.msra.mxu0 0
  %3555 = vmatprep.subr.bf16.mxu0 0
  %3556 = vmatpush2.bf16.msra.mxu0 0
  %3557 = vmatprep.subr.bf16.mxu0 0
  %3558 = vmatpush2.bf16.msra.mxu0 0
  %3559 = vmatprep.subr.bf16.mxu0 0
  %3560 = vmatpush2.bf16.msra.mxu0 0
  %3561 = vmatprep.mubr.bf16.mxu0 0
  %3562 = vmatmul.mubr.bf16.gmra.mxu0 %v2219
  %v3563 = vpop.f32.mrf.mxu0
  %v3564 = vadd.f32 %v3515, %v3563
  %v3565 = vpop.f32.mrf.mxu0
  %v3566 = vpop.f32.mrf.mxu0
  %v3567 = vadd.f32 %v3515, %v3566
  %v3568 = vpop.f32.mrf.mxu0
  %3569 = vdwg.mxu0
  %v3571 = vsel %vm428, %v3432, 0
  %v3574 = vsel %vm428, %v3435, 0
  %v3577 = vsel %vm428, %v3498, 0
  %v3580 = vsel %vm428, %v3501, 0
  %3582 = vmatprep.subr.mxu0 0.0
  %3583 = vmatpush1.xpose.msra.mxu0 0.0
  %3584 = vmatprep.subr.mxu0 0.0
  %3585 = vmatpush1.xpose.msra.mxu0 0.0
  %3586 = vmatprep.subr.mxu0 0.0
  %3587 = vmatpush1.xpose.msra.mxu0 0.0
  %3588 = vmatprep.subr.mxu0 0.0
  %3589 = vmatpush1.xpose.msra.mxu0 0.0
  %3590 = vmatprep.subr.mxu0 0.0
  %3591 = vmatpush1.xpose.msra.mxu0 0.0
  %3592 = vmatprep.subr.mxu0 0.0
  %3593 = vmatpush1.xpose.msra.mxu0 0.0
  %3594 = vmatprep.subr.mxu0 0.0
  %3595 = vmatpush1.xpose.msra.mxu0 0.0
  %3596 = vmatprep.subr.mxu0 0.0
  %3597 = vmatpush1.xpose.msra.mxu0 0.0
  %3598 = vmatprep.subr.mxu0 0.0
  %3599 = vmatpush1.xpose.msra.mxu0 0.0
  %3600 = vmatprep.subr.mxu0 0.0
  %3601 = vmatpush1.xpose.msra.mxu0 0.0
  %3602 = vmatprep.subr.mxu0 0.0
  %3603 = vmatpush1.xpose.msra.mxu0 0.0
  %3604 = vmatprep.subr.mxu0 0.0
  %3605 = vmatpush1.xpose.msra.mxu0 0.0
  %3606 = vmatprep.subr.mxu0 0.0
  %3607 = vmatpush1.xpose.msra.mxu0 0.0
  %3608 = vmatprep.subr.mxu0 0.0
  %3609 = vmatpush1.xpose.msra.mxu0 0.0
  %3610 = vmatprep.subr.mxu0 0.0
  %3611 = vmatpush1.xpose.msra.mxu0 %v3580
  %3612 = vmatprep.subr.mxu0 0.0
  %3613 = vmatpush1.xpose.msra.mxu0 %v3577
  %3614 = vmatprep.subr.mxu0 0.0
  %3615 = vmatpush2.xpose.msra.mxu0 0.0
  %3616 = vmatprep.subr.mxu0 0.0
  %3617 = vmatpush2.xpose.msra.mxu0 0.0
  %3618 = vmatprep.subr.mxu0 0.0
  %3619 = vmatpush2.xpose.msra.mxu0 0.0
  %3620 = vmatprep.subr.mxu0 0.0
  %3621 = vmatpush2.xpose.msra.mxu0 0.0
  %3622 = vmatprep.subr.mxu0 0.0
  %3623 = vmatpush2.xpose.msra.mxu0 0.0
  %3624 = vmatprep.subr.mxu0 0.0
  %3625 = vmatpush2.xpose.msra.mxu0 0.0
  %3626 = vmatprep.subr.mxu0 0.0
  %3627 = vmatpush2.xpose.msra.mxu0 0.0
  %3628 = vmatprep.subr.mxu0 0.0
  %3629 = vmatpush2.xpose.msra.mxu0 0.0
  %3630 = vmatprep.subr.mxu0 0.0
  %3631 = vmatpush2.xpose.msra.mxu0 0.0
  %3632 = vmatprep.subr.mxu0 0.0
  %3633 = vmatpush2.xpose.msra.mxu0 0.0
  %3634 = vmatprep.subr.mxu0 0.0
  %3635 = vmatpush2.xpose.msra.mxu0 0.0
  %3636 = vmatprep.subr.mxu0 0.0
  %3637 = vmatpush2.xpose.msra.mxu0 0.0
  %3638 = vmatprep.subr.mxu0 0.0
  %3639 = vmatpush2.xpose.msra.mxu0 0.0
  %3640 = vmatprep.subr.mxu0 0.0
  %3641 = vmatpush2.xpose.msra.mxu0 0.0
  %3642 = vmatprep.subr.mxu0 0.0
  %3643 = vmatpush2.xpose.msra.mxu0 0.0
  %3644 = vmatprep.subr.mxu0 0.0
  %3645 = vmatpush2.xpose.msra.mxu0 0.0
  %3646 = vmatprep.mubr.f32.mxu0 0.0
  %3647 = vmatmul.mubr.f32.gmra.mxu0 %v3571
  %v3648 = vpop.f32.mrf.mxu0
  %v3649 = vadd.f32 0.0, %v3648
  %v3650 = vpop.f32.mrf.mxu0
  %3651 = vmatprep.mubr.f32.mxu0 0.0
  %3652 = vmatmul.mubr.f32.gmra.mxu0 %v3574
  %v3653 = vpop.f32.mrf.mxu0
  %v3654 = vadd.f32 0.0, %v3653
  %v3655 = vpop.f32.mrf.mxu0
  %3656 = vdwg.mxu0
  %v3657 = vmul.f32 %v3649, 0.35355338
  %v3658 = vmul.f32 %v3654, 0.35355338
  %v3659 = vadd.f32 %v3657, %v184
  %v3660 = vadd.f32 %v3658, %v185
  %v3661 = vsel %vm520, %v3659, -inf
  %3662 = vmax.xlane.f32.xlu0 %v3661
  %v3663 = vpop.xlane.xlu0 %3662
  %v3664 = vsel %vm520, %v3660, -inf
  %3665 = vmax.xlane.f32.xlu0 %v3664
  %v3666 = vpop.xlane.xlu0 %3665
  %v3667 = vsub.f32 %v3659, %v3663
  %v3668 = vsub.f32 %v3660, %v3666
  %v3669 = vmul.f32 %v3667, 1.442695
  %v3670 = vpow.pop %v3669
  %v3671 = vmul.f32 %v3668, 1.442695
  %v3672 = vpow.pop %v3671
  %v3673 = vsel %vm520, %v3670, 0.0
  %3674 = vadd.xlane.f32.xlu0 %v3673
  %v3675 = vpop.xlane.xlu0 %3674
  %v3676 = vsel %vm520, %v3672, 0.0
  %3677 = vadd.xlane.f32.xlu0 %v3676
  %v3678 = vpop.xlane.xlu0 %3677
  %v3679 = vrcp.pop %v3675
  %v3680 = vrcp.pop %v3678
  %v3681 = vmul.f32 %v3670, %v3679
  %v3682 = vmul.f32 %v3672, %v3680
  %v3684 = vsel %vm520, %v3681, 0
  %v3687 = vsel %vm520, %v3682, 0
  %3689 = vmatprep.subr.mxu0 0.0
  %3690 = vmatpush1.msra.mxu0 0.0
  %3691 = vmatprep.subr.mxu0 0.0
  %3692 = vmatpush1.msra.mxu0 0.0
  %3693 = vmatprep.subr.mxu0 0.0
  %3694 = vmatpush1.msra.mxu0 0.0
  %3695 = vmatprep.subr.mxu0 0.0
  %3696 = vmatpush1.msra.mxu0 0.0
  %3697 = vmatprep.subr.mxu0 0.0
  %3698 = vmatpush1.msra.mxu0 0.0
  %3699 = vmatprep.subr.mxu0 0.0
  %3700 = vmatpush1.msra.mxu0 0.0
  %3701 = vmatprep.subr.mxu0 0.0
  %3702 = vmatpush1.msra.mxu0 0.0
  %3703 = vmatprep.subr.mxu0 0.0
  %3704 = vmatpush1.msra.mxu0 0.0
  %3705 = vmatprep.subr.mxu0 0.0
  %3706 = vmatpush1.msra.mxu0 0.0
  %3707 = vmatprep.subr.mxu0 0.0
  %3708 = vmatpush1.msra.mxu0 0.0
  %3709 = vmatprep.subr.mxu0 0.0
  %3710 = vmatpush1.msra.mxu0 0.0
  %3711 = vmatprep.subr.mxu0 0.0
  %3712 = vmatpush1.msra.mxu0 0.0
  %3713 = vmatprep.subr.mxu0 0.0
  %3714 = vmatpush1.msra.mxu0 0.0
  %3715 = vmatprep.subr.mxu0 0.0
  %3716 = vmatpush1.msra.mxu0 0.0
  %3717 = vmatprep.subr.mxu0 0.0
  %3718 = vmatpush1.msra.mxu0 %v3567
  %3719 = vmatprep.subr.mxu0 0.0
  %3720 = vmatpush1.msra.mxu0 %v3564
  %3721 = vmatprep.subr.mxu0 0.0
  %3722 = vmatpush2.msra.mxu0 0.0
  %3723 = vmatprep.subr.mxu0 0.0
  %3724 = vmatpush2.msra.mxu0 0.0
  %3725 = vmatprep.subr.mxu0 0.0
  %3726 = vmatpush2.msra.mxu0 0.0
  %3727 = vmatprep.subr.mxu0 0.0
  %3728 = vmatpush2.msra.mxu0 0.0
  %3729 = vmatprep.subr.mxu0 0.0
  %3730 = vmatpush2.msra.mxu0 0.0
  %3731 = vmatprep.subr.mxu0 0.0
  %3732 = vmatpush2.msra.mxu0 0.0
  %3733 = vmatprep.subr.mxu0 0.0
  %3734 = vmatpush2.msra.mxu0 0.0
  %3735 = vmatprep.subr.mxu0 0.0
  %3736 = vmatpush2.msra.mxu0 0.0
  %3737 = vmatprep.subr.mxu0 0.0
  %3738 = vmatpush2.msra.mxu0 0.0
  %3739 = vmatprep.subr.mxu0 0.0
  %3740 = vmatpush2.msra.mxu0 0.0
  %3741 = vmatprep.subr.mxu0 0.0
  %3742 = vmatpush2.msra.mxu0 0.0
  %3743 = vmatprep.subr.mxu0 0.0
  %3744 = vmatpush2.msra.mxu0 0.0
  %3745 = vmatprep.subr.mxu0 0.0
  %3746 = vmatpush2.msra.mxu0 0.0
  %3747 = vmatprep.subr.mxu0 0.0
  %3748 = vmatpush2.msra.mxu0 0.0
  %3749 = vmatprep.subr.mxu0 0.0
  %3750 = vmatpush2.msra.mxu0 0.0
  %3751 = vmatprep.subr.mxu0 0.0
  %3752 = vmatpush2.msra.mxu0 0.0
  %3753 = vmatprep.mubr.f32.mxu0 0.0
  %3754 = vmatmul.mubr.f32.gmra.mxu0 %v3684
  %v3755 = vpop.f32.mrf.mxu0
  %v3756 = vadd.f32 0.0, %v3755
  %v3757 = vpop.f32.mrf.mxu0
  %3758 = vmatprep.mubr.f32.mxu0 0.0
  %3759 = vmatmul.mubr.f32.gmra.mxu0 %v3687
  %v3760 = vpop.f32.mrf.mxu0
  %v3761 = vadd.f32 0.0, %v3760
  %v3762 = vpop.f32.mrf.mxu0
  %3763 = vdwg.mxu0
  %3766 = vrot.lane.b32.xlu0 %v2972, 8
  %v3767 = vpop.permute.xlu0 %3766
  %3768 = vrot.lane.b32.xlu0 %v2977, 8
  %v3769 = vpop.permute.xlu0 %3768
  %3774 = vrot.lane.b32.xlu0 %v3364, 16
  %v3775 = vpop.permute.xlu0 %3774
  %3776 = vrot.lane.b32.xlu0 %v3369, 16
  %v3777 = vpop.permute.xlu0 %3776
  %3782 = vrot.lane.b32.xlu0 %v3756, 24
  %v3783 = vpop.permute.xlu0 %3782
  %3784 = vrot.lane.b32.xlu0 %v3761, 24
  %v3785 = vpop.permute.xlu0 %3784
  %v3788 = vsel %vm428, %v2580, %v3767
  %v3789 = vsel %vm428, %v2585, %v3769
  %v3790 = vsel %vm520, %v3788, %v3775
  %v3791 = vsel %vm520, %v3789, %v3777
  %v3792 = vsel %vm1828, %v3790, %v3783
  %v3793 = vsel %vm1828, %v3791, %v3785
  %v3794 = vpack.c.bf16 %v3793, %v3792
  %s3795 = scalar_lea.vmem %s12, 16
  %v3796 = vld [vmem:[%s3795] sm:$0xf]
  %v3797 = vld [vmem:[%s3795 + $0x4] sm:$0xf]
  %v3798 = vld [vmem:[%s3795 + $0x8] sm:$0xf]
  %v3799 = vld [vmem:[%s3795 + $0xc] sm:$0xf]
  %s3800 = scalar_lea.vmem %s13, 1
  %v3801 = vld [vmem:[%s3800] sm:$0x1]
  %v3803 = vlaneseq
  %v3804 = vshrl.u32 %v3803, 7
  %v3805 = vsub.s32 0, %v3804
  %v3806 = vrot.slane %v3801, %v3805
  %v3812 = vunpack.c.l.b16 %v3796
  %v3813 = vunpack.c.l.b16 %v3797
  %v3814 = vunpack.c.l.b16 %v3798
  %v3815 = vunpack.c.l.b16 %v3799
  %v3816 = vpack.c.b16 %v3813, %v3812
  %v3817 = vpack.c.b16 %v3815, %v3814
  %v3821 = vsel %vm188, %v3794, 0
  %3823 = vmatprep.subr.bf16.mxu0 0
  %3824 = vmatpush1.bf16.msra.mxu0 0
  %3825 = vmatprep.subr.bf16.mxu0 0
  %3826 = vmatpush1.bf16.msra.mxu0 0
  %3827 = vmatprep.subr.bf16.mxu0 0
  %3828 = vmatpush1.bf16.msra.mxu0 0
  %3829 = vmatprep.subr.bf16.mxu0 0
  %3830 = vmatpush1.bf16.msra.mxu0 0
  %3831 = vmatprep.subr.bf16.mxu0 0
  %3832 = vmatpush1.bf16.msra.mxu0 0
  %3833 = vmatprep.subr.bf16.mxu0 0
  %3834 = vmatpush1.bf16.msra.mxu0 0
  %3835 = vmatprep.subr.bf16.mxu0 0
  %3836 = vmatpush1.bf16.msra.mxu0 %v3817
  %3837 = vmatprep.subr.bf16.mxu0 0
  %3838 = vmatpush1.bf16.msra.mxu0 %v3816
  %3839 = vmatprep.subr.bf16.mxu0 0
  %3840 = vmatpush2.bf16.msra.mxu0 0
  %3841 = vmatprep.subr.bf16.mxu0 0
  %3842 = vmatpush2.bf16.msra.mxu0 0
  %3843 = vmatprep.subr.bf16.mxu0 0
  %3844 = vmatpush2.bf16.msra.mxu0 0
  %3845 = vmatprep.subr.bf16.mxu0 0
  %3846 = vmatpush2.bf16.msra.mxu0 0
  %3847 = vmatprep.subr.bf16.mxu0 0
  %3848 = vmatpush2.bf16.msra.mxu0 0
  %3849 = vmatprep.subr.bf16.mxu0 0
  %3850 = vmatpush2.bf16.msra.mxu0 0
  %3851 = vmatprep.subr.bf16.mxu0 0
  %3852 = vmatpush2.bf16.msra.mxu0 0
  %3853 = vmatprep.subr.bf16.mxu0 0
  %3854 = vmatpush2.bf16.msra.mxu0 0
  %3855 = vmatprep.mubr.bf16.mxu0 0
  %3856 = vmatmul.mubr.bf16.gmra.mxu0 %v3821
  %v3857 = vpop.f32.mrf.mxu0
  %v3858 = vadd.f32 %v3806, %v3857
  %v3859 = vpop.f32.mrf.mxu0
  %v3860 = vpop.f32.mrf.mxu0
  %v3861 = vadd.f32 %v3806, %v3860
  %v3862 = vpop.f32.mrf.mxu0
  %3863 = vdwg.mxu0
  %v3864 = vadd.f32 %v3858, %v2144
  %v3865 = vadd.f32 %v3861, %v2145
  %s3866 = scalar_lea.vmem %s14, 1
  %v3867 = vld [vmem:[%s3866] sm:$0x1]
  %s3868 = scalar_lea.vmem %s15, 1
  %v3869 = vld [vmem:[%s3868] sm:$0x1]
  %v3870 = vsel %vm188, %v3864, 0.0
  %3871 = vadd.xlane.f32.xlu0 %v3870
  %v3872 = vpop.xlane.xlu0 %3871
  %v3873 = vsel %vm188, %v3865, 0.0
  %3874 = vadd.xlane.f32.xlu0 %v3873
  %v3875 = vpop.xlane.xlu0 %3874
  %v3876 = vmul.f32 %v3872, %v195
  %v3877 = vmul.f32 %v3875, %v195
  %v3878 = vsub.f32 %v3864, %v3876
  %v3879 = vsub.f32 %v3865, %v3877
  %v3880 = vmul.f32 %v3878, %v3878
  %v3881 = vmul.f32 %v3879, %v3879
  %v3882 = vsel %vm188, %v3880, 0.0
  %3883 = vadd.xlane.f32.xlu0 %v3882
  %v3884 = vpop.xlane.xlu0 %3883
  %v3885 = vsel %vm188, %v3881, 0.0
  %3886 = vadd.xlane.f32.xlu0 %v3885
  %v3887 = vpop.xlane.xlu0 %3886
  %v3888 = vmul.f32 %v3884, %v195
  %v3889 = vmul.f32 %v3887, %v195
  %v3890 = vadd.f32 %v3888, 1e-12
  %v3891 = vadd.f32 %v3889, 1e-12
  %v3892 = vrsqrt.pop %v3890
  %v3893 = vrsqrt.pop %v3891
  %v3894 = vmul.f32 %v3878, %v3892
  %v3895 = vmul.f32 %v3879, %v3893
  %v3897 = vlaneseq
  %v3898 = vshrl.u32 %v3897, 7
  %v3899 = vsub.s32 0, %v3898
  %v3900 = vrot.slane %v3867, %v3899
  %v3902 = vmul.f32 %v3894, %v3900
  %v3903 = vmul.f32 %v3895, %v3900
  %v3905 = vlaneseq
  %v3906 = vshrl.u32 %v3905, 7
  %v3907 = vsub.s32 0, %v3906
  %v3908 = vrot.slane %v3869, %v3907
  %v3910 = vadd.f32 %v3902, %v3908
  %v3911 = vadd.f32 %v3903, %v3908
  %v3912 = vpack.c.bf16 %v3911, %v3910
  %s3913 = scalar_lea.vmem %s16, 16
  %v3914 = vld [vmem:[%s3913] sm:$0xf]
  %v3915 = vld [vmem:[%s3913 + $0x4] sm:$0xf]
  %v3916 = vld [vmem:[%s3913 + $0x8] sm:$0xf]
  %v3917 = vld [vmem:[%s3913 + $0xc] sm:$0xf]
  %s3918 = scalar_lea.vmem %s17, 1
  %v3919 = vld [vmem:[%s3918] sm:$0x1]
  %v3921 = vlaneseq
  %v3922 = vshrl.u32 %v3921, 7
  %v3923 = vsub.s32 0, %v3922
  %v3924 = vrot.slane %v3919, %v3923
  %v3930 = vunpack.c.l.b16 %v3914
  %v3931 = vunpack.c.l.b16 %v3915
  %v3932 = vunpack.c.l.b16 %v3916
  %v3933 = vunpack.c.l.b16 %v3917
  %v3934 = vpack.c.b16 %v3931, %v3930
  %v3935 = vpack.c.b16 %v3933, %v3932
  %v3939 = vsel %vm188, %v3912, 0
  %3941 = vmatprep.subr.bf16.mxu0 0
  %3942 = vmatpush1.bf16.msra.mxu0 0
  %3943 = vmatprep.subr.bf16.mxu0 0
  %3944 = vmatpush1.bf16.msra.mxu0 0
  %3945 = vmatprep.subr.bf16.mxu0 0
  %3946 = vmatpush1.bf16.msra.mxu0 0
  %3947 = vmatprep.subr.bf16.mxu0 0
  %3948 = vmatpush1.bf16.msra.mxu0 0
  %3949 = vmatprep.subr.bf16.mxu0 0
  %3950 = vmatpush1.bf16.msra.mxu0 0
  %3951 = vmatprep.subr.bf16.mxu0 0
  %3952 = vmatpush1.bf16.msra.mxu0 0
  %3953 = vmatprep.subr.bf16.mxu0 0
  %3954 = vmatpush1.bf16.msra.mxu0 %v3935
  %3955 = vmatprep.subr.bf16.mxu0 0
  %3956 = vmatpush1.bf16.msra.mxu0 %v3934
  %3957 = vmatprep.subr.bf16.mxu0 0
  %3958 = vmatpush2.bf16.msra.mxu0 0
  %3959 = vmatprep.subr.bf16.mxu0 0
  %3960 = vmatpush2.bf16.msra.mxu0 0
  %3961 = vmatprep.subr.bf16.mxu0 0
  %3962 = vmatpush2.bf16.msra.mxu0 0
  %3963 = vmatprep.subr.bf16.mxu0 0
  %3964 = vmatpush2.bf16.msra.mxu0 0
  %3965 = vmatprep.subr.bf16.mxu0 0
  %3966 = vmatpush2.bf16.msra.mxu0 0
  %3967 = vmatprep.subr.bf16.mxu0 0
  %3968 = vmatpush2.bf16.msra.mxu0 0
  %3969 = vmatprep.subr.bf16.mxu0 0
  %3970 = vmatpush2.bf16.msra.mxu0 0
  %3971 = vmatprep.subr.bf16.mxu0 0
  %3972 = vmatpush2.bf16.msra.mxu0 0
  %3973 = vmatprep.mubr.bf16.mxu0 0
  %3974 = vmatmul.mubr.bf16.gmra.mxu0 %v3939
  %v3975 = vpop.f32.mrf.mxu0
  %v3976 = vadd.f32 %v3924, %v3975
  %v3977 = vpop.f32.mrf.mxu0
  %v3978 = vpop.f32.mrf.mxu0
  %v3979 = vadd.f32 %v3924, %v3978
  %v3980 = vpop.f32.mrf.mxu0
  %3981 = vdwg.mxu0
  %v3982 = vmul.f32 %v3976, %v3976
  %v3983 = vmul.f32 %v3979, %v3979
  %v3984 = vmul.f32 %v3976, %v3982
  %v3985 = vmul.f32 %v3979, %v3983
  %v3986 = vmul.f32 %v3984, 0.044715
  %v3987 = vmul.f32 %v3985, 0.044715
  %v3988 = vadd.f32 %v3976, %v3986
  %v3989 = vadd.f32 %v3979, %v3987
  %v3990 = vmul.f32 %v3988, 0.7978846
  %v3991 = vmul.f32 %v3989, 0.7978846
  %v3992 = vtanh.pop %v3990
  %v3993 = vtanh.pop %v3991
  %v3994 = vadd.f32 %v3992, 1.0
  %v3995 = vadd.f32 %v3993, 1.0
  %v3996 = vmul.f32 %v3994, 0.5
  %v3997 = vmul.f32 %v3995, 0.5
  %v3998 = vmul.f32 %v3976, %v3996
  %v3999 = vmul.f32 %v3979, %v3997
  %v4000 = vpack.c.bf16 %v3999, %v3998
  %s4001 = scalar_lea.vmem %s18, 64
  %v4002 = vld [vmem:[%s4001] sm:$0xf]
  %v4003 = vld [vmem:[%s4001 + $0x4] sm:$0xf]
  %v4004 = vld [vmem:[%s4001 + $0x8] sm:$0xf]
  %v4005 = vld [vmem:[%s4001 + $0xc] sm:$0xf]
  %v4006 = vld [vmem:[%s4001 + $0x10] sm:$0xf]
  %v4007 = vld [vmem:[%s4001 + $0x14] sm:$0xf]
  %v4008 = vld [vmem:[%s4001 + $0x18] sm:$0xf]
  %v4009 = vld [vmem:[%s4001 + $0x1c] sm:$0xf]
  %v4010 = vld [vmem:[%s4001 + $0x20] sm:$0xf]
  %v4011 = vld [vmem:[%s4001 + $0x24] sm:$0xf]
  %v4012 = vld [vmem:[%s4001 + $0x28] sm:$0xf]
  %v4013 = vld [vmem:[%s4001 + $0x2c] sm:$0xf]
  %v4014 = vld [vmem:[%s4001 + $0x30] sm:$0xf]
  %v4015 = vld [vmem:[%s4001 + $0x34] sm:$0xf]
  %v4016 = vld [vmem:[%s4001 + $0x38] sm:$0xf]
  %v4017 = vld [vmem:[%s4001 + $0x3c] sm:$0xf]
  %s4018 = scalar_lea.vmem %s19, 1
  %v4019 = vld [vmem:[%s4018] sm:$0x1]
  %v4021 = vlaneseq
  %v4022 = vshrl.u32 %v4021, 7
  %v4023 = vsub.s32 0, %v4022
  %v4024 = vrot.slane %v4019, %v4023
  %v4042 = vunpack.c.l.b16 %v4002
  %v4043 = vunpack.c.l.b16 %v4003
  %v4044 = vunpack.c.l.b16 %v4004
  %v4045 = vunpack.c.l.b16 %v4005
  %v4046 = vunpack.c.l.b16 %v4006
  %v4047 = vunpack.c.l.b16 %v4007
  %v4048 = vunpack.c.l.b16 %v4008
  %v4049 = vunpack.c.l.b16 %v4009
  %v4050 = vunpack.c.l.b16 %v4010
  %v4051 = vunpack.c.l.b16 %v4011
  %v4052 = vunpack.c.l.b16 %v4012
  %v4053 = vunpack.c.l.b16 %v4013
  %v4054 = vunpack.c.l.b16 %v4014
  %v4055 = vunpack.c.l.b16 %v4015
  %v4056 = vunpack.c.l.b16 %v4016
  %v4057 = vunpack.c.l.b16 %v4017
  %v4058 = vpack.c.b16 %v4043, %v4042
  %v4059 = vpack.c.b16 %v4045, %v4044
  %v4060 = vpack.c.b16 %v4047, %v4046
  %v4061 = vpack.c.b16 %v4049, %v4048
  %v4062 = vpack.c.b16 %v4051, %v4050
  %v4063 = vpack.c.b16 %v4053, %v4052
  %v4064 = vpack.c.b16 %v4055, %v4054
  %v4065 = vpack.c.b16 %v4057, %v4056
  %4074 = vmatprep.subr.bf16.mxu0 0
  %4075 = vmatpush1.bf16.msra.mxu0 %v4065
  %4076 = vmatprep.subr.bf16.mxu0 0
  %4077 = vmatpush1.bf16.msra.mxu0 %v4064
  %4078 = vmatprep.subr.bf16.mxu0 0
  %4079 = vmatpush1.bf16.msra.mxu0 %v4063
  %4080 = vmatprep.subr.bf16.mxu0 0
  %4081 = vmatpush1.bf16.msra.mxu0 %v4062
  %4082 = vmatprep.subr.bf16.mxu0 0
  %4083 = vmatpush1.bf16.msra.mxu0 %v4061
  %4084 = vmatprep.subr.bf16.mxu0 0
  %4085 = vmatpush1.bf16.msra.mxu0 %v4060
  %4086 = vmatprep.subr.bf16.mxu0 0
  %4087 = vmatpush1.bf16.msra.mxu0 %v4059
  %4088 = vmatprep.subr.bf16.mxu0 0
  %4089 = vmatpush1.bf16.msra.mxu0 %v4058
  %4090 = vmatprep.subr.bf16.mxu0 0
  %4091 = vmatpush2.bf16.msra.mxu0 0
  %4092 = vmatprep.subr.bf16.mxu0 0
  %4093 = vmatpush2.bf16.msra.mxu0 0
  %4094 = vmatprep.subr.bf16.mxu0 0
  %4095 = vmatpush2.bf16.msra.mxu0 0
  %4096 = vmatprep.subr.bf16.mxu0 0
  %4097 = vmatpush2.bf16.msra.mxu0 0
  %4098 = vmatprep.subr.bf16.mxu0 0
  %4099 = vmatpush2.bf16.msra.mxu0 0
  %4100 = vmatprep.subr.bf16.mxu0 0
  %4101 = vmatpush2.bf16.msra.mxu0 0
  %4102 = vmatprep.subr.bf16.mxu0 0
  %4103 = vmatpush2.bf16.msra.mxu0 0
  %4104 = vmatprep.subr.bf16.mxu0 0
  %4105 = vmatpush2.bf16.msra.mxu0 0
  %4106 = vmatprep.mubr.bf16.mxu0 0
  %4107 = vmatmul.mubr.bf16.gmra.mxu0 %v4000
  %v4108 = vpop.f32.mrf.mxu0
  %v4109 = vadd.f32 %v4024, %v4108
  %v4110 = vpop.f32.mrf.mxu0
  %v4111 = vpop.f32.mrf.mxu0
  %v4112 = vadd.f32 %v4024, %v4111
  %v4113 = vpop.f32.mrf.mxu0
  %4114 = vdwg.mxu0
  %v4115 = vadd.f32 %v4109, %v3864
  %v4116 = vadd.f32 %v4112, %v3865
  %v4117 = vld [vmem:[%s20] sm:$0x1]
  %v4118 = vld [vmem:[%s21] sm:$0x1]
  %v4119 = vsel %vm188, %v4115, 0.0
  %4120 = vadd.xlane.f32.xlu0 %v4119
  %v4121 = vpop.xlane.xlu0 %4120
  %v4122 = vsel %vm188, %v4116, 0.0
  %4123 = vadd.xlane.f32.xlu0 %v4122
  %v4124 = vpop.xlane.xlu0 %4123
  %v4125 = vmul.f32 %v4121, %v195
  %v4126 = vmul.f32 %v4124, %v195
  %v4127 = vsub.f32 %v4115, %v4125
  %v4128 = vsub.f32 %v4116, %v4126
  %v4129 = vmul.f32 %v4127, %v4127
  %v4130 = vmul.f32 %v4128, %v4128
  %v4131 = vsel %vm188, %v4129, 0.0
  %4132 = vadd.xlane.f32.xlu0 %v4131
  %v4133 = vpop.xlane.xlu0 %4132
  %v4134 = vsel %vm188, %v4130, 0.0
  %4135 = vadd.xlane.f32.xlu0 %v4134
  %v4136 = vpop.xlane.xlu0 %4135
  %v4137 = vmul.f32 %v4133, %v195
  %v4138 = vmul.f32 %v4136, %v195
  %v4139 = vadd.f32 %v4137, 1e-12
  %v4140 = vadd.f32 %v4138, 1e-12
  %v4141 = vrsqrt.pop %v4139
  %v4142 = vrsqrt.pop %v4140
  %v4143 = vmul.f32 %v4127, %v4141
  %v4144 = vmul.f32 %v4128, %v4142
  %v4146 = vlaneseq
  %v4147 = vshrl.u32 %v4146, 7
  %v4148 = vsub.s32 0, %v4147
  %v4149 = vrot.slane %v4117, %v4148
  %v4151 = vmul.f32 %v4143, %v4149
  %v4152 = vmul.f32 %v4144, %v4149
  %v4154 = vlaneseq
  %v4155 = vshrl.u32 %v4154, 7
  %v4156 = vsub.s32 0, %v4155
  %v4157 = vrot.slane %v4118, %v4156
  %v4159 = vadd.f32 %v4151, %v4157
  %v4160 = vadd.f32 %v4152, %v4157
  %4161 = vst.msk [vmem:[%s22] sm:$0xff] %vm188, %v4159
  %4162 = vst.msk [vmem:[%s22 + $0x8] sm:$0xff] %vm188, %v4160
  // Predicated region
  $region90: #{maskvlm_image_encoder_forward.1} parent=0 // pred_check
    _
  $region91: #{maskvlm_image_encoder_forward.1} parent=0 // pred_check_branch
    %4164 = sbr.rel (0) target = $region93
  $region92: #{maskvlm_image_encoder_forward.1} parent=0 // pred_region
    _
  $region93: #{maskvlm_image_encoder_forward.1} parent=0 // pred_fallthru
    _
  // Predicated region
  $region94: #{maskvlm_image_encoder_forward.1} parent=0 // pred_check
    _
  $region95: #{maskvlm_image_encoder_forward.1} parent=0 // pred_check_branch
    %4166 = sbr.rel (0) target = $region97
  $region96: #{maskvlm_image_encoder_forward.1} parent=0 // pred_region
    _
  $region97: #{maskvlm_image_encoder_forward.1} parent=0 // pred_fallthru
    _

</llo_original>
